<compile_context>
chip_gen: v7x
topology: tpu7x:2x2x1
jax: 0.10.0
libtpu: 0.0.40
codegen_flags: <defaults>
</compile_context>

<pallas_src>
import math
import functools

import jax
import jax.numpy as jnp
from jax import lax
from jax.experimental import pallas as pl
from jax.experimental.pallas import tpu as pltpu

# ----------------------------- configuration --------------------------------
B         = 2
SEQ_LEN   = 12
LABEL_LEN = 6
PRED_LEN  = 6
DEC_LEN   = LABEL_LEN + PRED_LEN     # 12
ENC_IN    = 4
DEC_IN    = 4
C_OUT     = 4
D_MODEL   = 32
N_HEADS   = 4
HEAD_DIM  = D_MODEL // N_HEADS       # 8
D_FF      = 64
E_LAYERS  = 2
D_LAYERS  = 1
N_MARK    = 4                        # 'timeF' embedding, freq='h' -> 4 features

NQ_ENC  = B * SEQ_LEN                # 24 encoder tokens (both batches)
NQ_DEC  = B * DEC_LEN                # 24 decoder tokens
KBLK    = 32                         # per-head key block (24 keys + 8 pad)
SCALE   = 1.0 / math.sqrt(HEAD_DIM)
NEG_INF = -1e30
F32     = jnp.float32


# ====================== packed parameter-slab layout =========================

def _param_entries():
    e = []

    def add(name, r, c):
        e.append((name, r, c))

    add("enc_emb_w", 32, D_MODEL); add("enc_decay_w", 32, D_MODEL)
    add("enc_decay_b", 1, D_MODEL)
    add("dec_emb_w", 32, D_MODEL); add("dec_decay_w", 32, D_MODEL)
    add("dec_decay_b", 1, D_MODEL)
    add("enc_pe", NQ_ENC, D_MODEL); add("dec_pe", NQ_DEC, D_MODEL)

    for i in range(E_LAYERS):
        p = f"enc{i}_"
        add(p + "wqkv", D_MODEL, 128); add(p + "bqkv", 1, 128)
        add(p + "wo", D_MODEL, D_MODEL); add(p + "bo", 1, D_MODEL)
        add(p + "w1", D_MODEL, D_FF); add(p + "b1", 1, D_FF)
        add(p + "w2", D_FF, D_MODEL); add(p + "b2", 1, D_MODEL)
        for nm in ("ln1_g", "ln1_b", "ln2_g", "ln2_b"):
            add(p + nm, 1, D_MODEL)
    add("enc_norm_g", 1, D_MODEL); add("enc_norm_b", 1, D_MODEL)

    for i in range(D_LAYERS):
        p = f"dec{i}_"
        add(p + "self_wqkv", D_MODEL, 128); add(p + "self_bqkv", 1, 128)
        add(p + "self_wo", D_MODEL, D_MODEL); add(p + "self_bo", 1, D_MODEL)
        add(p + "cross_wq", D_MODEL, D_MODEL); add(p + "cross_bq", 1, D_MODEL)
        add(p + "cross_wkv", D_MODEL, 128); add(p + "cross_bkv", 1, 128)
        add(p + "cross_wo", D_MODEL, D_MODEL); add(p + "cross_bo", 1, D_MODEL)
        add(p + "w1", D_MODEL, D_FF); add(p + "b1", 1, D_FF)
        add(p + "w2", D_FF, D_MODEL); add(p + "b2", 1, D_MODEL)
        for nm in ("ln1_g", "ln1_b", "ln2_g", "ln2_b", "ln3_g", "ln3_b"):
            add(p + nm, 1, D_MODEL)
    add("dec_norm_g", 1, D_MODEL); add("dec_norm_b", 1, D_MODEL)

    add("proj_w", D_MODEL, 128); add("proj_b", 1, 128)
    return e


def _make_layout():
    layout, row = {}, 0
    for name, r, c in _param_entries():
        layout[name] = (row, r, c)
        row += ((r + 7) // 8) * 8          # 8-row aligned starts
    return layout, row


LAYOUT, W_ROWS = _make_layout()


# ============================ the fused kernel ===============================

def _informer_kernel(layout, data_ref, w_ref, out_ref):
    def W(name):
        r0, r, c = layout[name]
        return w_ref[r0:r0 + r, 0:c]

    def dot(a, b):
        return jnp.dot(a, b, preferred_element_type=F32)

    # ------- in-kernel constants (iota-based, built once) -------
    lane32 = lax.broadcasted_iota(jnp.int32, (1, D_MODEL), 1)
    hms = [((lane32 >= h * HEAD_DIM) & (lane32 < (h + 1) * HEAD_DIM)).astype(F32)
           for h in range(N_HEADS)]
    # ones_map[h*32 + j, d] = 1 iff d belongs to head h  (per-head block sums)
    ones_map = jnp.concatenate(
        [jnp.broadcast_to(hm, (KBLK, D_MODEL)) for hm in hms], axis=0)  # [128,32]

    def packed_bias(q_len, k_len, causal):
        # Additive bias [B*q_len, 4*KBLK]; same batch-block (+causal) pattern
        # tiled across the 4 per-head 32-lane key blocks (8 pad keys masked).
        # NOTE: assumes B == 2.
        nq = B * q_len
        r = lax.broadcasted_iota(jnp.int32, (nq, N_HEADS * KBLK), 0)
        l = lax.broadcasted_iota(jnp.int32, (nq, N_HEADS * KBLK), 1)
        j = l & (KBLK - 1)                       # key slot within head block
        qb1 = r >= q_len
        kb1 = j >= k_len
        qt = r - jnp.where(qb1, q_len, 0)
        kt = j - jnp.where(kb1, k_len, 0)
        ok = (j < B * k_len) & (qb1 == kb1)
        if causal:
            ok = ok & (kt <= qt)
        return jnp.where(ok, 0.0, NEG_INF).astype(F32)

    bias_enc   = packed_bias(SEQ_LEN, SEQ_LEN, causal=False)
    bias_dself = packed_bias(DEC_LEN, DEC_LEN, causal=True)
    bias_cross = packed_bias(DEC_LEN, SEQ_LEN, causal=False)

    # ------- fused building blocks -------
    def layernorm(x, g, b):
        mu = jnp.mean(x, axis=-1, keepdims=True)
        var = jnp.mean(jnp.square(x - mu), axis=-1, keepdims=True)
        return (x - mu) * lax.rsqrt(var + 1e-5) * g + b        # torch eps=1e-5

    def attention(q32, k32, v32, wo, bo, bias):
        # lane-packed all-heads softmax attention
        nk = k32.shape[0]
        zpad = jnp.zeros((KBLK - nk, D_MODEL), F32)
        # block-diagonal (over heads) K and V, keys on sublanes: [128, 32]
        bk = jnp.concatenate([p for hm in hms for p in (k32 * hm, zpad)], axis=0)
        bv = jnp.concatenate([p for hm in hms for p in (v32 * hm, zpad)], axis=0)
        # one score matmul for all heads: [Nq,32] x [128,32]^T -> [Nq,128]
        s = lax.dot_general(q32, bk, (((1,), (1,)), ((), ())),
                            preferred_element_type=F32) * SCALE + bias
        # global row max == per-head max up to a per-row constant (softmax-inv.)
        m = jnp.max(s, axis=-1, keepdims=True)
        e = jnp.exp(s - m)
        ctx = dot(e, bv)                          # [Nq, 32] unnormalized context
        den = jnp.maximum(dot(e, ones_map), 1e-30)  # per-head denom, broadcast
        ctx = ctx * pl.reciprocal(den, approx=True)
        return dot(ctx, wo) + bo

    def self_attn(x, pfx, bias):
        qkv = dot(x, W(pfx + "wqkv")) + W(pfx + "bqkv")   # lanes: Q|K|V|0
        q32 = qkv[:, 0:D_MODEL]
        k32 = pltpu.roll(qkv, shift=96, axis=1)[:, 0:D_MODEL]   # K -> lanes 0..31
        v32 = pltpu.roll(qkv, shift=64, axis=1)[:, 0:D_MODEL]   # V -> lanes 0..31
        return attention(q32, k32, v32, W(pfx + "wo"), W(pfx + "bo"), bias)

    def cross_attn(xq, xkv, pfx, bias):
        q32 = dot(xq, W(pfx + "wq")) + W(pfx + "bq")
        kv = dot(xkv, W(pfx + "wkv")) + W(pfx + "bkv")    # lanes: K|V|0|0
        k32 = kv[:, 0:D_MODEL]
        v32 = pltpu.roll(kv, shift=96, axis=1)[:, 0:D_MODEL]
        return attention(q32, k32, v32, W(pfx + "wo"), W(pfx + "bo"), bias)

    def ffn(x, pfx):
        y = jnp.maximum(dot(x, W(pfx + "w1")) + W(pfx + "b1"), 0.0)
        return dot(y, W(pfx + "w2")) + W(pfx + "b2")

    def embed_and_gate(rows, emb_name, pe_name, dw_name, db_name):
        # DataEmbedding (token conv via im2col cols + timeF linear + PE) and
        # TemporalDecay gamma = exp(-relu(W delta + b)) from the same rows.
        emb = dot(rows, W(emb_name)) + W(pe_name)
        gamma = jnp.exp(-jnp.maximum(dot(rows, W(dw_name)) + W(db_name), 0.0))
        # TODO(synk): exact gamma placement inside Encoder/Decoder not shown in
        # the reference snippet; applied as a multiplicative gate on the
        # embedded input.
        return emb * gamma

    enc_rows = data_ref[0:NQ_ENC, :]
    dec_rows = data_ref[NQ_ENC:NQ_ENC + NQ_DEC, :]

    # ------------------------------- encoder --------------------------------
    x = embed_and_gate(enc_rows, "enc_emb_w", "enc_pe", "enc_decay_w", "enc_decay_b")
    for i in range(E_LAYERS):
        p = f"enc{i}_"
        x = layernorm(x + self_attn(x, p, bias_enc), W(p + "ln1_g"), W(p + "ln1_b"))
        x = layernorm(x + ffn(x, p), W(p + "ln2_g"), W(p + "ln2_b"))
    enc_out = layernorm(x, W("enc_norm_g"), W("enc_norm_b"))

    # ------------------------------- decoder --------------------------------
    xd = embed_and_gate(dec_rows, "dec_emb_w", "dec_pe", "dec_decay_w", "dec_decay_b")
    for i in range(D_LAYERS):
        p = f"dec{i}_"
        xd = layernorm(xd + self_attn(xd, p + "self_", bias_dself),
                       W(p + "ln1_g"), W(p + "ln1_b"))
        xd = layernorm(xd + cross_attn(xd, enc_out, p + "cross_", bias_cross),
                       W(p + "ln2_g"), W(p + "ln2_b"))
        xd = layernorm(xd + ffn(xd, p), W(p + "ln3_g"), W(p + "ln3_b"))
    xd = layernorm(xd, W("dec_norm_g"), W("dec_norm_b"))

    # lane-dense 128-wide projection/store; host slices [:, :C_OUT]
    out_ref[...] = dot(xd, W("proj_w")) + W("proj_b")


# ======================= host-side (plain-JAX) helpers =======================

def positional_embedding(L, d_model):
    pos = jnp.arange(L, dtype=F32)[:, None]
    div = jnp.exp(jnp.arange(0, d_model, 2, dtype=F32) * (-math.log(10000.0) / d_model))
    pe = jnp.zeros((L, d_model), F32)
    pe = pe.at[:, 0::2].set(jnp.sin(pos * div))
    pe = pe.at[:, 1::2].set(jnp.cos(pos * div))
    return pe


def compute_delta_forward(mask):
    """BRITS-style time-since-last-observation (unrolled, XLA fuses it)."""
    B_, L_, D_ = mask.shape
    d = jnp.zeros((B_, D_), mask.dtype)
    out = [d]
    for t in range(1, L_):
        d = 1.0 + (1.0 - mask[:, t - 1, :]) * d
        out.append(d)
    return jnp.stack(out, axis=1)


def compute_delta_backward(mask):
    return compute_delta_forward(mask[:, ::-1, :])[:, ::-1, :]


def compute_delta(fwd, bwd):
    # TODO(synk): exact fwd/bwd combination rule not shown in the snippet;
    # elementwise mean used here.
    return 0.5 * (fwd + bwd)


def token_im2col(x):
    """Circular conv1d(k=3, pad=1) as im2col: [B, L, C] -> [B*L, C*3]."""
    B_, L_, C_ = x.shape
    x_pad = jnp.concatenate([x[:, -1:, :], x, x[:, :1, :]], axis=1)
    cols = jnp.stack([x_pad[:, k:k + L_, :] for k in range(3)], axis=-1)  # [B,L,C,3]
    return cols.reshape(B_ * L_, C_ * 3)


def model_forward(w_slab, x_enc, x_mark_enc, x_dec, x_mark_dec, enc_mask, dec_mask):
    enc_delta = compute_delta(compute_delta_forward(enc_mask),
                              compute_delta_backward(enc_mask))
    dec_delta = compute_delta(compute_delta_forward(dec_mask),
                              compute_delta_backward(dec_mask))

    # single packed data slab: rows 0..23 encoder tokens, 24..47 decoder tokens
    # feature lanes: [token im2col (12) | mark (4) | delta (4) | zero pad]
    enc_feat = jnp.concatenate(
        [token_im2col(x_enc), x_mark_enc.reshape(NQ_ENC, N_MARK),
         enc_delta.reshape(NQ_ENC, ENC_IN)], axis=1)
    dec_feat = jnp.concatenate(
        [token_im2col(x_dec), x_mark_dec.reshape(NQ_DEC, N_MARK),
         dec_delta.reshape(NQ_DEC, DEC_IN)], axis=1)
    data = jnp.concatenate([enc_feat, dec_feat], axis=0)
    data = jnp.pad(data, ((0, 0), (0, D_MODEL - data.shape[1])))   # [48, 32]

    out = pl.pallas_call(
        functools.partial(_informer_kernel, LAYOUT),
        out_shape=jax.ShapeDtypeStruct((NQ_DEC, 128), F32),
    )(data, w_slab)

    return out.reshape(B, DEC_LEN, 128)[:, -PRED_LEN:, :C_OUT]   # output_attention=False


# ============================ parameter init =================================

class KeyGen:
    def __init__(self, key):
        self.key = key

    def __call__(self):
        self.key, sub = jax.random.split(self.key)
        return sub


def init_params(key):
    kg = KeyGen(key)

    def dense(k_in, n_out, scale=0.02):
        return scale * jax.random.normal(kg(), (k_in, n_out), F32)

    def zeros(n):
        return jnp.zeros((1, n), F32)

    def ones(n):
        return jnp.ones((1, n), F32)

    def attn():
        return dict(wq=dense(D_MODEL, D_MODEL), bq=zeros(D_MODEL),
                    wk=dense(D_MODEL, D_MODEL), bk=zeros(D_MODEL),
                    wv=dense(D_MODEL, D_MODEL), bv=zeros(D_MODEL),
                    wo=dense(D_MODEL, D_MODEL), bo=zeros(D_MODEL))

    def enc_layer():
        return dict(attn=attn(),
                    w1=dense(D_MODEL, D_FF), b1=zeros(D_FF),
                    w2=dense(D_FF, D_MODEL), b2=zeros(D_MODEL),
                    ln1_g=ones(D_MODEL), ln1_b=zeros(D_MODEL),
                    ln2_g=ones(D_MODEL), ln2_b=zeros(D_MODEL))

    def dec_layer():
        return dict(self_attn=attn(), cross_attn=attn(),
                    w1=dense(D_MODEL, D_FF), b1=zeros(D_FF),
                    w2=dense(D_FF, D_MODEL), b2=zeros(D_MODEL),
                    ln1_g=ones(D_MODEL), ln1_b=zeros(D_MODEL),
                    ln2_g=ones(D_MODEL), ln2_b=zeros(D_MODEL),
                    ln3_g=ones(D_MODEL), ln3_b=zeros(D_MODEL))

    def emb(c_in):
        return dict(w_token=dense(c_in * 3, D_MODEL, 0.1),   # circular conv1d k=3, no bias
                    w_time=dense(N_MARK, D_MODEL, 0.1))       # timeF linear

    return dict(
        enc_decay_w=dense(ENC_IN, D_MODEL, 0.1), enc_decay_b=zeros(D_MODEL),
        dec_decay_w=dense(DEC_IN, D_MODEL, 0.1), dec_decay_b=zeros(D_MODEL),
        enc_emb=emb(ENC_IN), dec_emb=emb(DEC_IN),
        enc_layers=[enc_layer() for _ in range(E_LAYERS)],
        enc_norm_g=ones(D_MODEL), enc_norm_b=zeros(D_MODEL),
        dec_layers=[dec_layer() for _ in range(D_LAYERS)],
        dec_norm_g=ones(D_MODEL), dec_norm_b=zeros(D_MODEL),
        proj_w=dense(D_MODEL, C_OUT), proj_b=zeros(C_OUT),
    )


def pack_params(params):
    """Pack every leaf into one [W_ROWS, 128] f32 slab (run ONCE, outside jit)."""
    slab = jnp.zeros((W_ROWS, 128), F32)

    def put(s, name, arr):
        r0, r, c = LAYOUT[name]
        assert arr.shape == (r, c), (name, arr.shape, (r, c))
        return s.at[r0:r0 + r, 0:c].set(arr.astype(F32))

    def z(r, c):
        return jnp.zeros((r, c), F32)

    def emb_block(e):                       # data lanes: tok(12)|mark(4)|pad
        return jnp.concatenate([e["w_token"], e["w_time"], z(16, D_MODEL)], 0)

    def decay_block(w):                     # data lanes: ...|delta at 16..19|pad
        return jnp.concatenate([z(16, D_MODEL), w, z(12, D_MODEL)], 0)

    def qkv_block(a):
        return jnp.concatenate([a["wq"], a["wk"], a["wv"], z(D_MODEL, D_MODEL)], 1)

    def qkv_bias(a):
        return jnp.concatenate([a["bq"], a["bk"], a["bv"], z(1, D_MODEL)], 1)

    slab = put(slab, "enc_emb_w", emb_block(params["enc_emb"]))
    slab = put(slab, "enc_decay_w", decay_block(params["enc_decay_w"]))
    slab = put(slab, "enc_decay_b", params["enc_decay_b"])
    slab = put(slab, "dec_emb_w", emb_block(params["dec_emb"]))
    slab = put(slab, "dec_decay_w", decay_block(params["dec_decay_w"]))
    slab = put(slab, "dec_decay_b", params["dec_decay_b"])
    slab = put(slab, "enc_pe", jnp.tile(positional_embedding(SEQ_LEN, D_MODEL), (B, 1)))
    slab = put(slab, "dec_pe", jnp.tile(positional_embedding(DEC_LEN, D_MODEL), (B, 1)))

    for i, lp in enumerate(params["enc_layers"]):
        p = f"enc{i}_"
        a = lp["attn"]
        slab = put(slab, p + "wqkv", qkv_block(a))
        slab = put(slab, p + "bqkv", qkv_bias(a))
        slab = put(slab, p + "wo", a["wo"]); slab = put(slab, p + "bo", a["bo"])
        slab = put(slab, p + "w1", lp["w1"]); slab = put(slab, p + "b1", lp["b1"])
        slab = put(slab, p + "w2", lp["w2"]); slab = put(slab, p + "b2", lp["b2"])
        for nm in ("ln1_g", "ln1_b", "ln2_g", "ln2_b"):
            slab = put(slab, p + nm, lp[nm])

    slab = put(slab, "enc_norm_g", params["enc_norm_g"])
    slab = put(slab, "enc_norm_b", params["enc_norm_b"])

    for i, lp in enumerate(params["dec_layers"]):
        p = f"dec{i}_"
        sa, ca = lp["self_attn"], lp["cross_attn"]
        slab = put(slab, p + "self_wqkv", qkv_block(sa))
        slab = put(slab, p + "self_bqkv", qkv_bias(sa))
        slab = put(slab, p + "self_wo", sa["wo"]); slab = put(slab, p + "self_bo", sa["bo"])
        slab = put(slab, p + "cross_wq", ca["wq"]); slab = put(slab, p + "cross_bq", ca["bq"])
        slab = put(slab, p + "cross_wkv",
                   jnp.concatenate([ca["wk"], ca["wv"], z(D_MODEL, 2 * D_MODEL)], 1))
        slab = put(slab, p + "cross_bkv",
                   jnp.concatenate([ca["bk"], ca["bv"], z(1, 2 * D_MODEL)], 1))
        slab = put(slab, p + "cross_wo", ca["wo"]); slab = put(slab, p + "cross_bo", ca["bo"])
        slab = put(slab, p + "w1", lp["w1"]); slab = put(slab, p + "b1", lp["b1"])
        slab = put(slab, p + "w2", lp["w2"]); slab = put(slab, p + "b2", lp["b2"])
        for nm in ("ln1_g", "ln1_b", "ln2_g", "ln2_b", "ln3_g", "ln3_b"):
            slab = put(slab, p + nm, lp[nm])

    slab = put(slab, "dec_norm_g", params["dec_norm_g"])
    slab = put(slab, "dec_norm_b", params["dec_norm_b"])
    slab = put(slab, "proj_w",
               jnp.concatenate([params["proj_w"], z(D_MODEL, 128 - C_OUT)], 1))
    slab = put(slab, "proj_b",
               jnp.concatenate([params["proj_b"], z(1, 128 - C_OUT)], 1))
    return slab


# ================================== main =====================================

if __name__ == "__main__":
    root = jax.random.PRNGKey(0)
    kparam, kin = jax.random.split(root)
    params = init_params(kparam)
    w_slab = pack_params(params)          # packed once; stays constant per call

    ks = jax.random.split(kin, 6)
    x_enc      = jax.random.normal(ks[0], (B, SEQ_LEN, ENC_IN), F32)
    x_mark_enc = jax.random.normal(ks[1], (B, SEQ_LEN, N_MARK), F32)
    x_dec      = jax.random.normal(ks[2], (B, DEC_LEN, DEC_IN), F32)
    x_mark_dec = jax.random.normal(ks[3], (B, DEC_LEN, N_MARK), F32)
    enc_mask = (jax.random.uniform(ks[4], (B, SEQ_LEN, ENC_IN)) > 0.3).astype(F32)
    dec_mask = (jax.random.uniform(ks[5], (B, DEC_LEN, DEC_IN)) > 0.3).astype(F32)

    fwd = jax.jit(model_forward)
    out = fwd(w_slab, x_enc, x_mark_enc, x_dec, x_mark_dec, enc_mask, dec_mask)
    out = jax.block_until_ready(out)
    assert out.shape == (B, PRED_LEN, C_OUT), out.shape
    assert bool(jnp.all(jnp.isfinite(out)))
    print("KERNEL_OK")
</pallas_src>

<mosaic_0001>
module attributes {stable_mosaic.version = 11 : i64} {
  func.func @_informer_kernel(%arg0: memref<48x32xf32, #tpu.memory_space<vmem>>, %arg1: memref<1072x128xf32, #tpu.memory_space<vmem>>, %arg2: memref<24x128xf32, #tpu.memory_space<vmem>>) attributes {dimension_semantics = [], scalar_prefetch = 0 : i64, scratch_operands = 0 : i64, tpu.core_type = #tpu.core_type<tc>} {
    %0 = tpu.iota {dimensions = array<i32: 1>} : vector<1x32xi32>
    %c0_i32 = arith.constant 0 : i32
    %1 = vector.broadcast %c0_i32 : i32 to vector<1x32xi32>
    %2 = arith.cmpi sge, %0, %1 : vector<1x32xi32>
    %c8_i32 = arith.constant 8 : i32
    %3 = vector.broadcast %c8_i32 : i32 to vector<1x32xi32>
    %4 = arith.cmpi slt, %0, %3 : vector<1x32xi32>
    %5 = arith.andi %2, %4 : vector<1x32xi1>
    %6 = arith.extui %5 : vector<1x32xi1> to vector<1x32xi32>
    %7 = arith.sitofp %6 : vector<1x32xi32> to vector<1x32xf32>
    %c8_i32_0 = arith.constant 8 : i32
    %8 = vector.broadcast %c8_i32_0 : i32 to vector<1x32xi32>
    %9 = arith.cmpi sge, %0, %8 : vector<1x32xi32>
    %c16_i32 = arith.constant 16 : i32
    %10 = vector.broadcast %c16_i32 : i32 to vector<1x32xi32>
    %11 = arith.cmpi slt, %0, %10 : vector<1x32xi32>
    %12 = arith.andi %9, %11 : vector<1x32xi1>
    %13 = arith.extui %12 : vector<1x32xi1> to vector<1x32xi32>
    %14 = arith.sitofp %13 : vector<1x32xi32> to vector<1x32xf32>
    %c16_i32_1 = arith.constant 16 : i32
    %15 = vector.broadcast %c16_i32_1 : i32 to vector<1x32xi32>
    %16 = arith.cmpi sge, %0, %15 : vector<1x32xi32>
    %c24_i32 = arith.constant 24 : i32
    %17 = vector.broadcast %c24_i32 : i32 to vector<1x32xi32>
    %18 = arith.cmpi slt, %0, %17 : vector<1x32xi32>
    %19 = arith.andi %16, %18 : vector<1x32xi1>
    %20 = arith.extui %19 : vector<1x32xi1> to vector<1x32xi32>
    %21 = arith.sitofp %20 : vector<1x32xi32> to vector<1x32xf32>
    %c24_i32_2 = arith.constant 24 : i32
    %22 = vector.broadcast %c24_i32_2 : i32 to vector<1x32xi32>
    %23 = arith.cmpi sge, %0, %22 : vector<1x32xi32>
    %c32_i32 = arith.constant 32 : i32
    %24 = vector.broadcast %c32_i32 : i32 to vector<1x32xi32>
    %25 = arith.cmpi slt, %0, %24 : vector<1x32xi32>
    %26 = arith.andi %23, %25 : vector<1x32xi1>
    %27 = arith.extui %26 : vector<1x32xi1> to vector<1x32xi32>
    %28 = arith.sitofp %27 : vector<1x32xi32> to vector<1x32xf32>
    %29 = vector.shape_cast %7 : vector<1x32xf32> to vector<1x32xf32>
    %30 = vector.broadcast %29 : vector<1x32xf32> to vector<32x32xf32>
    %31 = vector.shape_cast %14 : vector<1x32xf32> to vector<1x32xf32>
    %32 = vector.broadcast %31 : vector<1x32xf32> to vector<32x32xf32>
    %33 = vector.shape_cast %21 : vector<1x32xf32> to vector<1x32xf32>
    %34 = vector.broadcast %33 : vector<1x32xf32> to vector<32x32xf32>
    %35 = vector.shape_cast %28 : vector<1x32xf32> to vector<1x32xf32>
    %36 = vector.broadcast %35 : vector<1x32xf32> to vector<32x32xf32>
    %37 = tpu.concatenate %30, %32, %34, %36 in 0 : vector<32x32xf32>, vector<32x32xf32>, vector<32x32xf32>, vector<32x32xf32> -> vector<128x32xf32>
    %38 = tpu.iota {dimensions = array<i32: 0>} : vector<24x128xi32>
    %39 = tpu.iota {dimensions = array<i32: 1>} : vector<24x128xi32>
    %c31_i32 = arith.constant 31 : i32
    %40 = vector.broadcast %c31_i32 : i32 to vector<24x128xi32>
    %41 = arith.andi %39, %40 : vector<24x128xi32>
    %c12_i32 = arith.constant 12 : i32
    %42 = vector.broadcast %c12_i32 : i32 to vector<24x128xi32>
    %43 = arith.cmpi sge, %38, %42 : vector<24x128xi32>
    %c12_i32_3 = arith.constant 12 : i32
    %44 = vector.broadcast %c12_i32_3 : i32 to vector<24x128xi32>
    %45 = arith.cmpi sge, %41, %44 : vector<24x128xi32>
    %c24_i32_4 = arith.constant 24 : i32
    %46 = vector.broadcast %c24_i32_4 : i32 to vector<24x128xi32>
    %47 = arith.cmpi slt, %41, %46 : vector<24x128xi32>
    %48 = arith.xori %43, %45 : vector<24x128xi1>
    %cst = arith.constant dense<true> : vector<24x128xi1>
    %49 = arith.xori %48, %cst : vector<24x128xi1>
    %50 = arith.andi %47, %49 : vector<24x128xi1>
    %cst_5 = arith.constant 0.000000e+00 : f32
    %cst_6 = arith.constant -1.000000e+30 : f32
    %51 = vector.broadcast %cst_5 : f32 to vector<24x128xf32>
    %52 = vector.broadcast %cst_6 : f32 to vector<24x128xf32>
    %53 = arith.select %50, %51, %52 : vector<24x128xi1>, vector<24x128xf32>
    %54 = tpu.iota {dimensions = array<i32: 0>} : vector<24x128xi32>
    %55 = tpu.iota {dimensions = array<i32: 1>} : vector<24x128xi32>
    %c31_i32_7 = arith.constant 31 : i32
    %56 = vector.broadcast %c31_i32_7 : i32 to vector<24x128xi32>
    %57 = arith.andi %55, %56 : vector<24x128xi32>
    %c12_i32_8 = arith.constant 12 : i32
    %58 = vector.broadcast %c12_i32_8 : i32 to vector<24x128xi32>
    %59 = arith.cmpi sge, %54, %58 : vector<24x128xi32>
    %c12_i32_9 = arith.constant 12 : i32
    %60 = vector.broadcast %c12_i32_9 : i32 to vector<24x128xi32>
    %61 = arith.cmpi sge, %57, %60 : vector<24x128xi32>
    %c12_i32_10 = arith.constant 12 : i32
    %c0_i32_11 = arith.constant 0 : i32
    %62 = vector.broadcast %c12_i32_10 : i32 to vector<24x128xi32>
    %63 = vector.broadcast %c0_i32_11 : i32 to vector<24x128xi32>
    %64 = arith.select %59, %62, %63 : vector<24x128xi1>, vector<24x128xi32>
    %65 = arith.subi %54, %64 : vector<24x128xi32>
    %c12_i32_12 = arith.constant 12 : i32
    %c0_i32_13 = arith.constant 0 : i32
    %66 = vector.broadcast %c12_i32_12 : i32 to vector<24x128xi32>
    %67 = vector.broadcast %c0_i32_13 : i32 to vector<24x128xi32>
    %68 = arith.select %61, %66, %67 : vector<24x128xi1>, vector<24x128xi32>
    %69 = arith.subi %57, %68 : vector<24x128xi32>
    %c24_i32_14 = arith.constant 24 : i32
    %70 = vector.broadcast %c24_i32_14 : i32 to vector<24x128xi32>
    %71 = arith.cmpi slt, %57, %70 : vector<24x128xi32>
    %72 = arith.xori %59, %61 : vector<24x128xi1>
    %cst_15 = arith.constant dense<true> : vector<24x128xi1>
    %73 = arith.xori %72, %cst_15 : vector<24x128xi1>
    %74 = arith.andi %71, %73 : vector<24x128xi1>
    %75 = arith.cmpi sle, %69, %65 : vector<24x128xi32>
    %76 = arith.andi %74, %75 : vector<24x128xi1>
    %cst_16 = arith.constant 0.000000e+00 : f32
    %cst_17 = arith.constant -1.000000e+30 : f32
    %77 = vector.broadcast %cst_16 : f32 to vector<24x128xf32>
    %78 = vector.broadcast %cst_17 : f32 to vector<24x128xf32>
    %79 = arith.select %76, %77, %78 : vector<24x128xi1>, vector<24x128xf32>
    %80 = tpu.iota {dimensions = array<i32: 0>} : vector<24x128xi32>
    %81 = tpu.iota {dimensions = array<i32: 1>} : vector<24x128xi32>
    %c31_i32_18 = arith.constant 31 : i32
    %82 = vector.broadcast %c31_i32_18 : i32 to vector<24x128xi32>
    %83 = arith.andi %81, %82 : vector<24x128xi32>
    %c12_i32_19 = arith.constant 12 : i32
    %84 = vector.broadcast %c12_i32_19 : i32 to vector<24x128xi32>
    %85 = arith.cmpi sge, %80, %84 : vector<24x128xi32>
    %c12_i32_20 = arith.constant 12 : i32
    %86 = vector.broadcast %c12_i32_20 : i32 to vector<24x128xi32>
    %87 = arith.cmpi sge, %83, %86 : vector<24x128xi32>
    %c24_i32_21 = arith.constant 24 : i32
    %88 = vector.broadcast %c24_i32_21 : i32 to vector<24x128xi32>
    %89 = arith.cmpi slt, %83, %88 : vector<24x128xi32>
    %90 = arith.xori %85, %87 : vector<24x128xi1>
    %cst_22 = arith.constant dense<true> : vector<24x128xi1>
    %91 = arith.xori %90, %cst_22 : vector<24x128xi1>
    %92 = arith.andi %89, %91 : vector<24x128xi1>
    %cst_23 = arith.constant 0.000000e+00 : f32
    %cst_24 = arith.constant -1.000000e+30 : f32
    %93 = vector.broadcast %cst_23 : f32 to vector<24x128xf32>
    %94 = vector.broadcast %cst_24 : f32 to vector<24x128xf32>
    %95 = arith.select %92, %93, %94 : vector<24x128xi1>, vector<24x128xf32>
    %c0 = arith.constant 0 : index
    %c0_25 = arith.constant 0 : index
    %96 = vector.load %arg0[%c0, %c0_25] : memref<48x32xf32, #tpu.memory_space<vmem>>, vector<24x32xf32>
    %c24 = arith.constant 24 : index
    %c0_26 = arith.constant 0 : index
    %97 = vector.load %arg0[%c24, %c0_26] : memref<48x32xf32, #tpu.memory_space<vmem>>, vector<24x32xf32>
    %c0_27 = arith.constant 0 : index
    %c0_28 = arith.constant 0 : index
    %98 = vector.load %arg1[%c0_27, %c0_28] : memref<1072x128xf32, #tpu.memory_space<vmem>>, vector<32x32xf32>
    %cst_29 = arith.constant dense<0.000000e+00> : vector<24x32xf32>
    %99 = tpu.matmul %96, %98, %cst_29 {dimension_numbers = #tpu.dot_dimension_numbers<[1], [0], [0], [1], [0, 0, 1, 1], [], []>} : vector<24x32xf32>, vector<32x32xf32>, vector<24x32xf32> -> vector<24x32xf32>
    %c144 = arith.constant 144 : index
    %c0_30 = arith.constant 0 : index
    %100 = vector.load %arg1[%c144, %c0_30] : memref<1072x128xf32, #tpu.memory_space<vmem>>, vector<24x32xf32>
    %101 = arith.addf %99, %100 : vector<24x32xf32>
    %c32 = arith.constant 32 : index
    %c0_31 = arith.constant 0 : index
    %102 = vector.load %arg1[%c32, %c0_31] : memref<1072x128xf32, #tpu.memory_space<vmem>>, vector<32x32xf32>
    %cst_32 = arith.constant dense<0.000000e+00> : vector<24x32xf32>
    %103 = tpu.matmul %96, %102, %cst_32 {dimension_numbers = #tpu.dot_dimension_numbers<[1], [0], [0], [1], [0, 0, 1, 1], [], []>} : vector<24x32xf32>, vector<32x32xf32>, vector<24x32xf32> -> vector<24x32xf32>
    %c64 = arith.constant 64 : index
    %c0_33 = arith.constant 0 : index
    %104 = vector.load %arg1[%c64, %c0_33] : memref<1072x128xf32, #tpu.memory_space<vmem>>, vector<1x32xf32>
    %105 = vector.broadcast %104 : vector<1x32xf32> to vector<24x32xf32>
    %106 = arith.addf %103, %105 : vector<24x32xf32>
    %cst_34 = arith.constant 0.000000e+00 : f32
    %107 = vector.broadcast %cst_34 : f32 to vector<24x32xf32>
    %108 = arith.maximumf %106, %107 : vector<24x32xf32>
    %cst_35 = arith.constant 0.000000e+00 : f32
    %109 = vector.broadcast %cst_35 : f32 to vector<24x32xf32>
    %110 = arith.subf %109, %108 : vector<24x32xf32>
    %111 = math.exp %110 : vector<24x32xf32>
    %112 = arith.mulf %101, %111 : vector<24x32xf32>
    %c192 = arith.constant 192 : index
    %c0_36 = arith.constant 0 : index
    %113 = vector.load %arg1[%c192, %c0_36] : memref<1072x128xf32, #tpu.memory_space<vmem>>, vector<32x128xf32>
    %cst_37 = arith.constant dense<0.000000e+00> : vector<24x128xf32>
    %114 = tpu.matmul %112, %113, %cst_37 {dimension_numbers = #tpu.dot_dimension_numbers<[1], [0], [0], [1], [0, 0, 1, 1], [], []>} : vector<24x32xf32>, vector<32x128xf32>, vector<24x128xf32> -> vector<24x128xf32>
    %c224 = arith.constant 224 : index
    %c0_38 = arith.constant 0 : index
    %115 = vector.load %arg1[%c224, %c0_38] : memref<1072x128xf32, #tpu.memory_space<vmem>>, vector<1x128xf32>
    %116 = vector.broadcast %115 : vector<1x128xf32> to vector<24x128xf32>
    %117 = arith.addf %114, %116 : vector<24x128xf32>
    %118 = vector.extract_strided_slice %117 {offsets = [0, 0], sizes = [24, 32], strides = [1, 1]} : vector<24x128xf32> to vector<24x32xf32>
    %c96_i32 = arith.constant 96 : i32
    %119 = tpu.dynamic_rotate %117 by %c96_i32 dim 1 : vector<24x128xf32>, i32 -> vector<24x128xf32>
    %120 = vector.extract_strided_slice %119 {offsets = [0, 0], sizes = [24, 32], strides = [1, 1]} : vector<24x128xf32> to vector<24x32xf32>
    %c64_i32 = arith.constant 64 : i32
    %121 = tpu.dynamic_rotate %117 by %c64_i32 dim 1 : vector<24x128xf32>, i32 -> vector<24x128xf32>
    %122 = vector.extract_strided_slice %121 {offsets = [0, 0], sizes = [24, 32], strides = [1, 1]} : vector<24x128xf32> to vector<24x32xf32>
    %c232 = arith.constant 232 : index
    %c0_39 = arith.constant 0 : index
    %123 = vector.load %arg1[%c232, %c0_39] : memref<1072x128xf32, #tpu.memory_space<vmem>>, vector<32x32xf32>
    %c264 = arith.constant 264 : index
    %c0_40 = arith.constant 0 : index
    %124 = vector.load %arg1[%c264, %c0_40] : memref<1072x128xf32, #tpu.memory_space<vmem>>, vector<1x32xf32>
    %cst_41 = arith.constant 0.000000e+00 : f32
    %125 = vector.broadcast %cst_41 : f32 to vector<8x32xf32>
    %126 = vector.broadcast %7 : vector<1x32xf32> to vector<24x32xf32>
    %127 = arith.mulf %120, %126 : vector<24x32xf32>
    %128 = vector.broadcast %14 : vector<1x32xf32> to vector<24x32xf32>
    %129 = arith.mulf %120, %128 : vector<24x32xf32>
    %130 = vector.broadcast %21 : vector<1x32xf32> to vector<24x32xf32>
    %131 = arith.mulf %120, %130 : vector<24x32xf32>
    %132 = vector.broadcast %28 : vector<1x32xf32> to vector<24x32xf32>
    %133 = arith.mulf %120, %132 : vector<24x32xf32>
    %134 = tpu.concatenate %127, %125, %129, %125, %131, %125, %133, %125 in 0 : vector<24x32xf32>, vector<8x32xf32>, vector<24x32xf32>, vector<8x32xf32>, vector<24x32xf32>, vector<8x32xf32>, vector<24x32xf32>, vector<8x32xf32> -> vector<128x32xf32>
    %135 = vector.broadcast %7 : vector<1x32xf32> to vector<24x32xf32>
    %136 = arith.mulf %122, %135 : vector<24x32xf32>
    %137 = vector.broadcast %14 : vector<1x32xf32> to vector<24x32xf32>
    %138 = arith.mulf %122, %137 : vector<24x32xf32>
    %139 = vector.broadcast %21 : vector<1x32xf32> to vector<24x32xf32>
    %140 = arith.mulf %122, %139 : vector<24x32xf32>
    %141 = vector.broadcast %28 : vector<1x32xf32> to vector<24x32xf32>
    %142 = arith.mulf %122, %141 : vector<24x32xf32>
    %143 = tpu.concatenate %136, %125, %138, %125, %140, %125, %142, %125 in 0 : vector<24x32xf32>, vector<8x32xf32>, vector<24x32xf32>, vector<8x32xf32>, vector<24x32xf32>, vector<8x32xf32>, vector<24x32xf32>, vector<8x32xf32> -> vector<128x32xf32>
    %cst_42 = arith.constant dense<0.000000e+00> : vector<24x128xf32>
    %144 = tpu.matmul %118, %134, %cst_42 {dimension_numbers = #tpu.dot_dimension_numbers<[1], [1], [0], [0], [0, 0, 1, 0], [], []>} : vector<24x32xf32>, vector<128x32xf32>, vector<24x128xf32> -> vector<24x128xf32>
    %cst_43 = arith.constant 0.353553385 : f32
    %145 = vector.broadcast %cst_43 : f32 to vector<24x128xf32>
    %146 = arith.mulf %144, %145 : vector<24x128xf32>
    %147 = arith.addf %146, %53 : vector<24x128xf32>
    %cst_44 = arith.constant dense<0xFF800000> : vector<24xf32>
    %148 = vector.multi_reduction <maximumf>, %147, %cst_44 [1] : vector<24x128xf32> to vector<24xf32>
    %149 = vector.shape_cast %148 : vector<24xf32> to vector<24x1xf32>
    %150 = vector.broadcast %149 : vector<24x1xf32> to vector<24x128xf32>
    %151 = arith.subf %147, %150 : vector<24x128xf32>
    %152 = math.exp %151 : vector<24x128xf32>
    %cst_45 = arith.constant dense<0.000000e+00> : vector<24x32xf32>
    %153 = tpu.matmul %152, %143, %cst_45 {dimension_numbers = #tpu.dot_dimension_numbers<[1], [0], [0], [1], [0, 0, 1, 1], [], []>} : vector<24x128xf32>, vector<128x32xf32>, vector<24x32xf32> -> vector<24x32xf32>
    %cst_46 = arith.constant dense<0.000000e+00> : vector<24x32xf32>
    %154 = tpu.matmul %152, %37, %cst_46 {dimension_numbers = #tpu.dot_dimension_numbers<[1], [0], [0], [1], [0, 0, 1, 1], [], []>} : vector<24x128xf32>, vector<128x32xf32>, vector<24x32xf32> -> vector<24x32xf32>
    %cst_47 = arith.constant 1.000000e-30 : f32
    %155 = vector.broadcast %cst_47 : f32 to vector<24x32xf32>
    %156 = arith.maximumf %154, %155 : vector<24x32xf32>
    %157 = tpu.reciprocal %156 {approx = true} : vector<24x32xf32> -> vector<24x32xf32>
    %158 = arith.mulf %153, %157 : vector<24x32xf32>
    %cst_48 = arith.constant dense<0.000000e+00> : vector<24x32xf32>
    %159 = tpu.matmul %158, %123, %cst_48 {dimension_numbers = #tpu.dot_dimension_numbers<[1], [0], [0], [1], [0, 0, 1, 1], [], []>} : vector<24x32xf32>, vector<32x32xf32>, vector<24x32xf32> -> vector<24x32xf32>
    %160 = vector.broadcast %124 : vector<1x32xf32> to vector<24x32xf32>
    %161 = arith.addf %159, %160 : vector<24x32xf32>
    %162 = arith.addf %112, %161 : vector<24x32xf32>
    %c384 = arith.constant 384 : index
    %c0_49 = arith.constant 0 : index
    %163 = vector.load %arg1[%c384, %c0_49] : memref<1072x128xf32, #tpu.memory_space<vmem>>, vector<1x32xf32>
    %c392 = arith.constant 392 : index
    %c0_50 = arith.constant 0 : index
    %164 = vector.load %arg1[%c392, %c0_50] : memref<1072x128xf32, #tpu.memory_space<vmem>>, vector<1x32xf32>
    %cst_51 = arith.constant dense<0.000000e+00> : vector<24xf32>
    %165 = vector.multi_reduction <add>, %162, %cst_51 [1] : vector<24x32xf32> to vector<24xf32>
    %166 = vector.shape_cast %165 : vector<24xf32> to vector<24x1xf32>
    %cst_52 = arith.constant 3.200000e+01 : f32
    %167 = vector.broadcast %cst_52 : f32 to vector<24x1xf32>
    %168 = arith.divf %166, %167 : vector<24x1xf32>
    %169 = vector.broadcast %168 : vector<24x1xf32> to vector<24x32xf32>
    %170 = arith.subf %162, %169 : vector<24x32xf32>
    %171 = arith.mulf %170, %170 : vector<24x32xf32>
    %cst_53 = arith.constant dense<0.000000e+00> : vector<24xf32>
    %172 = vector.multi_reduction <add>, %171, %cst_53 [1] : vector<24x32xf32> to vector<24xf32>
    %173 = vector.shape_cast %172 : vector<24xf32> to vector<24x1xf32>
    %cst_54 = arith.constant 3.200000e+01 : f32
    %174 = vector.broadcast %cst_54 : f32 to vector<24x1xf32>
    %175 = arith.divf %173, %174 : vector<24x1xf32>
    %176 = vector.broadcast %168 : vector<24x1xf32> to vector<24x32xf32>
    %177 = arith.subf %162, %176 : vector<24x32xf32>
    %cst_55 = arith.constant 9.99999974E-6 : f32
    %178 = vector.broadcast %cst_55 : f32 to vector<24x1xf32>
    %179 = arith.addf %175, %178 : vector<24x1xf32>
    %180 = math.rsqrt %179 : vector<24x1xf32>
    %181 = vector.broadcast %180 : vector<24x1xf32> to vector<24x32xf32>
    %182 = arith.mulf %177, %181 : vector<24x32xf32>
    %183 = vector.broadcast %163 : vector<1x32xf32> to vector<24x32xf32>
    %184 = arith.mulf %182, %183 : vector<24x32xf32>
    %185 = vector.broadcast %164 : vector<1x32xf32> to vector<24x32xf32>
    %186 = arith.addf %184, %185 : vector<24x32xf32>
    %c272 = arith.constant 272 : index
    %c0_56 = arith.constant 0 : index
    %187 = vector.load %arg1[%c272, %c0_56] : memref<1072x128xf32, #tpu.memory_space<vmem>>, vector<32x64xf32>
    %cst_57 = arith.constant dense<0.000000e+00> : vector<24x64xf32>
    %188 = tpu.matmul %186, %187, %cst_57 {dimension_numbers = #tpu.dot_dimension_numbers<[1], [0], [0], [1], [0, 0, 1, 1], [], []>} : vector<24x32xf32>, vector<32x64xf32>, vector<24x64xf32> -> vector<24x64xf32>
    %c304 = arith.constant 304 : index
    %c0_58 = arith.constant 0 : index
    %189 = vector.load %arg1[%c304, %c0_58] : memref<1072x128xf32, #tpu.memory_space<vmem>>, vector<1x64xf32>
    %190 = vector.broadcast %189 : vector<1x64xf32> to vector<24x64xf32>
    %191 = arith.addf %188, %190 : vector<24x64xf32>
    %cst_59 = arith.constant 0.000000e+00 : f32
    %192 = vector.broadcast %cst_59 : f32 to vector<24x64xf32>
    %193 = arith.maximumf %191, %192 : vector<24x64xf32>
    %c312 = arith.constant 312 : index
    %c0_60 = arith.constant 0 : index
    %194 = vector.load %arg1[%c312, %c0_60] : memref<1072x128xf32, #tpu.memory_space<vmem>>, vector<64x32xf32>
    %cst_61 = arith.constant dense<0.000000e+00> : vector<24x32xf32>
    %195 = tpu.matmul %193, %194, %cst_61 {dimension_numbers = #tpu.dot_dimension_numbers<[1], [0], [0], [1], [0, 0, 1, 1], [], []>} : vector<24x64xf32>, vector<64x32xf32>, vector<24x32xf32> -> vector<24x32xf32>
    %c376 = arith.constant 376 : index
    %c0_62 = arith.constant 0 : index
    %196 = vector.load %arg1[%c376, %c0_62] : memref<1072x128xf32, #tpu.memory_space<vmem>>, vector<1x32xf32>
    %197 = vector.broadcast %196 : vector<1x32xf32> to vector<24x32xf32>
    %198 = arith.addf %195, %197 : vector<24x32xf32>
    %199 = arith.addf %186, %198 : vector<24x32xf32>
    %c400 = arith.constant 400 : index
    %c0_63 = arith.constant 0 : index
    %200 = vector.load %arg1[%c400, %c0_63] : memref<1072x128xf32, #tpu.memory_space<vmem>>, vector<1x32xf32>
    %c408 = arith.constant 408 : index
    %c0_64 = arith.constant 0 : index
    %201 = vector.load %arg1[%c408, %c0_64] : memref<1072x128xf32, #tpu.memory_space<vmem>>, vector<1x32xf32>
    %cst_65 = arith.constant dense<0.000000e+00> : vector<24xf32>
    %202 = vector.multi_reduction <add>, %199, %cst_65 [1] : vector<24x32xf32> to vector<24xf32>
    %203 = vector.shape_cast %202 : vector<24xf32> to vector<24x1xf32>
    %cst_66 = arith.constant 3.200000e+01 : f32
    %204 = vector.broadcast %cst_66 : f32 to vector<24x1xf32>
    %205 = arith.divf %203, %204 : vector<24x1xf32>
    %206 = vector.broadcast %205 : vector<24x1xf32> to vector<24x32xf32>
    %207 = arith.subf %199, %206 : vector<24x32xf32>
    %208 = arith.mulf %207, %207 : vector<24x32xf32>
    %cst_67 = arith.constant dense<0.000000e+00> : vector<24xf32>
    %209 = vector.multi_reduction <add>, %208, %cst_67 [1] : vector<24x32xf32> to vector<24xf32>
    %210 = vector.shape_cast %209 : vector<24xf32> to vector<24x1xf32>
    %cst_68 = arith.constant 3.200000e+01 : f32
    %211 = vector.broadcast %cst_68 : f32 to vector<24x1xf32>
    %212 = arith.divf %210, %211 : vector<24x1xf32>
    %213 = vector.broadcast %205 : vector<24x1xf32> to vector<24x32xf32>
    %214 = arith.subf %199, %213 : vector<24x32xf32>
    %cst_69 = arith.constant 9.99999974E-6 : f32
    %215 = vector.broadcast %cst_69 : f32 to vector<24x1xf32>
    %216 = arith.addf %212, %215 : vector<24x1xf32>
    %217 = math.rsqrt %216 : vector<24x1xf32>
    %218 = vector.broadcast %217 : vector<24x1xf32> to vector<24x32xf32>
    %219 = arith.mulf %214, %218 : vector<24x32xf32>
    %220 = vector.broadcast %200 : vector<1x32xf32> to vector<24x32xf32>
    %221 = arith.mulf %219, %220 : vector<24x32xf32>
    %222 = vector.broadcast %201 : vector<1x32xf32> to vector<24x32xf32>
    %223 = arith.addf %221, %222 : vector<24x32xf32>
    %c416 = arith.constant 416 : index
    %c0_70 = arith.constant 0 : index
    %224 = vector.load %arg1[%c416, %c0_70] : memref<1072x128xf32, #tpu.memory_space<vmem>>, vector<32x128xf32>
    %cst_71 = arith.constant dense<0.000000e+00> : vector<24x128xf32>
    %225 = tpu.matmul %223, %224, %cst_71 {dimension_numbers = #tpu.dot_dimension_numbers<[1], [0], [0], [1], [0, 0, 1, 1], [], []>} : vector<24x32xf32>, vector<32x128xf32>, vector<24x128xf32> -> vector<24x128xf32>
    %c448 = arith.constant 448 : index
    %c0_72 = arith.constant 0 : index
    %226 = vector.load %arg1[%c448, %c0_72] : memref<1072x128xf32, #tpu.memory_space<vmem>>, vector<1x128xf32>
    %227 = vector.broadcast %226 : vector<1x128xf32> to vector<24x128xf32>
    %228 = arith.addf %225, %227 : vector<24x128xf32>
    %229 = vector.extract_strided_slice %228 {offsets = [0, 0], sizes = [24, 32], strides = [1, 1]} : vector<24x128xf32> to vector<24x32xf32>
    %c96_i32_73 = arith.constant 96 : i32
    %230 = tpu.dynamic_rotate %228 by %c96_i32_73 dim 1 : vector<24x128xf32>, i32 -> vector<24x128xf32>
    %231 = vector.extract_strided_slice %230 {offsets = [0, 0], sizes = [24, 32], strides = [1, 1]} : vector<24x128xf32> to vector<24x32xf32>
    %c64_i32_74 = arith.constant 64 : i32
    %232 = tpu.dynamic_rotate %228 by %c64_i32_74 dim 1 : vector<24x128xf32>, i32 -> vector<24x128xf32>
    %233 = vector.extract_strided_slice %232 {offsets = [0, 0], sizes = [24, 32], strides = [1, 1]} : vector<24x128xf32> to vector<24x32xf32>
    %c456 = arith.constant 456 : index
    %c0_75 = arith.constant 0 : index
    %234 = vector.load %arg1[%c456, %c0_75] : memref<1072x128xf32, #tpu.memory_space<vmem>>, vector<32x32xf32>
    %c488 = arith.constant 488 : index
    %c0_76 = arith.constant 0 : index
    %235 = vector.load %arg1[%c488, %c0_76] : memref<1072x128xf32, #tpu.memory_space<vmem>>, vector<1x32xf32>
    %cst_77 = arith.constant 0.000000e+00 : f32
    %236 = vector.broadcast %cst_77 : f32 to vector<8x32xf32>
    %237 = vector.broadcast %7 : vector<1x32xf32> to vector<24x32xf32>
    %238 = arith.mulf %231, %237 : vector<24x32xf32>
    %239 = vector.broadcast %14 : vector<1x32xf32> to vector<24x32xf32>
    %240 = arith.mulf %231, %239 : vector<24x32xf32>
    %241 = vector.broadcast %21 : vector<1x32xf32> to vector<24x32xf32>
    %242 = arith.mulf %231, %241 : vector<24x32xf32>
    %243 = vector.broadcast %28 : vector<1x32xf32> to vector<24x32xf32>
    %244 = arith.mulf %231, %243 : vector<24x32xf32>
    %245 = tpu.concatenate %238, %236, %240, %236, %242, %236, %244, %236 in 0 : vector<24x32xf32>, vector<8x32xf32>, vector<24x32xf32>, vector<8x32xf32>, vector<24x32xf32>, vector<8x32xf32>, vector<24x32xf32>, vector<8x32xf32> -> vector<128x32xf32>
    %246 = vector.broadcast %7 : vector<1x32xf32> to vector<24x32xf32>
    %247 = arith.mulf %233, %246 : vector<24x32xf32>
    %248 = vector.broadcast %14 : vector<1x32xf32> to vector<24x32xf32>
    %249 = arith.mulf %233, %248 : vector<24x32xf32>
    %250 = vector.broadcast %21 : vector<1x32xf32> to vector<24x32xf32>
    %251 = arith.mulf %233, %250 : vector<24x32xf32>
    %252 = vector.broadcast %28 : vector<1x32xf32> to vector<24x32xf32>
    %253 = arith.mulf %233, %252 : vector<24x32xf32>
    %254 = tpu.concatenate %247, %236, %249, %236, %251, %236, %253, %236 in 0 : vector<24x32xf32>, vector<8x32xf32>, vector<24x32xf32>, vector<8x32xf32>, vector<24x32xf32>, vector<8x32xf32>, vector<24x32xf32>, vector<8x32xf32> -> vector<128x32xf32>
    %cst_78 = arith.constant dense<0.000000e+00> : vector<24x128xf32>
    %255 = tpu.matmul %229, %245, %cst_78 {dimension_numbers = #tpu.dot_dimension_numbers<[1], [1], [0], [0], [0, 0, 1, 0], [], []>} : vector<24x32xf32>, vector<128x32xf32>, vector<24x128xf32> -> vector<24x128xf32>
    %cst_79 = arith.constant 0.353553385 : f32
    %256 = vector.broadcast %cst_79 : f32 to vector<24x128xf32>
    %257 = arith.mulf %255, %256 : vector<24x128xf32>
    %258 = arith.addf %257, %53 : vector<24x128xf32>
    %cst_80 = arith.constant dense<0xFF800000> : vector<24xf32>
    %259 = vector.multi_reduction <maximumf>, %258, %cst_80 [1] : vector<24x128xf32> to vector<24xf32>
    %260 = vector.shape_cast %259 : vector<24xf32> to vector<24x1xf32>
    %261 = vector.broadcast %260 : vector<24x1xf32> to vector<24x128xf32>
    %262 = arith.subf %258, %261 : vector<24x128xf32>
    %263 = math.exp %262 : vector<24x128xf32>
    %cst_81 = arith.constant dense<0.000000e+00> : vector<24x32xf32>
    %264 = tpu.matmul %263, %254, %cst_81 {dimension_numbers = #tpu.dot_dimension_numbers<[1], [0], [0], [1], [0, 0, 1, 1], [], []>} : vector<24x128xf32>, vector<128x32xf32>, vector<24x32xf32> -> vector<24x32xf32>
    %cst_82 = arith.constant dense<0.000000e+00> : vector<24x32xf32>
    %265 = tpu.matmul %263, %37, %cst_82 {dimension_numbers = #tpu.dot_dimension_numbers<[1], [0], [0], [1], [0, 0, 1, 1], [], []>} : vector<24x128xf32>, vector<128x32xf32>, vector<24x32xf32> -> vector<24x32xf32>
    %cst_83 = arith.constant 1.000000e-30 : f32
    %266 = vector.broadcast %cst_83 : f32 to vector<24x32xf32>
    %267 = arith.maximumf %265, %266 : vector<24x32xf32>
    %268 = tpu.reciprocal %267 {approx = true} : vector<24x32xf32> -> vector<24x32xf32>
    %269 = arith.mulf %264, %268 : vector<24x32xf32>
    %cst_84 = arith.constant dense<0.000000e+00> : vector<24x32xf32>
    %270 = tpu.matmul %269, %234, %cst_84 {dimension_numbers = #tpu.dot_dimension_numbers<[1], [0], [0], [1], [0, 0, 1, 1], [], []>} : vector<24x32xf32>, vector<32x32xf32>, vector<24x32xf32> -> vector<24x32xf32>
    %271 = vector.broadcast %235 : vector<1x32xf32> to vector<24x32xf32>
    %272 = arith.addf %270, %271 : vector<24x32xf32>
    %273 = arith.addf %223, %272 : vector<24x32xf32>
    %c608 = arith.constant 608 : index
    %c0_85 = arith.constant 0 : index
    %274 = vector.load %arg1[%c608, %c0_85] : memref<1072x128xf32, #tpu.memory_space<vmem>>, vector<1x32xf32>
    %c616 = arith.constant 616 : index
    %c0_86 = arith.constant 0 : index
    %275 = vector.load %arg1[%c616, %c0_86] : memref<1072x128xf32, #tpu.memory_space<vmem>>, vector<1x32xf32>
    %cst_87 = arith.constant dense<0.000000e+00> : vector<24xf32>
    %276 = vector.multi_reduction <add>, %273, %cst_87 [1] : vector<24x32xf32> to vector<24xf32>
    %277 = vector.shape_cast %276 : vector<24xf32> to vector<24x1xf32>
    %cst_88 = arith.constant 3.200000e+01 : f32
    %278 = vector.broadcast %cst_88 : f32 to vector<24x1xf32>
    %279 = arith.divf %277, %278 : vector<24x1xf32>
    %280 = vector.broadcast %279 : vector<24x1xf32> to vector<24x32xf32>
    %281 = arith.subf %273, %280 : vector<24x32xf32>
    %282 = arith.mulf %281, %281 : vector<24x32xf32>
    %cst_89 = arith.constant dense<0.000000e+00> : vector<24xf32>
    %283 = vector.multi_reduction <add>, %282, %cst_89 [1] : vector<24x32xf32> to vector<24xf32>
    %284 = vector.shape_cast %283 : vector<24xf32> to vector<24x1xf32>
    %cst_90 = arith.constant 3.200000e+01 : f32
    %285 = vector.broadcast %cst_90 : f32 to vector<24x1xf32>
    %286 = arith.divf %284, %285 : vector<24x1xf32>
    %287 = vector.broadcast %279 : vector<24x1xf32> to vector<24x32xf32>
    %288 = arith.subf %273, %287 : vector<24x32xf32>
    %cst_91 = arith.constant 9.99999974E-6 : f32
    %289 = vector.broadcast %cst_91 : f32 to vector<24x1xf32>
    %290 = arith.addf %286, %289 : vector<24x1xf32>
    %291 = math.rsqrt %290 : vector<24x1xf32>
    %292 = vector.broadcast %291 : vector<24x1xf32> to vector<24x32xf32>
    %293 = arith.mulf %288, %292 : vector<24x32xf32>
    %294 = vector.broadcast %274 : vector<1x32xf32> to vector<24x32xf32>
    %295 = arith.mulf %293, %294 : vector<24x32xf32>
    %296 = vector.broadcast %275 : vector<1x32xf32> to vector<24x32xf32>
    %297 = arith.addf %295, %296 : vector<24x32xf32>
    %c496 = arith.constant 496 : index
    %c0_92 = arith.constant 0 : index
    %298 = vector.load %arg1[%c496, %c0_92] : memref<1072x128xf32, #tpu.memory_space<vmem>>, vector<32x64xf32>
    %cst_93 = arith.constant dense<0.000000e+00> : vector<24x64xf32>
    %299 = tpu.matmul %297, %298, %cst_93 {dimension_numbers = #tpu.dot_dimension_numbers<[1], [0], [0], [1], [0, 0, 1, 1], [], []>} : vector<24x32xf32>, vector<32x64xf32>, vector<24x64xf32> -> vector<24x64xf32>
    %c528 = arith.constant 528 : index
    %c0_94 = arith.constant 0 : index
    %300 = vector.load %arg1[%c528, %c0_94] : memref<1072x128xf32, #tpu.memory_space<vmem>>, vector<1x64xf32>
    %301 = vector.broadcast %300 : vector<1x64xf32> to vector<24x64xf32>
    %302 = arith.addf %299, %301 : vector<24x64xf32>
    %cst_95 = arith.constant 0.000000e+00 : f32
    %303 = vector.broadcast %cst_95 : f32 to vector<24x64xf32>
    %304 = arith.maximumf %302, %303 : vector<24x64xf32>
    %c536 = arith.constant 536 : index
    %c0_96 = arith.constant 0 : index
    %305 = vector.load %arg1[%c536, %c0_96] : memref<1072x128xf32, #tpu.memory_space<vmem>>, vector<64x32xf32>
    %cst_97 = arith.constant dense<0.000000e+00> : vector<24x32xf32>
    %306 = tpu.matmul %304, %305, %cst_97 {dimension_numbers = #tpu.dot_dimension_numbers<[1], [0], [0], [1], [0, 0, 1, 1], [], []>} : vector<24x64xf32>, vector<64x32xf32>, vector<24x32xf32> -> vector<24x32xf32>
    %c600 = arith.constant 600 : index
    %c0_98 = arith.constant 0 : index
    %307 = vector.load %arg1[%c600, %c0_98] : memref<1072x128xf32, #tpu.memory_space<vmem>>, vector<1x32xf32>
    %308 = vector.broadcast %307 : vector<1x32xf32> to vector<24x32xf32>
    %309 = arith.addf %306, %308 : vector<24x32xf32>
    %310 = arith.addf %297, %309 : vector<24x32xf32>
    %c624 = arith.constant 624 : index
    %c0_99 = arith.constant 0 : index
    %311 = vector.load %arg1[%c624, %c0_99] : memref<1072x128xf32, #tpu.memory_space<vmem>>, vector<1x32xf32>
    %c632 = arith.constant 632 : index
    %c0_100 = arith.constant 0 : index
    %312 = vector.load %arg1[%c632, %c0_100] : memref<1072x128xf32, #tpu.memory_space<vmem>>, vector<1x32xf32>
    %cst_101 = arith.constant dense<0.000000e+00> : vector<24xf32>
    %313 = vector.multi_reduction <add>, %310, %cst_101 [1] : vector<24x32xf32> to vector<24xf32>
    %314 = vector.shape_cast %313 : vector<24xf32> to vector<24x1xf32>
    %cst_102 = arith.constant 3.200000e+01 : f32
    %315 = vector.broadcast %cst_102 : f32 to vector<24x1xf32>
    %316 = arith.divf %314, %315 : vector<24x1xf32>
    %317 = vector.broadcast %316 : vector<24x1xf32> to vector<24x32xf32>
    %318 = arith.subf %310, %317 : vector<24x32xf32>
    %319 = arith.mulf %318, %318 : vector<24x32xf32>
    %cst_103 = arith.constant dense<0.000000e+00> : vector<24xf32>
    %320 = vector.multi_reduction <add>, %319, %cst_103 [1] : vector<24x32xf32> to vector<24xf32>
    %321 = vector.shape_cast %320 : vector<24xf32> to vector<24x1xf32>
    %cst_104 = arith.constant 3.200000e+01 : f32
    %322 = vector.broadcast %cst_104 : f32 to vector<24x1xf32>
    %323 = arith.divf %321, %322 : vector<24x1xf32>
    %324 = vector.broadcast %316 : vector<24x1xf32> to vector<24x32xf32>
    %325 = arith.subf %310, %324 : vector<24x32xf32>
    %cst_105 = arith.constant 9.99999974E-6 : f32
    %326 = vector.broadcast %cst_105 : f32 to vector<24x1xf32>
    %327 = arith.addf %323, %326 : vector<24x1xf32>
    %328 = math.rsqrt %327 : vector<24x1xf32>
    %329 = vector.broadcast %328 : vector<24x1xf32> to vector<24x32xf32>
    %330 = arith.mulf %325, %329 : vector<24x32xf32>
    %331 = vector.broadcast %311 : vector<1x32xf32> to vector<24x32xf32>
    %332 = arith.mulf %330, %331 : vector<24x32xf32>
    %333 = vector.broadcast %312 : vector<1x32xf32> to vector<24x32xf32>
    %334 = arith.addf %332, %333 : vector<24x32xf32>
    %c640 = arith.constant 640 : index
    %c0_106 = arith.constant 0 : index
    %335 = vector.load %arg1[%c640, %c0_106] : memref<1072x128xf32, #tpu.memory_space<vmem>>, vector<1x32xf32>
    %c648 = arith.constant 648 : index
    %c0_107 = arith.constant 0 : index
    %336 = vector.load %arg1[%c648, %c0_107] : memref<1072x128xf32, #tpu.memory_space<vmem>>, vector<1x32xf32>
    %cst_108 = arith.constant dense<0.000000e+00> : vector<24xf32>
    %337 = vector.multi_reduction <add>, %334, %cst_108 [1] : vector<24x32xf32> to vector<24xf32>
    %338 = vector.shape_cast %337 : vector<24xf32> to vector<24x1xf32>
    %cst_109 = arith.constant 3.200000e+01 : f32
    %339 = vector.broadcast %cst_109 : f32 to vector<24x1xf32>
    %340 = arith.divf %338, %339 : vector<24x1xf32>
    %341 = vector.broadcast %340 : vector<24x1xf32> to vector<24x32xf32>
    %342 = arith.subf %334, %341 : vector<24x32xf32>
    %343 = arith.mulf %342, %342 : vector<24x32xf32>
    %cst_110 = arith.constant dense<0.000000e+00> : vector<24xf32>
    %344 = vector.multi_reduction <add>, %343, %cst_110 [1] : vector<24x32xf32> to vector<24xf32>
    %345 = vector.shape_cast %344 : vector<24xf32> to vector<24x1xf32>
    %cst_111 = arith.constant 3.200000e+01 : f32
    %346 = vector.broadcast %cst_111 : f32 to vector<24x1xf32>
    %347 = arith.divf %345, %346 : vector<24x1xf32>
    %348 = vector.broadcast %340 : vector<24x1xf32> to vector<24x32xf32>
    %349 = arith.subf %334, %348 : vector<24x32xf32>
    %cst_112 = arith.constant 9.99999974E-6 : f32
    %350 = vector.broadcast %cst_112 : f32 to vector<24x1xf32>
    %351 = arith.addf %347, %350 : vector<24x1xf32>
    %352 = math.rsqrt %351 : vector<24x1xf32>
    %353 = vector.broadcast %352 : vector<24x1xf32> to vector<24x32xf32>
    %354 = arith.mulf %349, %353 : vector<24x32xf32>
    %355 = vector.broadcast %335 : vector<1x32xf32> to vector<24x32xf32>
    %356 = arith.mulf %354, %355 : vector<24x32xf32>
    %357 = vector.broadcast %336 : vector<1x32xf32> to vector<24x32xf32>
    %358 = arith.addf %356, %357 : vector<24x32xf32>
    %c72 = arith.constant 72 : index
    %c0_113 = arith.constant 0 : index
    %359 = vector.load %arg1[%c72, %c0_113] : memref<1072x128xf32, #tpu.memory_space<vmem>>, vector<32x32xf32>
    %cst_114 = arith.constant dense<0.000000e+00> : vector<24x32xf32>
    %360 = tpu.matmul %97, %359, %cst_114 {dimension_numbers = #tpu.dot_dimension_numbers<[1], [0], [0], [1], [0, 0, 1, 1], [], []>} : vector<24x32xf32>, vector<32x32xf32>, vector<24x32xf32> -> vector<24x32xf32>
    %c168 = arith.constant 168 : index
    %c0_115 = arith.constant 0 : index
    %361 = vector.load %arg1[%c168, %c0_115] : memref<1072x128xf32, #tpu.memory_space<vmem>>, vector<24x32xf32>
    %362 = arith.addf %360, %361 : vector<24x32xf32>
    %c104 = arith.constant 104 : index
    %c0_116 = arith.constant 0 : index
    %363 = vector.load %arg1[%c104, %c0_116] : memref<1072x128xf32, #tpu.memory_space<vmem>>, vector<32x32xf32>
    %cst_117 = arith.constant dense<0.000000e+00> : vector<24x32xf32>
    %364 = tpu.matmul %97, %363, %cst_117 {dimension_numbers = #tpu.dot_dimension_numbers<[1], [0], [0], [1], [0, 0, 1, 1], [], []>} : vector<24x32xf32>, vector<32x32xf32>, vector<24x32xf32> -> vector<24x32xf32>
    %c136 = arith.constant 136 : index
    %c0_118 = arith.constant 0 : index
    %365 = vector.load %arg1[%c136, %c0_118] : memref<1072x128xf32, #tpu.memory_space<vmem>>, vector<1x32xf32>
    %366 = vector.broadcast %365 : vector<1x32xf32> to vector<24x32xf32>
    %367 = arith.addf %364, %366 : vector<24x32xf32>
    %cst_119 = arith.constant 0.000000e+00 : f32
    %368 = vector.broadcast %cst_119 : f32 to vector<24x32xf32>
    %369 = arith.maximumf %367, %368 : vector<24x32xf32>
    %cst_120 = arith.constant 0.000000e+00 : f32
    %370 = vector.broadcast %cst_120 : f32 to vector<24x32xf32>
    %371 = arith.subf %370, %369 : vector<24x32xf32>
    %372 = math.exp %371 : vector<24x32xf32>
    %373 = arith.mulf %362, %372 : vector<24x32xf32>
    %c656 = arith.constant 656 : index
    %c0_121 = arith.constant 0 : index
    %374 = vector.load %arg1[%c656, %c0_121] : memref<1072x128xf32, #tpu.memory_space<vmem>>, vector<32x128xf32>
    %cst_122 = arith.constant dense<0.000000e+00> : vector<24x128xf32>
    %375 = tpu.matmul %373, %374, %cst_122 {dimension_numbers = #tpu.dot_dimension_numbers<[1], [0], [0], [1], [0, 0, 1, 1], [], []>} : vector<24x32xf32>, vector<32x128xf32>, vector<24x128xf32> -> vector<24x128xf32>
    %c688 = arith.constant 688 : index
    %c0_123 = arith.constant 0 : index
    %376 = vector.load %arg1[%c688, %c0_123] : memref<1072x128xf32, #tpu.memory_space<vmem>>, vector<1x128xf32>
    %377 = vector.broadcast %376 : vector<1x128xf32> to vector<24x128xf32>
    %378 = arith.addf %375, %377 : vector<24x128xf32>
    %379 = vector.extract_strided_slice %378 {offsets = [0, 0], sizes = [24, 32], strides = [1, 1]} : vector<24x128xf32> to vector<24x32xf32>
    %c96_i32_124 = arith.constant 96 : i32
    %380 = tpu.dynamic_rotate %378 by %c96_i32_124 dim 1 : vector<24x128xf32>, i32 -> vector<24x128xf32>
    %381 = vector.extract_strided_slice %380 {offsets = [0, 0], sizes = [24, 32], strides = [1, 1]} : vector<24x128xf32> to vector<24x32xf32>
    %c64_i32_125 = arith.constant 64 : i32
    %382 = tpu.dynamic_rotate %378 by %c64_i32_125 dim 1 : vector<24x128xf32>, i32 -> vector<24x128xf32>
    %383 = vector.extract_strided_slice %382 {offsets = [0, 0], sizes = [24, 32], strides = [1, 1]} : vector<24x128xf32> to vector<24x32xf32>
    %c696 = arith.constant 696 : index
    %c0_126 = arith.constant 0 : index
    %384 = vector.load %arg1[%c696, %c0_126] : memref<1072x128xf32, #tpu.memory_space<vmem>>, vector<32x32xf32>
    %c728 = arith.constant 728 : index
    %c0_127 = arith.constant 0 : index
    %385 = vector.load %arg1[%c728, %c0_127] : memref<1072x128xf32, #tpu.memory_space<vmem>>, vector<1x32xf32>
    %cst_128 = arith.constant 0.000000e+00 : f32
    %386 = vector.broadcast %cst_128 : f32 to vector<8x32xf32>
    %387 = vector.broadcast %7 : vector<1x32xf32> to vector<24x32xf32>
    %388 = arith.mulf %381, %387 : vector<24x32xf32>
    %389 = vector.broadcast %14 : vector<1x32xf32> to vector<24x32xf32>
    %390 = arith.mulf %381, %389 : vector<24x32xf32>
    %391 = vector.broadcast %21 : vector<1x32xf32> to vector<24x32xf32>
    %392 = arith.mulf %381, %391 : vector<24x32xf32>
    %393 = vector.broadcast %28 : vector<1x32xf32> to vector<24x32xf32>
    %394 = arith.mulf %381, %393 : vector<24x32xf32>
    %395 = tpu.concatenate %388, %386, %390, %386, %392, %386, %394, %386 in 0 : vector<24x32xf32>, vector<8x32xf32>, vector<24x32xf32>, vector<8x32xf32>, vector<24x32xf32>, vector<8x32xf32>, vector<24x32xf32>, vector<8x32xf32> -> vector<128x32xf32>
    %396 = vector.broadcast %7 : vector<1x32xf32> to vector<24x32xf32>
    %397 = arith.mulf %383, %396 : vector<24x32xf32>
    %398 = vector.broadcast %14 : vector<1x32xf32> to vector<24x32xf32>
    %399 = arith.mulf %383, %398 : vector<24x32xf32>
    %400 = vector.broadcast %21 : vector<1x32xf32> to vector<24x32xf32>
    %401 = arith.mulf %383, %400 : vector<24x32xf32>
    %402 = vector.broadcast %28 : vector<1x32xf32> to vector<24x32xf32>
    %403 = arith.mulf %383, %402 : vector<24x32xf32>
    %404 = tpu.concatenate %397, %386, %399, %386, %401, %386, %403, %386 in 0 : vector<24x32xf32>, vector<8x32xf32>, vector<24x32xf32>, vector<8x32xf32>, vector<24x32xf32>, vector<8x32xf32>, vector<24x32xf32>, vector<8x32xf32> -> vector<128x32xf32>
    %cst_129 = arith.constant dense<0.000000e+00> : vector<24x128xf32>
    %405 = tpu.matmul %379, %395, %cst_129 {dimension_numbers = #tpu.dot_dimension_numbers<[1], [1], [0], [0], [0, 0, 1, 0], [], []>} : vector<24x32xf32>, vector<128x32xf32>, vector<24x128xf32> -> vector<24x128xf32>
    %cst_130 = arith.constant 0.353553385 : f32
    %406 = vector.broadcast %cst_130 : f32 to vector<24x128xf32>
    %407 = arith.mulf %405, %406 : vector<24x128xf32>
    %408 = arith.addf %407, %79 : vector<24x128xf32>
    %cst_131 = arith.constant dense<0xFF800000> : vector<24xf32>
    %409 = vector.multi_reduction <maximumf>, %408, %cst_131 [1] : vector<24x128xf32> to vector<24xf32>
    %410 = vector.shape_cast %409 : vector<24xf32> to vector<24x1xf32>
    %411 = vector.broadcast %410 : vector<24x1xf32> to vector<24x128xf32>
    %412 = arith.subf %408, %411 : vector<24x128xf32>
    %413 = math.exp %412 : vector<24x128xf32>
    %cst_132 = arith.constant dense<0.000000e+00> : vector<24x32xf32>
    %414 = tpu.matmul %413, %404, %cst_132 {dimension_numbers = #tpu.dot_dimension_numbers<[1], [0], [0], [1], [0, 0, 1, 1], [], []>} : vector<24x128xf32>, vector<128x32xf32>, vector<24x32xf32> -> vector<24x32xf32>
    %cst_133 = arith.constant dense<0.000000e+00> : vector<24x32xf32>
    %415 = tpu.matmul %413, %37, %cst_133 {dimension_numbers = #tpu.dot_dimension_numbers<[1], [0], [0], [1], [0, 0, 1, 1], [], []>} : vector<24x128xf32>, vector<128x32xf32>, vector<24x32xf32> -> vector<24x32xf32>
    %cst_134 = arith.constant 1.000000e-30 : f32
    %416 = vector.broadcast %cst_134 : f32 to vector<24x32xf32>
    %417 = arith.maximumf %415, %416 : vector<24x32xf32>
    %418 = tpu.reciprocal %417 {approx = true} : vector<24x32xf32> -> vector<24x32xf32>
    %419 = arith.mulf %414, %418 : vector<24x32xf32>
    %cst_135 = arith.constant dense<0.000000e+00> : vector<24x32xf32>
    %420 = tpu.matmul %419, %384, %cst_135 {dimension_numbers = #tpu.dot_dimension_numbers<[1], [0], [0], [1], [0, 0, 1, 1], [], []>} : vector<24x32xf32>, vector<32x32xf32>, vector<24x32xf32> -> vector<24x32xf32>
    %421 = vector.broadcast %385 : vector<1x32xf32> to vector<24x32xf32>
    %422 = arith.addf %420, %421 : vector<24x32xf32>
    %423 = arith.addf %373, %422 : vector<24x32xf32>
    %c968 = arith.constant 968 : index
    %c0_136 = arith.constant 0 : index
    %424 = vector.load %arg1[%c968, %c0_136] : memref<1072x128xf32, #tpu.memory_space<vmem>>, vector<1x32xf32>
    %c976 = arith.constant 976 : index
    %c0_137 = arith.constant 0 : index
    %425 = vector.load %arg1[%c976, %c0_137] : memref<1072x128xf32, #tpu.memory_space<vmem>>, vector<1x32xf32>
    %cst_138 = arith.constant dense<0.000000e+00> : vector<24xf32>
    %426 = vector.multi_reduction <add>, %423, %cst_138 [1] : vector<24x32xf32> to vector<24xf32>
    %427 = vector.shape_cast %426 : vector<24xf32> to vector<24x1xf32>
    %cst_139 = arith.constant 3.200000e+01 : f32
    %428 = vector.broadcast %cst_139 : f32 to vector<24x1xf32>
    %429 = arith.divf %427, %428 : vector<24x1xf32>
    %430 = vector.broadcast %429 : vector<24x1xf32> to vector<24x32xf32>
    %431 = arith.subf %423, %430 : vector<24x32xf32>
    %432 = arith.mulf %431, %431 : vector<24x32xf32>
    %cst_140 = arith.constant dense<0.000000e+00> : vector<24xf32>
    %433 = vector.multi_reduction <add>, %432, %cst_140 [1] : vector<24x32xf32> to vector<24xf32>
    %434 = vector.shape_cast %433 : vector<24xf32> to vector<24x1xf32>
    %cst_141 = arith.constant 3.200000e+01 : f32
    %435 = vector.broadcast %cst_141 : f32 to vector<24x1xf32>
    %436 = arith.divf %434, %435 : vector<24x1xf32>
    %437 = vector.broadcast %429 : vector<24x1xf32> to vector<24x32xf32>
    %438 = arith.subf %423, %437 : vector<24x32xf32>
    %cst_142 = arith.constant 9.99999974E-6 : f32
    %439 = vector.broadcast %cst_142 : f32 to vector<24x1xf32>
    %440 = arith.addf %436, %439 : vector<24x1xf32>
    %441 = math.rsqrt %440 : vector<24x1xf32>
    %442 = vector.broadcast %441 : vector<24x1xf32> to vector<24x32xf32>
    %443 = arith.mulf %438, %442 : vector<24x32xf32>
    %444 = vector.broadcast %424 : vector<1x32xf32> to vector<24x32xf32>
    %445 = arith.mulf %443, %444 : vector<24x32xf32>
    %446 = vector.broadcast %425 : vector<1x32xf32> to vector<24x32xf32>
    %447 = arith.addf %445, %446 : vector<24x32xf32>
    %c736 = arith.constant 736 : index
    %c0_143 = arith.constant 0 : index
    %448 = vector.load %arg1[%c736, %c0_143] : memref<1072x128xf32, #tpu.memory_space<vmem>>, vector<32x32xf32>
    %cst_144 = arith.constant dense<0.000000e+00> : vector<24x32xf32>
    %449 = tpu.matmul %447, %448, %cst_144 {dimension_numbers = #tpu.dot_dimension_numbers<[1], [0], [0], [1], [0, 0, 1, 1], [], []>} : vector<24x32xf32>, vector<32x32xf32>, vector<24x32xf32> -> vector<24x32xf32>
    %c768 = arith.constant 768 : index
    %c0_145 = arith.constant 0 : index
    %450 = vector.load %arg1[%c768, %c0_145] : memref<1072x128xf32, #tpu.memory_space<vmem>>, vector<1x32xf32>
    %451 = vector.broadcast %450 : vector<1x32xf32> to vector<24x32xf32>
    %452 = arith.addf %449, %451 : vector<24x32xf32>
    %c776 = arith.constant 776 : index
    %c0_146 = arith.constant 0 : index
    %453 = vector.load %arg1[%c776, %c0_146] : memref<1072x128xf32, #tpu.memory_space<vmem>>, vector<32x128xf32>
    %cst_147 = arith.constant dense<0.000000e+00> : vector<24x128xf32>
    %454 = tpu.matmul %358, %453, %cst_147 {dimension_numbers = #tpu.dot_dimension_numbers<[1], [0], [0], [1], [0, 0, 1, 1], [], []>} : vector<24x32xf32>, vector<32x128xf32>, vector<24x128xf32> -> vector<24x128xf32>
    %c808 = arith.constant 808 : index
    %c0_148 = arith.constant 0 : index
    %455 = vector.load %arg1[%c808, %c0_148] : memref<1072x128xf32, #tpu.memory_space<vmem>>, vector<1x128xf32>
    %456 = vector.broadcast %455 : vector<1x128xf32> to vector<24x128xf32>
    %457 = arith.addf %454, %456 : vector<24x128xf32>
    %458 = vector.extract_strided_slice %457 {offsets = [0, 0], sizes = [24, 32], strides = [1, 1]} : vector<24x128xf32> to vector<24x32xf32>
    %c96_i32_149 = arith.constant 96 : i32
    %459 = tpu.dynamic_rotate %457 by %c96_i32_149 dim 1 : vector<24x128xf32>, i32 -> vector<24x128xf32>
    %460 = vector.extract_strided_slice %459 {offsets = [0, 0], sizes = [24, 32], strides = [1, 1]} : vector<24x128xf32> to vector<24x32xf32>
    %c816 = arith.constant 816 : index
    %c0_150 = arith.constant 0 : index
    %461 = vector.load %arg1[%c816, %c0_150] : memref<1072x128xf32, #tpu.memory_space<vmem>>, vector<32x32xf32>
    %c848 = arith.constant 848 : index
    %c0_151 = arith.constant 0 : index
    %462 = vector.load %arg1[%c848, %c0_151] : memref<1072x128xf32, #tpu.memory_space<vmem>>, vector<1x32xf32>
    %cst_152 = arith.constant 0.000000e+00 : f32
    %463 = vector.broadcast %cst_152 : f32 to vector<8x32xf32>
    %464 = vector.broadcast %7 : vector<1x32xf32> to vector<24x32xf32>
    %465 = arith.mulf %458, %464 : vector<24x32xf32>
    %466 = vector.broadcast %14 : vector<1x32xf32> to vector<24x32xf32>
    %467 = arith.mulf %458, %466 : vector<24x32xf32>
    %468 = vector.broadcast %21 : vector<1x32xf32> to vector<24x32xf32>
    %469 = arith.mulf %458, %468 : vector<24x32xf32>
    %470 = vector.broadcast %28 : vector<1x32xf32> to vector<24x32xf32>
    %471 = arith.mulf %458, %470 : vector<24x32xf32>
    %472 = tpu.concatenate %465, %463, %467, %463, %469, %463, %471, %463 in 0 : vector<24x32xf32>, vector<8x32xf32>, vector<24x32xf32>, vector<8x32xf32>, vector<24x32xf32>, vector<8x32xf32>, vector<24x32xf32>, vector<8x32xf32> -> vector<128x32xf32>
    %473 = vector.broadcast %7 : vector<1x32xf32> to vector<24x32xf32>
    %474 = arith.mulf %460, %473 : vector<24x32xf32>
    %475 = vector.broadcast %14 : vector<1x32xf32> to vector<24x32xf32>
    %476 = arith.mulf %460, %475 : vector<24x32xf32>
    %477 = vector.broadcast %21 : vector<1x32xf32> to vector<24x32xf32>
    %478 = arith.mulf %460, %477 : vector<24x32xf32>
    %479 = vector.broadcast %28 : vector<1x32xf32> to vector<24x32xf32>
    %480 = arith.mulf %460, %479 : vector<24x32xf32>
    %481 = tpu.concatenate %474, %463, %476, %463, %478, %463, %480, %463 in 0 : vector<24x32xf32>, vector<8x32xf32>, vector<24x32xf32>, vector<8x32xf32>, vector<24x32xf32>, vector<8x32xf32>, vector<24x32xf32>, vector<8x32xf32> -> vector<128x32xf32>
    %cst_153 = arith.constant dense<0.000000e+00> : vector<24x128xf32>
    %482 = tpu.matmul %452, %472, %cst_153 {dimension_numbers = #tpu.dot_dimension_numbers<[1], [1], [0], [0], [0, 0, 1, 0], [], []>} : vector<24x32xf32>, vector<128x32xf32>, vector<24x128xf32> -> vector<24x128xf32>
    %cst_154 = arith.constant 0.353553385 : f32
    %483 = vector.broadcast %cst_154 : f32 to vector<24x128xf32>
    %484 = arith.mulf %482, %483 : vector<24x128xf32>
    %485 = arith.addf %484, %95 : vector<24x128xf32>
    %cst_155 = arith.constant dense<0xFF800000> : vector<24xf32>
    %486 = vector.multi_reduction <maximumf>, %485, %cst_155 [1] : vector<24x128xf32> to vector<24xf32>
    %487 = vector.shape_cast %486 : vector<24xf32> to vector<24x1xf32>
    %488 = vector.broadcast %487 : vector<24x1xf32> to vector<24x128xf32>
    %489 = arith.subf %485, %488 : vector<24x128xf32>
    %490 = math.exp %489 : vector<24x128xf32>
    %cst_156 = arith.constant dense<0.000000e+00> : vector<24x32xf32>
    %491 = tpu.matmul %490, %481, %cst_156 {dimension_numbers = #tpu.dot_dimension_numbers<[1], [0], [0], [1], [0, 0, 1, 1], [], []>} : vector<24x128xf32>, vector<128x32xf32>, vector<24x32xf32> -> vector<24x32xf32>
    %cst_157 = arith.constant dense<0.000000e+00> : vector<24x32xf32>
    %492 = tpu.matmul %490, %37, %cst_157 {dimension_numbers = #tpu.dot_dimension_numbers<[1], [0], [0], [1], [0, 0, 1, 1], [], []>} : vector<24x128xf32>, vector<128x32xf32>, vector<24x32xf32> -> vector<24x32xf32>
    %cst_158 = arith.constant 1.000000e-30 : f32
    %493 = vector.broadcast %cst_158 : f32 to vector<24x32xf32>
    %494 = arith.maximumf %492, %493 : vector<24x32xf32>
    %495 = tpu.reciprocal %494 {approx = true} : vector<24x32xf32> -> vector<24x32xf32>
    %496 = arith.mulf %491, %495 : vector<24x32xf32>
    %cst_159 = arith.constant dense<0.000000e+00> : vector<24x32xf32>
    %497 = tpu.matmul %496, %461, %cst_159 {dimension_numbers = #tpu.dot_dimension_numbers<[1], [0], [0], [1], [0, 0, 1, 1], [], []>} : vector<24x32xf32>, vector<32x32xf32>, vector<24x32xf32> -> vector<24x32xf32>
    %498 = vector.broadcast %462 : vector<1x32xf32> to vector<24x32xf32>
    %499 = arith.addf %497, %498 : vector<24x32xf32>
    %500 = arith.addf %447, %499 : vector<24x32xf32>
    %c984 = arith.constant 984 : index
    %c0_160 = arith.constant 0 : index
    %501 = vector.load %arg1[%c984, %c0_160] : memref<1072x128xf32, #tpu.memory_space<vmem>>, vector<1x32xf32>
    %c992 = arith.constant 992 : index
    %c0_161 = arith.constant 0 : index
    %502 = vector.load %arg1[%c992, %c0_161] : memref<1072x128xf32, #tpu.memory_space<vmem>>, vector<1x32xf32>
    %cst_162 = arith.constant dense<0.000000e+00> : vector<24xf32>
    %503 = vector.multi_reduction <add>, %500, %cst_162 [1] : vector<24x32xf32> to vector<24xf32>
    %504 = vector.shape_cast %503 : vector<24xf32> to vector<24x1xf32>
    %cst_163 = arith.constant 3.200000e+01 : f32
    %505 = vector.broadcast %cst_163 : f32 to vector<24x1xf32>
    %506 = arith.divf %504, %505 : vector<24x1xf32>
    %507 = vector.broadcast %506 : vector<24x1xf32> to vector<24x32xf32>
    %508 = arith.subf %500, %507 : vector<24x32xf32>
    %509 = arith.mulf %508, %508 : vector<24x32xf32>
    %cst_164 = arith.constant dense<0.000000e+00> : vector<24xf32>
    %510 = vector.multi_reduction <add>, %509, %cst_164 [1] : vector<24x32xf32> to vector<24xf32>
    %511 = vector.shape_cast %510 : vector<24xf32> to vector<24x1xf32>
    %cst_165 = arith.constant 3.200000e+01 : f32
    %512 = vector.broadcast %cst_165 : f32 to vector<24x1xf32>
    %513 = arith.divf %511, %512 : vector<24x1xf32>
    %514 = vector.broadcast %506 : vector<24x1xf32> to vector<24x32xf32>
    %515 = arith.subf %500, %514 : vector<24x32xf32>
    %cst_166 = arith.constant 9.99999974E-6 : f32
    %516 = vector.broadcast %cst_166 : f32 to vector<24x1xf32>
    %517 = arith.addf %513, %516 : vector<24x1xf32>
    %518 = math.rsqrt %517 : vector<24x1xf32>
    %519 = vector.broadcast %518 : vector<24x1xf32> to vector<24x32xf32>
    %520 = arith.mulf %515, %519 : vector<24x32xf32>
    %521 = vector.broadcast %501 : vector<1x32xf32> to vector<24x32xf32>
    %522 = arith.mulf %520, %521 : vector<24x32xf32>
    %523 = vector.broadcast %502 : vector<1x32xf32> to vector<24x32xf32>
    %524 = arith.addf %522, %523 : vector<24x32xf32>
    %c856 = arith.constant 856 : index
    %c0_167 = arith.constant 0 : index
    %525 = vector.load %arg1[%c856, %c0_167] : memref<1072x128xf32, #tpu.memory_space<vmem>>, vector<32x64xf32>
    %cst_168 = arith.constant dense<0.000000e+00> : vector<24x64xf32>
    %526 = tpu.matmul %524, %525, %cst_168 {dimension_numbers = #tpu.dot_dimension_numbers<[1], [0], [0], [1], [0, 0, 1, 1], [], []>} : vector<24x32xf32>, vector<32x64xf32>, vector<24x64xf32> -> vector<24x64xf32>
    %c888 = arith.constant 888 : index
    %c0_169 = arith.constant 0 : index
    %527 = vector.load %arg1[%c888, %c0_169] : memref<1072x128xf32, #tpu.memory_space<vmem>>, vector<1x64xf32>
    %528 = vector.broadcast %527 : vector<1x64xf32> to vector<24x64xf32>
    %529 = arith.addf %526, %528 : vector<24x64xf32>
    %cst_170 = arith.constant 0.000000e+00 : f32
    %530 = vector.broadcast %cst_170 : f32 to vector<24x64xf32>
    %531 = arith.maximumf %529, %530 : vector<24x64xf32>
    %c896 = arith.constant 896 : index
    %c0_171 = arith.constant 0 : index
    %532 = vector.load %arg1[%c896, %c0_171] : memref<1072x128xf32, #tpu.memory_space<vmem>>, vector<64x32xf32>
    %cst_172 = arith.constant dense<0.000000e+00> : vector<24x32xf32>
    %533 = tpu.matmul %531, %532, %cst_172 {dimension_numbers = #tpu.dot_dimension_numbers<[1], [0], [0], [1], [0, 0, 1, 1], [], []>} : vector<24x64xf32>, vector<64x32xf32>, vector<24x32xf32> -> vector<24x32xf32>
    %c960 = arith.constant 960 : index
    %c0_173 = arith.constant 0 : index
    %534 = vector.load %arg1[%c960, %c0_173] : memref<1072x128xf32, #tpu.memory_space<vmem>>, vector<1x32xf32>
    %535 = vector.broadcast %534 : vector<1x32xf32> to vector<24x32xf32>
    %536 = arith.addf %533, %535 : vector<24x32xf32>
    %537 = arith.addf %524, %536 : vector<24x32xf32>
    %c1000 = arith.constant 1000 : index
    %c0_174 = arith.constant 0 : index
    %538 = vector.load %arg1[%c1000, %c0_174] : memref<1072x128xf32, #tpu.memory_space<vmem>>, vector<1x32xf32>
    %c1008 = arith.constant 1008 : index
    %c0_175 = arith.constant 0 : index
    %539 = vector.load %arg1[%c1008, %c0_175] : memref<1072x128xf32, #tpu.memory_space<vmem>>, vector<1x32xf32>
    %cst_176 = arith.constant dense<0.000000e+00> : vector<24xf32>
    %540 = vector.multi_reduction <add>, %537, %cst_176 [1] : vector<24x32xf32> to vector<24xf32>
    %541 = vector.shape_cast %540 : vector<24xf32> to vector<24x1xf32>
    %cst_177 = arith.constant 3.200000e+01 : f32
    %542 = vector.broadcast %cst_177 : f32 to vector<24x1xf32>
    %543 = arith.divf %541, %542 : vector<24x1xf32>
    %544 = vector.broadcast %543 : vector<24x1xf32> to vector<24x32xf32>
    %545 = arith.subf %537, %544 : vector<24x32xf32>
    %546 = arith.mulf %545, %545 : vector<24x32xf32>
    %cst_178 = arith.constant dense<0.000000e+00> : vector<24xf32>
    %547 = vector.multi_reduction <add>, %546, %cst_178 [1] : vector<24x32xf32> to vector<24xf32>
    %548 = vector.shape_cast %547 : vector<24xf32> to vector<24x1xf32>
    %cst_179 = arith.constant 3.200000e+01 : f32
    %549 = vector.broadcast %cst_179 : f32 to vector<24x1xf32>
    %550 = arith.divf %548, %549 : vector<24x1xf32>
    %551 = vector.broadcast %543 : vector<24x1xf32> to vector<24x32xf32>
    %552 = arith.subf %537, %551 : vector<24x32xf32>
    %cst_180 = arith.constant 9.99999974E-6 : f32
    %553 = vector.broadcast %cst_180 : f32 to vector<24x1xf32>
    %554 = arith.addf %550, %553 : vector<24x1xf32>
    %555 = math.rsqrt %554 : vector<24x1xf32>
    %556 = vector.broadcast %555 : vector<24x1xf32> to vector<24x32xf32>
    %557 = arith.mulf %552, %556 : vector<24x32xf32>
    %558 = vector.broadcast %538 : vector<1x32xf32> to vector<24x32xf32>
    %559 = arith.mulf %557, %558 : vector<24x32xf32>
    %560 = vector.broadcast %539 : vector<1x32xf32> to vector<24x32xf32>
    %561 = arith.addf %559, %560 : vector<24x32xf32>
    %c1016 = arith.constant 1016 : index
    %c0_181 = arith.constant 0 : index
    %562 = vector.load %arg1[%c1016, %c0_181] : memref<1072x128xf32, #tpu.memory_space<vmem>>, vector<1x32xf32>
    %c1024 = arith.constant 1024 : index
    %c0_182 = arith.constant 0 : index
    %563 = vector.load %arg1[%c1024, %c0_182] : memref<1072x128xf32, #tpu.memory_space<vmem>>, vector<1x32xf32>
    %cst_183 = arith.constant dense<0.000000e+00> : vector<24xf32>
    %564 = vector.multi_reduction <add>, %561, %cst_183 [1] : vector<24x32xf32> to vector<24xf32>
    %565 = vector.shape_cast %564 : vector<24xf32> to vector<24x1xf32>
    %cst_184 = arith.constant 3.200000e+01 : f32
    %566 = vector.broadcast %cst_184 : f32 to vector<24x1xf32>
    %567 = arith.divf %565, %566 : vector<24x1xf32>
    %568 = vector.broadcast %567 : vector<24x1xf32> to vector<24x32xf32>
    %569 = arith.subf %561, %568 : vector<24x32xf32>
    %570 = arith.mulf %569, %569 : vector<24x32xf32>
    %cst_185 = arith.constant dense<0.000000e+00> : vector<24xf32>
    %571 = vector.multi_reduction <add>, %570, %cst_185 [1] : vector<24x32xf32> to vector<24xf32>
    %572 = vector.shape_cast %571 : vector<24xf32> to vector<24x1xf32>
    %cst_186 = arith.constant 3.200000e+01 : f32
    %573 = vector.broadcast %cst_186 : f32 to vector<24x1xf32>
    %574 = arith.divf %572, %573 : vector<24x1xf32>
    %575 = vector.broadcast %567 : vector<24x1xf32> to vector<24x32xf32>
    %576 = arith.subf %561, %575 : vector<24x32xf32>
    %cst_187 = arith.constant 9.99999974E-6 : f32
    %577 = vector.broadcast %cst_187 : f32 to vector<24x1xf32>
    %578 = arith.addf %574, %577 : vector<24x1xf32>
    %579 = math.rsqrt %578 : vector<24x1xf32>
    %580 = vector.broadcast %579 : vector<24x1xf32> to vector<24x32xf32>
    %581 = arith.mulf %576, %580 : vector<24x32xf32>
    %582 = vector.broadcast %562 : vector<1x32xf32> to vector<24x32xf32>
    %583 = arith.mulf %581, %582 : vector<24x32xf32>
    %584 = vector.broadcast %563 : vector<1x32xf32> to vector<24x32xf32>
    %585 = arith.addf %583, %584 : vector<24x32xf32>
    %c1032 = arith.constant 1032 : index
    %c0_188 = arith.constant 0 : index
    %586 = vector.load %arg1[%c1032, %c0_188] : memref<1072x128xf32, #tpu.memory_space<vmem>>, vector<32x128xf32>
    %cst_189 = arith.constant dense<0.000000e+00> : vector<24x128xf32>
    %587 = tpu.matmul %585, %586, %cst_189 {dimension_numbers = #tpu.dot_dimension_numbers<[1], [0], [0], [1], [0, 0, 1, 1], [], []>} : vector<24x32xf32>, vector<32x128xf32>, vector<24x128xf32> -> vector<24x128xf32>
    %c1064 = arith.constant 1064 : index
    %c0_190 = arith.constant 0 : index
    %588 = vector.load %arg1[%c1064, %c0_190] : memref<1072x128xf32, #tpu.memory_space<vmem>>, vector<1x128xf32>
    %589 = vector.broadcast %588 : vector<1x128xf32> to vector<24x128xf32>
    %590 = arith.addf %587, %589 : vector<24x128xf32>
    %c0_191 = arith.constant 0 : index
    %c0_192 = arith.constant 0 : index
    %591 = vector.load %arg2[%c0_191, %c0_192] : memref<24x128xf32, #tpu.memory_space<vmem>>, vector<24x128xf32>
    tpu.vector_store %arg2[%c0_191, %c0_192], %590 {strides = array<i32>} : memref<24x128xf32, #tpu.memory_space<vmem>>, vector<24x128xf32>,
    return
  }
}

</mosaic_0001>

<llo_original>
// kernel: model_forward.1
$region0: #{model_forward.1}
  #allocation0 [shape = 'u32[]', space=smem, size = 0x4, offset = 0x4, fixed_abs, tag = 'smem constant byte address 0x4 - core index']
  #allocation1 [shape = 'u32[144,128]{1,0:T(1,128)}', space=vmem, size = 0x12000, scoped, tag = 'internal scratch']
  %s0 = inlined_call_operand.vmem [shape: f32[48,32], index: 0, kind: input, shape index: {}]
  %s1 = inlined_call_operand.vmem [shape: f32[1072,128], index: 1, kind: input, shape index: {}]
  %s2 = inlined_call_operand.vmem [shape: f32[24,128], index: 2, kind: output, shape index: {}]
  %s3 = sld [smem:[#allocation0]]
  $region18: #{model_forward.1} parent=0
    _
  %s5 = ssub.s32 1, %s3
  %s6 = scalar_select 0, %s5, %s3
  // Predicated region
  $region2: #{model_forward.1} parent=0 // pred_check
    _
  $region3: #{model_forward.1} parent=0 // pred_check_branch
    %8 = sbr.rel (0) target = $region5
  $region4: #{model_forward.1} parent=0 // pred_region
    _
  $region5: #{model_forward.1} parent=0 // pred_fallthru
    _
  // Predicated region
  $region6: #{model_forward.1} parent=0 // pred_check
    _
  $region7: #{model_forward.1} parent=0 // pred_check_branch
    %10 = sbr.rel (0) target = $region9
  $region8: #{model_forward.1} parent=0 // pred_region
    _
  $region9: #{model_forward.1} parent=0 // pred_fallthru
    _
  %v11 = vlaneseq
  %v12 = vand.u32 %v11, 127
  %vm13 = vcmp.ge.s32.totalorder %v12, 0
  %vm14 = vcmp.lt.s32.totalorder %v12, 8
  %vm15 = vmand %vm13, %vm14
  %v16 = vsel %vm15, 1, 0
  %v17 = vcvt.s32.f32 %v16
  %vm18 = vcmp.ge.s32.totalorder %v12, 8
  %vm19 = vcmp.lt.s32.totalorder %v12, 16
  %vm20 = vmand %vm18, %vm19
  %v21 = vsel %vm20, 1, 0
  %v22 = vcvt.s32.f32 %v21
  %vm23 = vcmp.ge.s32.totalorder %v12, 16
  %vm24 = vcmp.lt.s32.totalorder %v12, 24
  %vm25 = vmand %vm23, %vm24
  %v26 = vsel %vm25, 1, 0
  %v27 = vcvt.s32.f32 %v26
  %vm28 = vcmp.ge.s32.totalorder %v12, 24
  %vm29 = vcmp.lt.s32.totalorder %v12, 32
  %vm30 = vmand %vm28, %vm29
  %v31 = vsel %vm30, 1, 0
  %v32 = vcvt.s32.f32 %v31
  %v33 = vlaneseq
  %v34 = vshrl.u32 %v33, 7
  %v35 = vadd.s32 %v34, 8
  %v36 = vadd.s32 %v34, 16
  %v37 = vand.u32 %v12, 31
  %vm38 = vcmp.ge.s32.totalorder %v34, 12
  %vm39 = vcmp.ge.s32.totalorder %v35, 12
  %vm40 = vcmp.ge.s32.totalorder %v36, 12
  %vm41 = vcmp.ge.s32.totalorder %v37, 12
  %vm42 = vcmp.lt.s32.totalorder %v37, 24
  %vm43 = vmxor %vm38, %vm41
  %vm44 = vmxor %vm39, %vm41
  %vm45 = vmxor %vm40, %vm41
  %vm46 = vmxor %vm43, 1
  %vm47 = vmxor %vm44, 1
  %vm48 = vmxor %vm45, 1
  %vm49 = vmand %vm42, %vm46
  %vm50 = vmand %vm42, %vm47
  %vm51 = vmand %vm42, %vm48
  %v52 = vsel %vm49, 0.0, -1e+30
  %v53 = vsel %vm50, 0.0, -1e+30
  %v54 = vsel %vm51, 0.0, -1e+30
  %v55 = vsel %vm38, 12, 0
  %v56 = vsel %vm39, 12, 0
  %v57 = vsel %vm40, 12, 0
  %v58 = vsub.s32 %v34, %v55
  %v59 = vsub.s32 %v35, %v56
  %v60 = vsub.s32 %v36, %v57
  %v61 = vsel %vm41, 12, 0
  %v62 = vsub.s32 %v37, %v61
  %vm63 = vcmp.le.s32.totalorder %v62, %v58
  %vm64 = vcmp.le.s32.totalorder %v62, %v59
  %vm65 = vcmp.le.s32.totalorder %v62, %v60
  %vm66 = vmand %vm49, %vm63
  %vm67 = vmand %vm50, %vm64
  %vm68 = vmand %vm51, %vm65
  %v69 = vsel %vm66, 0.0, -1e+30
  %v70 = vsel %vm67, 0.0, -1e+30
  %v71 = vsel %vm68, 0.0, -1e+30
  %v72 = vld [vmem:[%s0] sm:$0xff]
  %v73 = vld [vmem:[%s0 + $0x8] sm:$0xff]
  %v74 = vld [vmem:[%s0 + $0x10] sm:$0xff]
  %v75 = vld [vmem:[%s0 + $0x18] sm:$0xff]
  %v76 = vld [vmem:[%s0 + $0x20] sm:$0xff]
  %v77 = vld [vmem:[%s0 + $0x28] sm:$0xff]
  %v78 = vld [vmem:[%s1] sm:$0xff]
  %v79 = vld [vmem:[%s1 + $0x8] sm:$0xff]
  %v80 = vld [vmem:[%s1 + $0x10] sm:$0xff]
  %v81 = vld [vmem:[%s1 + $0x18] sm:$0xff]
  %v82 = vld [vmem:[%s1 + $0x90] sm:$0xff]
  %v83 = vld [vmem:[%s1 + $0x98] sm:$0xff]
  %v84 = vld [vmem:[%s1 + $0xa0] sm:$0xff]
  %vm85 = vcmask 261120
  %v87 = vsel %vm85, %v72, 0
  %v90 = vsel %vm85, %v73, 0
  %v93 = vsel %vm85, %v74, 0
  %95 = vmatprep.subr.mxu0 0.0
  %96 = vmatpush1.msra.mxu0 %v78
  %97 = vmatprep.subr.mxu0 0.0
  %98 = vmatpush1.msra.mxu0 %v79
  %99 = vmatprep.subr.mxu0 0.0
  %100 = vmatpush1.msra.mxu0 %v80
  %101 = vmatprep.subr.mxu0 0.0
  %102 = vmatpush1.msra.mxu0 %v81
  %103 = vmatprep.subr.mxu0 0.0
  %104 = vmatpush1.msra.mxu0 0.0
  %105 = vmatprep.subr.mxu0 0.0
  %106 = vmatpush1.msra.mxu0 0.0
  %107 = vmatprep.subr.mxu0 0.0
  %108 = vmatpush1.msra.mxu0 0.0
  %109 = vmatprep.subr.mxu0 0.0
  %110 = vmatpush1.msra.mxu0 0.0
  %111 = vmatprep.subr.mxu0 0.0
  %112 = vmatpush1.msra.mxu0 0.0
  %113 = vmatprep.subr.mxu0 0.0
  %114 = vmatpush1.msra.mxu0 0.0
  %115 = vmatprep.subr.mxu0 0.0
  %116 = vmatpush1.msra.mxu0 0.0
  %117 = vmatprep.subr.mxu0 0.0
  %118 = vmatpush1.msra.mxu0 0.0
  %119 = vmatprep.subr.mxu0 0.0
  %120 = vmatpush1.msra.mxu0 0.0
  %121 = vmatprep.subr.mxu0 0.0
  %122 = vmatpush1.msra.mxu0 0.0
  %123 = vmatprep.subr.mxu0 0.0
  %124 = vmatpush1.msra.mxu0 0.0
  %125 = vmatprep.subr.mxu0 0.0
  %126 = vmatpush1.msra.mxu0 0.0
  %127 = vmatprep.subr.mxu0 0.0
  %128 = vmatpush1.msra.mxu0 0.0
  %129 = vmatprep.subr.mxu0 0.0
  %130 = vmatpush1.msra.mxu0 0.0
  %131 = vmatprep.subr.mxu0 0.0
  %132 = vmatpush1.msra.mxu0 0.0
  %133 = vmatprep.subr.mxu0 0.0
  %134 = vmatpush1.msra.mxu0 0.0
  %135 = vmatprep.subr.mxu0 0.0
  %136 = vmatpush1.msra.mxu0 0.0
  %137 = vmatprep.subr.mxu0 0.0
  %138 = vmatpush1.msra.mxu0 0.0
  %139 = vmatprep.subr.mxu0 0.0
  %140 = vmatpush1.msra.mxu0 0.0
  %141 = vmatprep.subr.mxu0 0.0
  %142 = vmatpush1.msra.mxu0 0.0
  %143 = vmatprep.subr.mxu0 0.0
  %144 = vmatpush1.msra.mxu0 0.0
  %145 = vmatprep.subr.mxu0 0.0
  %146 = vmatpush1.msra.mxu0 0.0
  %147 = vmatprep.subr.mxu0 0.0
  %148 = vmatpush1.msra.mxu0 0.0
  %149 = vmatprep.subr.mxu0 0.0
  %150 = vmatpush1.msra.mxu0 0.0
  %151 = vmatprep.subr.mxu0 0.0
  %152 = vmatpush1.msra.mxu0 0.0
  %153 = vmatprep.subr.mxu0 0.0
  %154 = vmatpush1.msra.mxu0 0.0
  %155 = vmatprep.subr.mxu0 0.0
  %156 = vmatpush1.msra.mxu0 0.0
  %157 = vmatprep.subr.mxu0 0.0
  %158 = vmatpush1.msra.mxu0 0.0
  %159 = vmatprep.mubr.f32.mxu0 0.0
  %160 = vmatmul.mubr.f32.gmra.mrb[0].mxu0 %v87
  %v161 = vpop.f32.mrb[0].mxu0
  %v162 = vadd.f32 %v82, %v161
  %v163 = vpop.f32.mrb[0].mxu0
  %164 = vmatprep.mubr.f32.mxu0 0.0
  %165 = vmatmul.mubr.f32.gmra.mrb[0].mxu0 %v90
  %v166 = vpop.f32.mrb[0].mxu0
  %v167 = vadd.f32 %v83, %v166
  %v168 = vpop.f32.mrb[0].mxu0
  %169 = vmatprep.mubr.f32.mxu0 0.0
  %170 = vmatmul.mubr.f32.gmra.mrb[0].mxu0 %v93
  %v171 = vpop.f32.mrb[0].mxu0
  %v172 = vadd.f32 %v84, %v171
  %v173 = vpop.f32.mrb[0].mxu0
  %174 = vdwg.mxu0
  %v175 = vld [vmem:[%s1 + $0x20] sm:$0xff]
  %v176 = vld [vmem:[%s1 + $0x28] sm:$0xff]
  %v177 = vld [vmem:[%s1 + $0x30] sm:$0xff]
  %v178 = vld [vmem:[%s1 + $0x38] sm:$0xff]
  %v179 = vld [vmem:[%s1 + $0x40] sm:$0x1]
  %v180 = vlaneseq
  %v181 = vshrl.u32 %v180, 7
  %v182 = vsub.s32 0, %v181
  %v183 = vrot.slane %v179, %v182
  %184 = vmatprep.subr.mxu0 0.0
  %185 = vmatpush1.msra.mxu0 %v175
  %186 = vmatprep.subr.mxu0 0.0
  %187 = vmatpush1.msra.mxu0 %v176
  %188 = vmatprep.subr.mxu0 0.0
  %189 = vmatpush1.msra.mxu0 %v177
  %190 = vmatprep.subr.mxu0 0.0
  %191 = vmatpush1.msra.mxu0 %v178
  %192 = vmatprep.subr.mxu0 0.0
  %193 = vmatpush1.msra.mxu0 0.0
  %194 = vmatprep.subr.mxu0 0.0
  %195 = vmatpush1.msra.mxu0 0.0
  %196 = vmatprep.subr.mxu0 0.0
  %197 = vmatpush1.msra.mxu0 0.0
  %198 = vmatprep.subr.mxu0 0.0
  %199 = vmatpush1.msra.mxu0 0.0
  %200 = vmatprep.subr.mxu0 0.0
  %201 = vmatpush1.msra.mxu0 0.0
  %202 = vmatprep.subr.mxu0 0.0
  %203 = vmatpush1.msra.mxu0 0.0
  %204 = vmatprep.subr.mxu0 0.0
  %205 = vmatpush1.msra.mxu0 0.0
  %206 = vmatprep.subr.mxu0 0.0
  %207 = vmatpush1.msra.mxu0 0.0
  %208 = vmatprep.subr.mxu0 0.0
  %209 = vmatpush1.msra.mxu0 0.0
  %210 = vmatprep.subr.mxu0 0.0
  %211 = vmatpush1.msra.mxu0 0.0
  %212 = vmatprep.subr.mxu0 0.0
  %213 = vmatpush1.msra.mxu0 0.0
  %214 = vmatprep.subr.mxu0 0.0
  %215 = vmatpush1.msra.mxu0 0.0
  %216 = vmatprep.subr.mxu0 0.0
  %217 = vmatpush1.msra.mxu0 0.0
  %218 = vmatprep.subr.mxu0 0.0
  %219 = vmatpush1.msra.mxu0 0.0
  %220 = vmatprep.subr.mxu0 0.0
  %221 = vmatpush1.msra.mxu0 0.0
  %222 = vmatprep.subr.mxu0 0.0
  %223 = vmatpush1.msra.mxu0 0.0
  %224 = vmatprep.subr.mxu0 0.0
  %225 = vmatpush1.msra.mxu0 0.0
  %226 = vmatprep.subr.mxu0 0.0
  %227 = vmatpush1.msra.mxu0 0.0
  %228 = vmatprep.subr.mxu0 0.0
  %229 = vmatpush1.msra.mxu0 0.0
  %230 = vmatprep.subr.mxu0 0.0
  %231 = vmatpush1.msra.mxu0 0.0
  %232 = vmatprep.subr.mxu0 0.0
  %233 = vmatpush1.msra.mxu0 0.0
  %234 = vmatprep.subr.mxu0 0.0
  %235 = vmatpush1.msra.mxu0 0.0
  %236 = vmatprep.subr.mxu0 0.0
  %237 = vmatpush1.msra.mxu0 0.0
  %238 = vmatprep.subr.mxu0 0.0
  %239 = vmatpush1.msra.mxu0 0.0
  %240 = vmatprep.subr.mxu0 0.0
  %241 = vmatpush1.msra.mxu0 0.0
  %242 = vmatprep.subr.mxu0 0.0
  %243 = vmatpush1.msra.mxu0 0.0
  %244 = vmatprep.subr.mxu0 0.0
  %245 = vmatpush1.msra.mxu0 0.0
  %246 = vmatprep.subr.mxu0 0.0
  %247 = vmatpush1.msra.mxu0 0.0
  %248 = vmatprep.mubr.f32.mxu0 0.0
  %249 = vmatmul.mubr.f32.gmra.mrb[0].mxu0 %v87
  %v250 = vpop.f32.mrb[0].mxu0
  %v251 = vadd.f32 %v183, %v250
  %v252 = vpop.f32.mrb[0].mxu0
  %253 = vmatprep.mubr.f32.mxu0 0.0
  %254 = vmatmul.mubr.f32.gmra.mrb[0].mxu0 %v90
  %v255 = vpop.f32.mrb[0].mxu0
  %v256 = vadd.f32 %v183, %v255
  %v257 = vpop.f32.mrb[0].mxu0
  %258 = vmatprep.mubr.f32.mxu0 0.0
  %259 = vmatmul.mubr.f32.gmra.mrb[0].mxu0 %v93
  %v260 = vpop.f32.mrb[0].mxu0
  %v261 = vadd.f32 %v183, %v260
  %v262 = vpop.f32.mrb[0].mxu0
  %263 = vdwg.mxu0
  %v264 = vmax.f32 %v251, 0.0
  %v265 = vmax.f32 %v256, 0.0
  %v266 = vmax.f32 %v261, 0.0
  %v267 = vsub.f32 0.0, %v264
  %v268 = vsub.f32 0.0, %v265
  %v269 = vsub.f32 0.0, %v266
  %v270 = vmul.f32 %v267, 1.442695
  %v271 = vpow.pop %v270
  %v272 = vmul.f32 %v268, 1.442695
  %v273 = vpow.pop %v272
  %v274 = vmul.f32 %v269, 1.442695
  %v275 = vpow.pop %v274
  %v276 = vmul.f32 %v162, %v271
  %v277 = vmul.f32 %v167, %v273
  %v278 = vmul.f32 %v172, %v275
  %v279 = vld [vmem:[%s1 + $0xc0] sm:$0xff]
  %v280 = vld [vmem:[%s1 + $0xc8] sm:$0xff]
  %v281 = vld [vmem:[%s1 + $0xd0] sm:$0xff]
  %v282 = vld [vmem:[%s1 + $0xd8] sm:$0xff]
  %v283 = vld [vmem:[%s1 + $0xe0] sm:$0x1]
  %v284 = vlaneseq
  %v285 = vshrl.u32 %v284, 7
  %v286 = vsub.s32 0, %v285
  %v287 = vrot.slane %v283, %v286
  %v289 = vsel %vm85, %v276, 0
  %v292 = vsel %vm85, %v277, 0
  %v295 = vsel %vm85, %v278, 0
  %297 = vmatprep.subr.mxu0 0.0
  %298 = vmatpush1.msra.mxu0 %v279
  %299 = vmatprep.subr.mxu0 0.0
  %300 = vmatpush1.msra.mxu0 %v280
  %301 = vmatprep.subr.mxu0 0.0
  %302 = vmatpush1.msra.mxu0 %v281
  %303 = vmatprep.subr.mxu0 0.0
  %304 = vmatpush1.msra.mxu0 %v282
  %305 = vmatprep.subr.mxu0 0.0
  %306 = vmatpush1.msra.mxu0 0.0
  %307 = vmatprep.subr.mxu0 0.0
  %308 = vmatpush1.msra.mxu0 0.0
  %309 = vmatprep.subr.mxu0 0.0
  %310 = vmatpush1.msra.mxu0 0.0
  %311 = vmatprep.subr.mxu0 0.0
  %312 = vmatpush1.msra.mxu0 0.0
  %313 = vmatprep.subr.mxu0 0.0
  %314 = vmatpush1.msra.mxu0 0.0
  %315 = vmatprep.subr.mxu0 0.0
  %316 = vmatpush1.msra.mxu0 0.0
  %317 = vmatprep.subr.mxu0 0.0
  %318 = vmatpush1.msra.mxu0 0.0
  %319 = vmatprep.subr.mxu0 0.0
  %320 = vmatpush1.msra.mxu0 0.0
  %321 = vmatprep.subr.mxu0 0.0
  %322 = vmatpush1.msra.mxu0 0.0
  %323 = vmatprep.subr.mxu0 0.0
  %324 = vmatpush1.msra.mxu0 0.0
  %325 = vmatprep.subr.mxu0 0.0
  %326 = vmatpush1.msra.mxu0 0.0
  %327 = vmatprep.subr.mxu0 0.0
  %328 = vmatpush1.msra.mxu0 0.0
  %329 = vmatprep.subr.mxu0 0.0
  %330 = vmatpush1.msra.mxu0 0.0
  %331 = vmatprep.subr.mxu0 0.0
  %332 = vmatpush1.msra.mxu0 0.0
  %333 = vmatprep.subr.mxu0 0.0
  %334 = vmatpush1.msra.mxu0 0.0
  %335 = vmatprep.subr.mxu0 0.0
  %336 = vmatpush1.msra.mxu0 0.0
  %337 = vmatprep.subr.mxu0 0.0
  %338 = vmatpush1.msra.mxu0 0.0
  %339 = vmatprep.subr.mxu0 0.0
  %340 = vmatpush1.msra.mxu0 0.0
  %341 = vmatprep.subr.mxu0 0.0
  %342 = vmatpush1.msra.mxu0 0.0
  %343 = vmatprep.subr.mxu0 0.0
  %344 = vmatpush1.msra.mxu0 0.0
  %345 = vmatprep.subr.mxu0 0.0
  %346 = vmatpush1.msra.mxu0 0.0
  %347 = vmatprep.subr.mxu0 0.0
  %348 = vmatpush1.msra.mxu0 0.0
  %349 = vmatprep.subr.mxu0 0.0
  %350 = vmatpush1.msra.mxu0 0.0
  %351 = vmatprep.subr.mxu0 0.0
  %352 = vmatpush1.msra.mxu0 0.0
  %353 = vmatprep.subr.mxu0 0.0
  %354 = vmatpush1.msra.mxu0 0.0
  %355 = vmatprep.subr.mxu0 0.0
  %356 = vmatpush1.msra.mxu0 0.0
  %357 = vmatprep.subr.mxu0 0.0
  %358 = vmatpush1.msra.mxu0 0.0
  %359 = vmatprep.subr.mxu0 0.0
  %360 = vmatpush1.msra.mxu0 0.0
  %361 = vmatprep.mubr.f32.mxu0 0.0
  %362 = vmatmul.mubr.f32.gmra.mrb[0].mxu0 %v289
  %v363 = vpop.f32.mrb[0].mxu0
  %v364 = vadd.f32 %v287, %v363
  %v365 = vpop.f32.mrb[0].mxu0
  %366 = vmatprep.mubr.f32.mxu0 0.0
  %367 = vmatmul.mubr.f32.gmra.mrb[0].mxu0 %v292
  %v368 = vpop.f32.mrb[0].mxu0
  %v369 = vadd.f32 %v287, %v368
  %v370 = vpop.f32.mrb[0].mxu0
  %371 = vmatprep.mubr.f32.mxu0 0.0
  %372 = vmatmul.mubr.f32.gmra.mrb[0].mxu0 %v295
  %v373 = vpop.f32.mrb[0].mxu0
  %v374 = vadd.f32 %v287, %v373
  %v375 = vpop.f32.mrb[0].mxu0
  %376 = vdwg.mxu0
  %377 = vrot.lane.b32.xlu0 %v364, 96
  %v378 = vpop.permute.xlu0 %377
  %379 = vrot.lane.b32.xlu0 %v369, 96
  %v380 = vpop.permute.xlu0 %379
  %381 = vrot.lane.b32.xlu0 %v374, 96
  %v382 = vpop.permute.xlu0 %381
  %383 = vrot.lane.b32.xlu0 %v364, 64
  %v384 = vpop.permute.xlu0 %383
  %385 = vrot.lane.b32.xlu0 %v369, 64
  %v386 = vpop.permute.xlu0 %385
  %387 = vrot.lane.b32.xlu0 %v374, 64
  %v388 = vpop.permute.xlu0 %387
  %v389 = vld [vmem:[%s1 + $0xe8] sm:$0xff]
  %v390 = vld [vmem:[%s1 + $0xf0] sm:$0xff]
  %v391 = vld [vmem:[%s1 + $0xf8] sm:$0xff]
  %v392 = vld [vmem:[%s1 + $0x100] sm:$0xff]
  %v393 = vld [vmem:[%s1 + $0x108] sm:$0x1]
  %v394 = vmul.f32 %v378, %v17
  %v395 = vmul.f32 %v380, %v17
  %v396 = vmul.f32 %v382, %v17
  %v397 = vmul.f32 %v378, %v22
  %v398 = vmul.f32 %v380, %v22
  %v399 = vmul.f32 %v382, %v22
  %v400 = vmul.f32 %v378, %v27
  %v401 = vmul.f32 %v380, %v27
  %v402 = vmul.f32 %v382, %v27
  %v403 = vmul.f32 %v378, %v32
  %v404 = vmul.f32 %v380, %v32
  %v405 = vmul.f32 %v382, %v32
  %v406 = vmul.f32 %v384, %v17
  %v407 = vmul.f32 %v386, %v17
  %v408 = vmul.f32 %v388, %v17
  %v409 = vmul.f32 %v384, %v22
  %v410 = vmul.f32 %v386, %v22
  %v411 = vmul.f32 %v388, %v22
  %v412 = vmul.f32 %v384, %v27
  %v413 = vmul.f32 %v386, %v27
  %v414 = vmul.f32 %v388, %v27
  %v415 = vmul.f32 %v384, %v32
  %v416 = vmul.f32 %v386, %v32
  %v417 = vmul.f32 %v388, %v32
  %v419 = vsel %vm85, %v364, 0
  %v422 = vsel %vm85, %v369, 0
  %v425 = vsel %vm85, %v374, 0
  %v428 = vsel %vm85, %v394, 0
  %v431 = vsel %vm85, %v395, 0
  %v434 = vsel %vm85, %v396, 0
  %v437 = vsel %vm85, 0.0, 0
  %v440 = vsel %vm85, %v397, 0
  %v443 = vsel %vm85, %v398, 0
  %v446 = vsel %vm85, %v399, 0
  %v449 = vsel %vm85, %v400, 0
  %v452 = vsel %vm85, %v401, 0
  %v455 = vsel %vm85, %v402, 0
  %v458 = vsel %vm85, %v403, 0
  %v461 = vsel %vm85, %v404, 0
  %v464 = vsel %vm85, %v405, 0
  %466 = vmatprep.subr.mxu0 0.0
  %467 = vmatpush1.xpose.msra.mxu0 %v428
  %468 = vmatprep.subr.mxu0 0.0
  %469 = vmatpush1.xpose.msra.mxu0 %v431
  %470 = vmatprep.subr.mxu0 0.0
  %471 = vmatpush1.xpose.msra.mxu0 %v434
  %472 = vmatprep.subr.mxu0 0.0
  %473 = vmatpush1.xpose.msra.mxu0 %v437
  %474 = vmatprep.subr.mxu0 0.0
  %475 = vmatpush1.xpose.msra.mxu0 %v440
  %476 = vmatprep.subr.mxu0 0.0
  %477 = vmatpush1.xpose.msra.mxu0 %v443
  %478 = vmatprep.subr.mxu0 0.0
  %479 = vmatpush1.xpose.msra.mxu0 %v446
  %480 = vmatprep.subr.mxu0 0.0
  %481 = vmatpush1.xpose.msra.mxu0 %v437
  %482 = vmatprep.subr.mxu0 0.0
  %483 = vmatpush1.xpose.msra.mxu0 %v449
  %484 = vmatprep.subr.mxu0 0.0
  %485 = vmatpush1.xpose.msra.mxu0 %v452
  %486 = vmatprep.subr.mxu0 0.0
  %487 = vmatpush1.xpose.msra.mxu0 %v455
  %488 = vmatprep.subr.mxu0 0.0
  %489 = vmatpush1.xpose.msra.mxu0 %v437
  %490 = vmatprep.subr.mxu0 0.0
  %491 = vmatpush1.xpose.msra.mxu0 %v458
  %492 = vmatprep.subr.mxu0 0.0
  %493 = vmatpush1.xpose.msra.mxu0 %v461
  %494 = vmatprep.subr.mxu0 0.0
  %495 = vmatpush1.xpose.msra.mxu0 %v464
  %496 = vmatprep.subr.mxu0 0.0
  %497 = vmatpush1.xpose.msra.mxu0 %v437
  %498 = vmatprep.subr.mxu0 0.0
  %499 = vmatpush1.xpose.msra.mxu0 0.0
  %500 = vmatprep.subr.mxu0 0.0
  %501 = vmatpush1.xpose.msra.mxu0 0.0
  %502 = vmatprep.subr.mxu0 0.0
  %503 = vmatpush1.xpose.msra.mxu0 0.0
  %504 = vmatprep.subr.mxu0 0.0
  %505 = vmatpush1.xpose.msra.mxu0 0.0
  %506 = vmatprep.subr.mxu0 0.0
  %507 = vmatpush1.xpose.msra.mxu0 0.0
  %508 = vmatprep.subr.mxu0 0.0
  %509 = vmatpush1.xpose.msra.mxu0 0.0
  %510 = vmatprep.subr.mxu0 0.0
  %511 = vmatpush1.xpose.msra.mxu0 0.0
  %512 = vmatprep.subr.mxu0 0.0
  %513 = vmatpush1.xpose.msra.mxu0 0.0
  %514 = vmatprep.subr.mxu0 0.0
  %515 = vmatpush1.xpose.msra.mxu0 0.0
  %516 = vmatprep.subr.mxu0 0.0
  %517 = vmatpush1.xpose.msra.mxu0 0.0
  %518 = vmatprep.subr.mxu0 0.0
  %519 = vmatpush1.xpose.msra.mxu0 0.0
  %520 = vmatprep.subr.mxu0 0.0
  %521 = vmatpush1.xpose.msra.mxu0 0.0
  %522 = vmatprep.subr.mxu0 0.0
  %523 = vmatpush1.xpose.msra.mxu0 0.0
  %524 = vmatprep.subr.mxu0 0.0
  %525 = vmatpush1.xpose.msra.mxu0 0.0
  %526 = vmatprep.subr.mxu0 0.0
  %527 = vmatpush1.xpose.msra.mxu0 0.0
  %528 = vmatprep.subr.mxu0 0.0
  %529 = vmatpush1.xpose.msra.mxu0 0.0
  %530 = vmatprep.mubr.f32.mxu0 0.0
  %531 = vmatmul.mubr.f32.gmra.mrb[0].mxu0 %v419
  %v532 = vpop.f32.mrb[0].mxu0
  %v533 = vadd.f32 0.0, %v532
  %v534 = vpop.f32.mrb[0].mxu0
  %535 = vmatprep.mubr.f32.mxu0 0.0
  %536 = vmatmul.mubr.f32.gmra.mrb[0].mxu0 %v422
  %v537 = vpop.f32.mrb[0].mxu0
  %v538 = vadd.f32 0.0, %v537
  %v539 = vpop.f32.mrb[0].mxu0
  %540 = vmatprep.mubr.f32.mxu0 0.0
  %541 = vmatmul.mubr.f32.gmra.mrb[0].mxu0 %v425
  %v542 = vpop.f32.mrb[0].mxu0
  %v543 = vadd.f32 0.0, %v542
  %v544 = vpop.f32.mrb[0].mxu0
  %545 = vdwg.mxu0
  %v546 = vmul.f32 %v533, 0.35355338
  %v547 = vmul.f32 %v538, 0.35355338
  %v548 = vmul.f32 %v543, 0.35355338
  %v549 = vadd.f32 %v546, %v52
  %v550 = vadd.f32 %v547, %v53
  %v551 = vadd.f32 %v548, %v54
  %552 = vmax.xlane.f32.xlu0 %v549
  %v553 = vpop.xlane.xlu0 %552
  %554 = vmax.xlane.f32.xlu0 %v550
  %v555 = vpop.xlane.xlu0 %554
  %556 = vmax.xlane.f32.xlu0 %v551
  %v557 = vpop.xlane.xlu0 %556
  %v558 = vsub.f32 %v549, %v553
  %v559 = vsub.f32 %v550, %v555
  %v560 = vsub.f32 %v551, %v557
  %v561 = vmul.f32 %v558, 1.442695
  %v562 = vpow.pop %v561
  %v563 = vmul.f32 %v559, 1.442695
  %v564 = vpow.pop %v563
  %v565 = vmul.f32 %v560, 1.442695
  %v566 = vpow.pop %v565
  %567 = vmatprep.subr.mxu0 0.0
  %568 = vmatpush1.msra.mxu0 %v406
  %569 = vmatprep.subr.mxu0 0.0
  %570 = vmatpush1.msra.mxu0 %v407
  %571 = vmatprep.subr.mxu0 0.0
  %572 = vmatpush1.msra.mxu0 %v408
  %573 = vmatprep.subr.mxu0 0.0
  %574 = vmatpush1.msra.mxu0 0.0
  %575 = vmatprep.subr.mxu0 0.0
  %576 = vmatpush1.msra.mxu0 %v409
  %577 = vmatprep.subr.mxu0 0.0
  %578 = vmatpush1.msra.mxu0 %v410
  %579 = vmatprep.subr.mxu0 0.0
  %580 = vmatpush1.msra.mxu0 %v411
  %581 = vmatprep.subr.mxu0 0.0
  %582 = vmatpush1.msra.mxu0 0.0
  %583 = vmatprep.subr.mxu0 0.0
  %584 = vmatpush1.msra.mxu0 %v412
  %585 = vmatprep.subr.mxu0 0.0
  %586 = vmatpush1.msra.mxu0 %v413
  %587 = vmatprep.subr.mxu0 0.0
  %588 = vmatpush1.msra.mxu0 %v414
  %589 = vmatprep.subr.mxu0 0.0
  %590 = vmatpush1.msra.mxu0 0.0
  %591 = vmatprep.subr.mxu0 0.0
  %592 = vmatpush1.msra.mxu0 %v415
  %593 = vmatprep.subr.mxu0 0.0
  %594 = vmatpush1.msra.mxu0 %v416
  %595 = vmatprep.subr.mxu0 0.0
  %596 = vmatpush1.msra.mxu0 %v417
  %597 = vmatprep.subr.mxu0 0.0
  %598 = vmatpush1.msra.mxu0 0.0
  %599 = vmatprep.subr.mxu0 0.0
  %600 = vmatpush1.msra.mxu0 0.0
  %601 = vmatprep.subr.mxu0 0.0
  %602 = vmatpush1.msra.mxu0 0.0
  %603 = vmatprep.subr.mxu0 0.0
  %604 = vmatpush1.msra.mxu0 0.0
  %605 = vmatprep.subr.mxu0 0.0
  %606 = vmatpush1.msra.mxu0 0.0
  %607 = vmatprep.subr.mxu0 0.0
  %608 = vmatpush1.msra.mxu0 0.0
  %609 = vmatprep.subr.mxu0 0.0
  %610 = vmatpush1.msra.mxu0 0.0
  %611 = vmatprep.subr.mxu0 0.0
  %612 = vmatpush1.msra.mxu0 0.0
  %613 = vmatprep.subr.mxu0 0.0
  %614 = vmatpush1.msra.mxu0 0.0
  %615 = vmatprep.subr.mxu0 0.0
  %616 = vmatpush1.msra.mxu0 0.0
  %617 = vmatprep.subr.mxu0 0.0
  %618 = vmatpush1.msra.mxu0 0.0
  %619 = vmatprep.subr.mxu0 0.0
  %620 = vmatpush1.msra.mxu0 0.0
  %621 = vmatprep.subr.mxu0 0.0
  %622 = vmatpush1.msra.mxu0 0.0
  %623 = vmatprep.subr.mxu0 0.0
  %624 = vmatpush1.msra.mxu0 0.0
  %625 = vmatprep.subr.mxu0 0.0
  %626 = vmatpush1.msra.mxu0 0.0
  %627 = vmatprep.subr.mxu0 0.0
  %628 = vmatpush1.msra.mxu0 0.0
  %629 = vmatprep.subr.mxu0 0.0
  %630 = vmatpush1.msra.mxu0 0.0
  %631 = vmatprep.mubr.f32.mxu0 0.0
  %632 = vmatmul.mubr.f32.gmra.mrb[0].mxu0 %v562
  %v633 = vpop.f32.mrb[0].mxu0
  %v634 = vadd.f32 0.0, %v633
  %v635 = vpop.f32.mrb[0].mxu0
  %636 = vmatprep.mubr.f32.mxu0 0.0
  %637 = vmatmul.mubr.f32.gmra.mrb[0].mxu0 %v564
  %v638 = vpop.f32.mrb[0].mxu0
  %v639 = vadd.f32 0.0, %v638
  %v640 = vpop.f32.mrb[0].mxu0
  %641 = vmatprep.mubr.f32.mxu0 0.0
  %642 = vmatmul.mubr.f32.gmra.mrb[0].mxu0 %v566
  %v643 = vpop.f32.mrb[0].mxu0
  %v644 = vadd.f32 0.0, %v643
  %v645 = vpop.f32.mrb[0].mxu0
  %646 = vdwg.mxu0
  %647 = vmatprep.subr.mxu0 0.0
  %648 = vmatpush1.msra.mxu0 %v17
  %649 = vmatprep.subr.mxu0 0.0
  %650 = vmatpush1.msra.mxu0 %v17
  %651 = vmatprep.subr.mxu0 0.0
  %652 = vmatpush1.msra.mxu0 %v17
  %653 = vmatprep.subr.mxu0 0.0
  %654 = vmatpush1.msra.mxu0 %v17
  %655 = vmatprep.subr.mxu0 0.0
  %656 = vmatpush1.msra.mxu0 %v22
  %657 = vmatprep.subr.mxu0 0.0
  %658 = vmatpush1.msra.mxu0 %v22
  %659 = vmatprep.subr.mxu0 0.0
  %660 = vmatpush1.msra.mxu0 %v22
  %661 = vmatprep.subr.mxu0 0.0
  %662 = vmatpush1.msra.mxu0 %v22
  %663 = vmatprep.subr.mxu0 0.0
  %664 = vmatpush1.msra.mxu0 %v27
  %665 = vmatprep.subr.mxu0 0.0
  %666 = vmatpush1.msra.mxu0 %v27
  %667 = vmatprep.subr.mxu0 0.0
  %668 = vmatpush1.msra.mxu0 %v27
  %669 = vmatprep.subr.mxu0 0.0
  %670 = vmatpush1.msra.mxu0 %v27
  %671 = vmatprep.subr.mxu0 0.0
  %672 = vmatpush1.msra.mxu0 %v32
  %673 = vmatprep.subr.mxu0 0.0
  %674 = vmatpush1.msra.mxu0 %v32
  %675 = vmatprep.subr.mxu0 0.0
  %676 = vmatpush1.msra.mxu0 %v32
  %677 = vmatprep.subr.mxu0 0.0
  %678 = vmatpush1.msra.mxu0 %v32
  %679 = vmatprep.subr.mxu0 0.0
  %680 = vmatpush1.msra.mxu0 0.0
  %681 = vmatprep.subr.mxu0 0.0
  %682 = vmatpush1.msra.mxu0 0.0
  %683 = vmatprep.subr.mxu0 0.0
  %684 = vmatpush1.msra.mxu0 0.0
  %685 = vmatprep.subr.mxu0 0.0
  %686 = vmatpush1.msra.mxu0 0.0
  %687 = vmatprep.subr.mxu0 0.0
  %688 = vmatpush1.msra.mxu0 0.0
  %689 = vmatprep.subr.mxu0 0.0
  %690 = vmatpush1.msra.mxu0 0.0
  %691 = vmatprep.subr.mxu0 0.0
  %692 = vmatpush1.msra.mxu0 0.0
  %693 = vmatprep.subr.mxu0 0.0
  %694 = vmatpush1.msra.mxu0 0.0
  %695 = vmatprep.subr.mxu0 0.0
  %696 = vmatpush1.msra.mxu0 0.0
  %697 = vmatprep.subr.mxu0 0.0
  %698 = vmatpush1.msra.mxu0 0.0
  %699 = vmatprep.subr.mxu0 0.0
  %700 = vmatpush1.msra.mxu0 0.0
  %701 = vmatprep.subr.mxu0 0.0
  %702 = vmatpush1.msra.mxu0 0.0
  %703 = vmatprep.subr.mxu0 0.0
  %704 = vmatpush1.msra.mxu0 0.0
  %705 = vmatprep.subr.mxu0 0.0
  %706 = vmatpush1.msra.mxu0 0.0
  %707 = vmatprep.subr.mxu0 0.0
  %708 = vmatpush1.msra.mxu0 0.0
  %709 = vmatprep.subr.mxu0 0.0
  %710 = vmatpush1.msra.mxu0 0.0
  %711 = vmatprep.mubr.f32.mxu0 0.0
  %712 = vmatmul.mubr.f32.gmra.mrb[0].mxu0 %v562
  %v713 = vpop.f32.mrb[0].mxu0
  %v714 = vadd.f32 0.0, %v713
  %v715 = vpop.f32.mrb[0].mxu0
  %716 = vmatprep.mubr.f32.mxu0 0.0
  %717 = vmatmul.mubr.f32.gmra.mrb[0].mxu0 %v564
  %v718 = vpop.f32.mrb[0].mxu0
  %v719 = vadd.f32 0.0, %v718
  %v720 = vpop.f32.mrb[0].mxu0
  %721 = vmatprep.mubr.f32.mxu0 0.0
  %722 = vmatmul.mubr.f32.gmra.mrb[0].mxu0 %v566
  %v723 = vpop.f32.mrb[0].mxu0
  %v724 = vadd.f32 0.0, %v723
  %v725 = vpop.f32.mrb[0].mxu0
  %726 = vdwg.mxu0
  %v727 = vmax.f32 %v714, 1e-30
  %v728 = vmax.f32 %v719, 1e-30
  %v729 = vmax.f32 %v724, 1e-30
  %v730 = vrcp.pop %v727
  %v731 = vrcp.pop %v728
  %v732 = vrcp.pop %v729
  %v733 = vmul.f32 %v634, %v730
  %v734 = vmul.f32 %v639, %v731
  %v735 = vmul.f32 %v644, %v732
  %v736 = vlaneseq
  %v737 = vshrl.u32 %v736, 7
  %v738 = vsub.s32 0, %v737
  %v739 = vrot.slane %v393, %v738
  %v741 = vsel %vm85, %v733, 0
  %v744 = vsel %vm85, %v734, 0
  %v747 = vsel %vm85, %v735, 0
  %749 = vmatprep.subr.mxu0 0.0
  %750 = vmatpush1.msra.mxu0 %v389
  %751 = vmatprep.subr.mxu0 0.0
  %752 = vmatpush1.msra.mxu0 %v390
  %753 = vmatprep.subr.mxu0 0.0
  %754 = vmatpush1.msra.mxu0 %v391
  %755 = vmatprep.subr.mxu0 0.0
  %756 = vmatpush1.msra.mxu0 %v392
  %757 = vmatprep.subr.mxu0 0.0
  %758 = vmatpush1.msra.mxu0 0.0
  %759 = vmatprep.subr.mxu0 0.0
  %760 = vmatpush1.msra.mxu0 0.0
  %761 = vmatprep.subr.mxu0 0.0
  %762 = vmatpush1.msra.mxu0 0.0
  %763 = vmatprep.subr.mxu0 0.0
  %764 = vmatpush1.msra.mxu0 0.0
  %765 = vmatprep.subr.mxu0 0.0
  %766 = vmatpush1.msra.mxu0 0.0
  %767 = vmatprep.subr.mxu0 0.0
  %768 = vmatpush1.msra.mxu0 0.0
  %769 = vmatprep.subr.mxu0 0.0
  %770 = vmatpush1.msra.mxu0 0.0
  %771 = vmatprep.subr.mxu0 0.0
  %772 = vmatpush1.msra.mxu0 0.0
  %773 = vmatprep.subr.mxu0 0.0
  %774 = vmatpush1.msra.mxu0 0.0
  %775 = vmatprep.subr.mxu0 0.0
  %776 = vmatpush1.msra.mxu0 0.0
  %777 = vmatprep.subr.mxu0 0.0
  %778 = vmatpush1.msra.mxu0 0.0
  %779 = vmatprep.subr.mxu0 0.0
  %780 = vmatpush1.msra.mxu0 0.0
  %781 = vmatprep.subr.mxu0 0.0
  %782 = vmatpush1.msra.mxu0 0.0
  %783 = vmatprep.subr.mxu0 0.0
  %784 = vmatpush1.msra.mxu0 0.0
  %785 = vmatprep.subr.mxu0 0.0
  %786 = vmatpush1.msra.mxu0 0.0
  %787 = vmatprep.subr.mxu0 0.0
  %788 = vmatpush1.msra.mxu0 0.0
  %789 = vmatprep.subr.mxu0 0.0
  %790 = vmatpush1.msra.mxu0 0.0
  %791 = vmatprep.subr.mxu0 0.0
  %792 = vmatpush1.msra.mxu0 0.0
  %793 = vmatprep.subr.mxu0 0.0
  %794 = vmatpush1.msra.mxu0 0.0
  %795 = vmatprep.subr.mxu0 0.0
  %796 = vmatpush1.msra.mxu0 0.0
  %797 = vmatprep.subr.mxu0 0.0
  %798 = vmatpush1.msra.mxu0 0.0
  %799 = vmatprep.subr.mxu0 0.0
  %800 = vmatpush1.msra.mxu0 0.0
  %801 = vmatprep.subr.mxu0 0.0
  %802 = vmatpush1.msra.mxu0 0.0
  %803 = vmatprep.subr.mxu0 0.0
  %804 = vmatpush1.msra.mxu0 0.0
  %805 = vmatprep.subr.mxu0 0.0
  %806 = vmatpush1.msra.mxu0 0.0
  %807 = vmatprep.subr.mxu0 0.0
  %808 = vmatpush1.msra.mxu0 0.0
  %809 = vmatprep.subr.mxu0 0.0
  %810 = vmatpush1.msra.mxu0 0.0
  %811 = vmatprep.subr.mxu0 0.0
  %812 = vmatpush1.msra.mxu0 0.0
  %813 = vmatprep.mubr.f32.mxu0 0.0
  %814 = vmatmul.mubr.f32.gmra.mrb[0].mxu0 %v741
  %v815 = vpop.f32.mrb[0].mxu0
  %v816 = vadd.f32 %v739, %v815
  %v817 = vpop.f32.mrb[0].mxu0
  %818 = vmatprep.mubr.f32.mxu0 0.0
  %819 = vmatmul.mubr.f32.gmra.mrb[0].mxu0 %v744
  %v820 = vpop.f32.mrb[0].mxu0
  %v821 = vadd.f32 %v739, %v820
  %v822 = vpop.f32.mrb[0].mxu0
  %823 = vmatprep.mubr.f32.mxu0 0.0
  %824 = vmatmul.mubr.f32.gmra.mrb[0].mxu0 %v747
  %v825 = vpop.f32.mrb[0].mxu0
  %v826 = vadd.f32 %v739, %v825
  %v827 = vpop.f32.mrb[0].mxu0
  %828 = vdwg.mxu0
  %v829 = vadd.f32 %v276, %v816
  %v830 = vadd.f32 %v277, %v821
  %v831 = vadd.f32 %v278, %v826
  %v832 = vld [vmem:[%s1 + $0x180] sm:$0x1]
  %v833 = vld [vmem:[%s1 + $0x188] sm:$0x1]
  %v834 = vsel %vm85, %v829, 0.0
  %835 = vadd.xlane.f32.xlu0 %v834
  %v836 = vpop.xlane.xlu0 %835
  %v837 = vsel %vm85, %v830, 0.0
  %838 = vadd.xlane.f32.xlu0 %v837
  %v839 = vpop.xlane.xlu0 %838
  %v840 = vsel %vm85, %v831, 0.0
  %841 = vadd.xlane.f32.xlu0 %v840
  %v842 = vpop.xlane.xlu0 %841
  %v843 = vrcp.pop 32.0
  %v844 = vmul.f32 %v836, %v843
  %v845 = vmul.f32 %v839, %v843
  %v846 = vmul.f32 %v842, %v843
  %v847 = vsub.f32 %v829, %v844
  %v848 = vsub.f32 %v830, %v845
  %v849 = vsub.f32 %v831, %v846
  %v850 = vmul.f32 %v847, %v847
  %v851 = vmul.f32 %v848, %v848
  %v852 = vmul.f32 %v849, %v849
  %v853 = vsel %vm85, %v850, 0.0
  %854 = vadd.xlane.f32.xlu0 %v853
  %v855 = vpop.xlane.xlu0 %854
  %v856 = vsel %vm85, %v851, 0.0
  %857 = vadd.xlane.f32.xlu0 %v856
  %v858 = vpop.xlane.xlu0 %857
  %v859 = vsel %vm85, %v852, 0.0
  %860 = vadd.xlane.f32.xlu0 %v859
  %v861 = vpop.xlane.xlu0 %860
  %v862 = vmul.f32 %v855, %v843
  %v863 = vmul.f32 %v858, %v843
  %v864 = vmul.f32 %v861, %v843
  %v865 = vadd.f32 %v862, 1e-05
  %v866 = vadd.f32 %v863, 1e-05
  %v867 = vadd.f32 %v864, 1e-05
  %v868 = vrsqrt.pop %v865
  %v869 = vrsqrt.pop %v866
  %v870 = vrsqrt.pop %v867
  %v871 = vmul.f32 %v847, %v868
  %v872 = vmul.f32 %v848, %v869
  %v873 = vmul.f32 %v849, %v870
  %v874 = vlaneseq
  %v875 = vshrl.u32 %v874, 7
  %v876 = vsub.s32 0, %v875
  %v877 = vrot.slane %v832, %v876
  %v878 = vmul.f32 %v871, %v877
  %v879 = vmul.f32 %v872, %v877
  %v880 = vmul.f32 %v873, %v877
  %v881 = vlaneseq
  %v882 = vshrl.u32 %v881, 7
  %v883 = vsub.s32 0, %v882
  %v884 = vrot.slane %v833, %v883
  %v885 = vadd.f32 %v878, %v884
  %v886 = vadd.f32 %v879, %v884
  %v887 = vadd.f32 %v880, %v884
  %v888 = vld [vmem:[%s1 + $0x110] sm:$0xff]
  %v889 = vld [vmem:[%s1 + $0x118] sm:$0xff]
  %v890 = vld [vmem:[%s1 + $0x120] sm:$0xff]
  %v891 = vld [vmem:[%s1 + $0x128] sm:$0xff]
  %v892 = vld [vmem:[%s1 + $0x130] sm:$0x1]
  %v893 = vlaneseq
  %v894 = vshrl.u32 %v893, 7
  %v895 = vsub.s32 0, %v894
  %v896 = vrot.slane %v892, %v895
  %v898 = vsel %vm85, %v885, 0
  %v901 = vsel %vm85, %v886, 0
  %v904 = vsel %vm85, %v887, 0
  %906 = vmatprep.subr.mxu0 0.0
  %907 = vmatpush1.msra.mxu0 %v888
  %908 = vmatprep.subr.mxu0 0.0
  %909 = vmatpush1.msra.mxu0 %v889
  %910 = vmatprep.subr.mxu0 0.0
  %911 = vmatpush1.msra.mxu0 %v890
  %912 = vmatprep.subr.mxu0 0.0
  %913 = vmatpush1.msra.mxu0 %v891
  %914 = vmatprep.subr.mxu0 0.0
  %915 = vmatpush1.msra.mxu0 0.0
  %916 = vmatprep.subr.mxu0 0.0
  %917 = vmatpush1.msra.mxu0 0.0
  %918 = vmatprep.subr.mxu0 0.0
  %919 = vmatpush1.msra.mxu0 0.0
  %920 = vmatprep.subr.mxu0 0.0
  %921 = vmatpush1.msra.mxu0 0.0
  %922 = vmatprep.subr.mxu0 0.0
  %923 = vmatpush1.msra.mxu0 0.0
  %924 = vmatprep.subr.mxu0 0.0
  %925 = vmatpush1.msra.mxu0 0.0
  %926 = vmatprep.subr.mxu0 0.0
  %927 = vmatpush1.msra.mxu0 0.0
  %928 = vmatprep.subr.mxu0 0.0
  %929 = vmatpush1.msra.mxu0 0.0
  %930 = vmatprep.subr.mxu0 0.0
  %931 = vmatpush1.msra.mxu0 0.0
  %932 = vmatprep.subr.mxu0 0.0
  %933 = vmatpush1.msra.mxu0 0.0
  %934 = vmatprep.subr.mxu0 0.0
  %935 = vmatpush1.msra.mxu0 0.0
  %936 = vmatprep.subr.mxu0 0.0
  %937 = vmatpush1.msra.mxu0 0.0
  %938 = vmatprep.subr.mxu0 0.0
  %939 = vmatpush1.msra.mxu0 0.0
  %940 = vmatprep.subr.mxu0 0.0
  %941 = vmatpush1.msra.mxu0 0.0
  %942 = vmatprep.subr.mxu0 0.0
  %943 = vmatpush1.msra.mxu0 0.0
  %944 = vmatprep.subr.mxu0 0.0
  %945 = vmatpush1.msra.mxu0 0.0
  %946 = vmatprep.subr.mxu0 0.0
  %947 = vmatpush1.msra.mxu0 0.0
  %948 = vmatprep.subr.mxu0 0.0
  %949 = vmatpush1.msra.mxu0 0.0
  %950 = vmatprep.subr.mxu0 0.0
  %951 = vmatpush1.msra.mxu0 0.0
  %952 = vmatprep.subr.mxu0 0.0
  %953 = vmatpush1.msra.mxu0 0.0
  %954 = vmatprep.subr.mxu0 0.0
  %955 = vmatpush1.msra.mxu0 0.0
  %956 = vmatprep.subr.mxu0 0.0
  %957 = vmatpush1.msra.mxu0 0.0
  %958 = vmatprep.subr.mxu0 0.0
  %959 = vmatpush1.msra.mxu0 0.0
  %960 = vmatprep.subr.mxu0 0.0
  %961 = vmatpush1.msra.mxu0 0.0
  %962 = vmatprep.subr.mxu0 0.0
  %963 = vmatpush1.msra.mxu0 0.0
  %964 = vmatprep.subr.mxu0 0.0
  %965 = vmatpush1.msra.mxu0 0.0
  %966 = vmatprep.subr.mxu0 0.0
  %967 = vmatpush1.msra.mxu0 0.0
  %968 = vmatprep.subr.mxu0 0.0
  %969 = vmatpush1.msra.mxu0 0.0
  %970 = vmatprep.mubr.f32.mxu0 0.0
  %971 = vmatmul.mubr.f32.gmra.mrb[0].mxu0 %v898
  %v972 = vpop.f32.mrb[0].mxu0
  %v973 = vadd.f32 %v896, %v972
  %v974 = vpop.f32.mrb[0].mxu0
  %975 = vmatprep.mubr.f32.mxu0 0.0
  %976 = vmatmul.mubr.f32.gmra.mrb[0].mxu0 %v901
  %v977 = vpop.f32.mrb[0].mxu0
  %v978 = vadd.f32 %v896, %v977
  %v979 = vpop.f32.mrb[0].mxu0
  %980 = vmatprep.mubr.f32.mxu0 0.0
  %981 = vmatmul.mubr.f32.gmra.mrb[0].mxu0 %v904
  %v982 = vpop.f32.mrb[0].mxu0
  %v983 = vadd.f32 %v896, %v982
  %v984 = vpop.f32.mrb[0].mxu0
  %985 = vdwg.mxu0
  %v986 = vmax.f32 %v973, 0.0
  %v987 = vmax.f32 %v978, 0.0
  %v988 = vmax.f32 %v983, 0.0
  %v989 = vld [vmem:[%s1 + $0x138] sm:$0xff]
  %v990 = vld [vmem:[%s1 + $0x140] sm:$0xff]
  %v991 = vld [vmem:[%s1 + $0x148] sm:$0xff]
  %v992 = vld [vmem:[%s1 + $0x150] sm:$0xff]
  %v993 = vld [vmem:[%s1 + $0x158] sm:$0xff]
  %v994 = vld [vmem:[%s1 + $0x160] sm:$0xff]
  %v995 = vld [vmem:[%s1 + $0x168] sm:$0xff]
  %v996 = vld [vmem:[%s1 + $0x170] sm:$0xff]
  %v997 = vld [vmem:[%s1 + $0x178] sm:$0x1]
  %v998 = vlaneseq
  %v999 = vshrl.u32 %v998, 7
  %v1000 = vsub.s32 0, %v999
  %v1001 = vrot.slane %v997, %v1000
  %vm1002 = vcmask 523264
  %v1004 = vsel %vm1002, %v986, 0
  %v1007 = vsel %vm1002, %v987, 0
  %v1010 = vsel %vm1002, %v988, 0
  %1012 = vmatprep.subr.mxu0 0.0
  %1013 = vmatpush1.msra.mxu0 %v989
  %1014 = vmatprep.subr.mxu0 0.0
  %1015 = vmatpush1.msra.mxu0 %v990
  %1016 = vmatprep.subr.mxu0 0.0
  %1017 = vmatpush1.msra.mxu0 %v991
  %1018 = vmatprep.subr.mxu0 0.0
  %1019 = vmatpush1.msra.mxu0 %v992
  %1020 = vmatprep.subr.mxu0 0.0
  %1021 = vmatpush1.msra.mxu0 %v993
  %1022 = vmatprep.subr.mxu0 0.0
  %1023 = vmatpush1.msra.mxu0 %v994
  %1024 = vmatprep.subr.mxu0 0.0
  %1025 = vmatpush1.msra.mxu0 %v995
  %1026 = vmatprep.subr.mxu0 0.0
  %1027 = vmatpush1.msra.mxu0 %v996
  %1028 = vmatprep.subr.mxu0 0.0
  %1029 = vmatpush1.msra.mxu0 0.0
  %1030 = vmatprep.subr.mxu0 0.0
  %1031 = vmatpush1.msra.mxu0 0.0
  %1032 = vmatprep.subr.mxu0 0.0
  %1033 = vmatpush1.msra.mxu0 0.0
  %1034 = vmatprep.subr.mxu0 0.0
  %1035 = vmatpush1.msra.mxu0 0.0
  %1036 = vmatprep.subr.mxu0 0.0
  %1037 = vmatpush1.msra.mxu0 0.0
  %1038 = vmatprep.subr.mxu0 0.0
  %1039 = vmatpush1.msra.mxu0 0.0
  %1040 = vmatprep.subr.mxu0 0.0
  %1041 = vmatpush1.msra.mxu0 0.0
  %1042 = vmatprep.subr.mxu0 0.0
  %1043 = vmatpush1.msra.mxu0 0.0
  %1044 = vmatprep.subr.mxu0 0.0
  %1045 = vmatpush1.msra.mxu0 0.0
  %1046 = vmatprep.subr.mxu0 0.0
  %1047 = vmatpush1.msra.mxu0 0.0
  %1048 = vmatprep.subr.mxu0 0.0
  %1049 = vmatpush1.msra.mxu0 0.0
  %1050 = vmatprep.subr.mxu0 0.0
  %1051 = vmatpush1.msra.mxu0 0.0
  %1052 = vmatprep.subr.mxu0 0.0
  %1053 = vmatpush1.msra.mxu0 0.0
  %1054 = vmatprep.subr.mxu0 0.0
  %1055 = vmatpush1.msra.mxu0 0.0
  %1056 = vmatprep.subr.mxu0 0.0
  %1057 = vmatpush1.msra.mxu0 0.0
  %1058 = vmatprep.subr.mxu0 0.0
  %1059 = vmatpush1.msra.mxu0 0.0
  %1060 = vmatprep.subr.mxu0 0.0
  %1061 = vmatpush1.msra.mxu0 0.0
  %1062 = vmatprep.subr.mxu0 0.0
  %1063 = vmatpush1.msra.mxu0 0.0
  %1064 = vmatprep.subr.mxu0 0.0
  %1065 = vmatpush1.msra.mxu0 0.0
  %1066 = vmatprep.subr.mxu0 0.0
  %1067 = vmatpush1.msra.mxu0 0.0
  %1068 = vmatprep.subr.mxu0 0.0
  %1069 = vmatpush1.msra.mxu0 0.0
  %1070 = vmatprep.subr.mxu0 0.0
  %1071 = vmatpush1.msra.mxu0 0.0
  %1072 = vmatprep.subr.mxu0 0.0
  %1073 = vmatpush1.msra.mxu0 0.0
  %1074 = vmatprep.subr.mxu0 0.0
  %1075 = vmatpush1.msra.mxu0 0.0
  %1076 = vmatprep.mubr.f32.mxu0 0.0
  %1077 = vmatmul.mubr.f32.gmra.mrb[0].mxu0 %v1004
  %v1078 = vpop.f32.mrb[0].mxu0
  %v1079 = vadd.f32 %v1001, %v1078
  %v1080 = vpop.f32.mrb[0].mxu0
  %1081 = vmatprep.mubr.f32.mxu0 0.0
  %1082 = vmatmul.mubr.f32.gmra.mrb[0].mxu0 %v1007
  %v1083 = vpop.f32.mrb[0].mxu0
  %v1084 = vadd.f32 %v1001, %v1083
  %v1085 = vpop.f32.mrb[0].mxu0
  %1086 = vmatprep.mubr.f32.mxu0 0.0
  %1087 = vmatmul.mubr.f32.gmra.mrb[0].mxu0 %v1010
  %v1088 = vpop.f32.mrb[0].mxu0
  %v1089 = vadd.f32 %v1001, %v1088
  %v1090 = vpop.f32.mrb[0].mxu0
  %1091 = vdwg.mxu0
  %v1092 = vadd.f32 %v885, %v1079
  %v1093 = vadd.f32 %v886, %v1084
  %v1094 = vadd.f32 %v887, %v1089
  %v1095 = vld [vmem:[%s1 + $0x190] sm:$0x1]
  %v1096 = vld [vmem:[%s1 + $0x198] sm:$0x1]
  %v1097 = vsel %vm85, %v1092, 0.0
  %1098 = vadd.xlane.f32.xlu0 %v1097
  %v1099 = vpop.xlane.xlu0 %1098
  %v1100 = vsel %vm85, %v1093, 0.0
  %1101 = vadd.xlane.f32.xlu0 %v1100
  %v1102 = vpop.xlane.xlu0 %1101
  %v1103 = vsel %vm85, %v1094, 0.0
  %1104 = vadd.xlane.f32.xlu0 %v1103
  %v1105 = vpop.xlane.xlu0 %1104
  %v1106 = vmul.f32 %v1099, %v843
  %v1107 = vmul.f32 %v1102, %v843
  %v1108 = vmul.f32 %v1105, %v843
  %v1109 = vsub.f32 %v1092, %v1106
  %v1110 = vsub.f32 %v1093, %v1107
  %v1111 = vsub.f32 %v1094, %v1108
  %v1112 = vmul.f32 %v1109, %v1109
  %v1113 = vmul.f32 %v1110, %v1110
  %v1114 = vmul.f32 %v1111, %v1111
  %v1115 = vsel %vm85, %v1112, 0.0
  %1116 = vadd.xlane.f32.xlu0 %v1115
  %v1117 = vpop.xlane.xlu0 %1116
  %v1118 = vsel %vm85, %v1113, 0.0
  %1119 = vadd.xlane.f32.xlu0 %v1118
  %v1120 = vpop.xlane.xlu0 %1119
  %v1121 = vsel %vm85, %v1114, 0.0
  %1122 = vadd.xlane.f32.xlu0 %v1121
  %v1123 = vpop.xlane.xlu0 %1122
  %v1124 = vmul.f32 %v1117, %v843
  %v1125 = vmul.f32 %v1120, %v843
  %v1126 = vmul.f32 %v1123, %v843
  %v1127 = vadd.f32 %v1124, 1e-05
  %v1128 = vadd.f32 %v1125, 1e-05
  %v1129 = vadd.f32 %v1126, 1e-05
  %v1130 = vrsqrt.pop %v1127
  %v1131 = vrsqrt.pop %v1128
  %v1132 = vrsqrt.pop %v1129
  %v1133 = vmul.f32 %v1109, %v1130
  %v1134 = vmul.f32 %v1110, %v1131
  %v1135 = vmul.f32 %v1111, %v1132
  %v1136 = vlaneseq
  %v1137 = vshrl.u32 %v1136, 7
  %v1138 = vsub.s32 0, %v1137
  %v1139 = vrot.slane %v1095, %v1138
  %v1140 = vmul.f32 %v1133, %v1139
  %v1141 = vmul.f32 %v1134, %v1139
  %v1142 = vmul.f32 %v1135, %v1139
  %v1143 = vlaneseq
  %v1144 = vshrl.u32 %v1143, 7
  %v1145 = vsub.s32 0, %v1144
  %v1146 = vrot.slane %v1096, %v1145
  %v1147 = vadd.f32 %v1140, %v1146
  %v1148 = vadd.f32 %v1141, %v1146
  %v1149 = vadd.f32 %v1142, %v1146
  %v1150 = vld [vmem:[%s1 + $0x1a0] sm:$0xff]
  %v1151 = vld [vmem:[%s1 + $0x1a8] sm:$0xff]
  %v1152 = vld [vmem:[%s1 + $0x1b0] sm:$0xff]
  %v1153 = vld [vmem:[%s1 + $0x1b8] sm:$0xff]
  %v1154 = vld [vmem:[%s1 + $0x1c0] sm:$0x1]
  %v1155 = vlaneseq
  %v1156 = vshrl.u32 %v1155, 7
  %v1157 = vsub.s32 0, %v1156
  %v1158 = vrot.slane %v1154, %v1157
  %v1160 = vsel %vm85, %v1147, 0
  %v1163 = vsel %vm85, %v1148, 0
  %v1166 = vsel %vm85, %v1149, 0
  %1168 = vmatprep.subr.mxu0 0.0
  %1169 = vmatpush1.msra.mxu0 %v1150
  %1170 = vmatprep.subr.mxu0 0.0
  %1171 = vmatpush1.msra.mxu0 %v1151
  %1172 = vmatprep.subr.mxu0 0.0
  %1173 = vmatpush1.msra.mxu0 %v1152
  %1174 = vmatprep.subr.mxu0 0.0
  %1175 = vmatpush1.msra.mxu0 %v1153
  %1176 = vmatprep.subr.mxu0 0.0
  %1177 = vmatpush1.msra.mxu0 0.0
  %1178 = vmatprep.subr.mxu0 0.0
  %1179 = vmatpush1.msra.mxu0 0.0
  %1180 = vmatprep.subr.mxu0 0.0
  %1181 = vmatpush1.msra.mxu0 0.0
  %1182 = vmatprep.subr.mxu0 0.0
  %1183 = vmatpush1.msra.mxu0 0.0
  %1184 = vmatprep.subr.mxu0 0.0
  %1185 = vmatpush1.msra.mxu0 0.0
  %1186 = vmatprep.subr.mxu0 0.0
  %1187 = vmatpush1.msra.mxu0 0.0
  %1188 = vmatprep.subr.mxu0 0.0
  %1189 = vmatpush1.msra.mxu0 0.0
  %1190 = vmatprep.subr.mxu0 0.0
  %1191 = vmatpush1.msra.mxu0 0.0
  %1192 = vmatprep.subr.mxu0 0.0
  %1193 = vmatpush1.msra.mxu0 0.0
  %1194 = vmatprep.subr.mxu0 0.0
  %1195 = vmatpush1.msra.mxu0 0.0
  %1196 = vmatprep.subr.mxu0 0.0
  %1197 = vmatpush1.msra.mxu0 0.0
  %1198 = vmatprep.subr.mxu0 0.0
  %1199 = vmatpush1.msra.mxu0 0.0
  %1200 = vmatprep.subr.mxu0 0.0
  %1201 = vmatpush1.msra.mxu0 0.0
  %1202 = vmatprep.subr.mxu0 0.0
  %1203 = vmatpush1.msra.mxu0 0.0
  %1204 = vmatprep.subr.mxu0 0.0
  %1205 = vmatpush1.msra.mxu0 0.0
  %1206 = vmatprep.subr.mxu0 0.0
  %1207 = vmatpush1.msra.mxu0 0.0
  %1208 = vmatprep.subr.mxu0 0.0
  %1209 = vmatpush1.msra.mxu0 0.0
  %1210 = vmatprep.subr.mxu0 0.0
  %1211 = vmatpush1.msra.mxu0 0.0
  %1212 = vmatprep.subr.mxu0 0.0
  %1213 = vmatpush1.msra.mxu0 0.0
  %1214 = vmatprep.subr.mxu0 0.0
  %1215 = vmatpush1.msra.mxu0 0.0
  %1216 = vmatprep.subr.mxu0 0.0
  %1217 = vmatpush1.msra.mxu0 0.0
  %1218 = vmatprep.subr.mxu0 0.0
  %1219 = vmatpush1.msra.mxu0 0.0
  %1220 = vmatprep.subr.mxu0 0.0
  %1221 = vmatpush1.msra.mxu0 0.0
  %1222 = vmatprep.subr.mxu0 0.0
  %1223 = vmatpush1.msra.mxu0 0.0
  %1224 = vmatprep.subr.mxu0 0.0
  %1225 = vmatpush1.msra.mxu0 0.0
  %1226 = vmatprep.subr.mxu0 0.0
  %1227 = vmatpush1.msra.mxu0 0.0
  %1228 = vmatprep.subr.mxu0 0.0
  %1229 = vmatpush1.msra.mxu0 0.0
  %1230 = vmatprep.subr.mxu0 0.0
  %1231 = vmatpush1.msra.mxu0 0.0
  %1232 = vmatprep.mubr.f32.mxu0 0.0
  %1233 = vmatmul.mubr.f32.gmra.mrb[0].mxu0 %v1160
  %v1234 = vpop.f32.mrb[0].mxu0
  %v1235 = vadd.f32 %v1158, %v1234
  %v1236 = vpop.f32.mrb[0].mxu0
  %1237 = vmatprep.mubr.f32.mxu0 0.0
  %1238 = vmatmul.mubr.f32.gmra.mrb[0].mxu0 %v1163
  %v1239 = vpop.f32.mrb[0].mxu0
  %v1240 = vadd.f32 %v1158, %v1239
  %v1241 = vpop.f32.mrb[0].mxu0
  %1242 = vmatprep.mubr.f32.mxu0 0.0
  %1243 = vmatmul.mubr.f32.gmra.mrb[0].mxu0 %v1166
  %v1244 = vpop.f32.mrb[0].mxu0
  %v1245 = vadd.f32 %v1158, %v1244
  %v1246 = vpop.f32.mrb[0].mxu0
  %1247 = vdwg.mxu0
  %1248 = vrot.lane.b32.xlu0 %v1235, 96
  %v1249 = vpop.permute.xlu0 %1248
  %1250 = vrot.lane.b32.xlu0 %v1240, 96
  %v1251 = vpop.permute.xlu0 %1250
  %1252 = vrot.lane.b32.xlu0 %v1245, 96
  %v1253 = vpop.permute.xlu0 %1252
  %1254 = vrot.lane.b32.xlu0 %v1235, 64
  %v1255 = vpop.permute.xlu0 %1254
  %1256 = vrot.lane.b32.xlu0 %v1240, 64
  %v1257 = vpop.permute.xlu0 %1256
  %1258 = vrot.lane.b32.xlu0 %v1245, 64
  %v1259 = vpop.permute.xlu0 %1258
  %v1260 = vld [vmem:[%s1 + $0x1c8] sm:$0xff]
  %v1261 = vld [vmem:[%s1 + $0x1d0] sm:$0xff]
  %v1262 = vld [vmem:[%s1 + $0x1d8] sm:$0xff]
  %v1263 = vld [vmem:[%s1 + $0x1e0] sm:$0xff]
  %v1264 = vld [vmem:[%s1 + $0x1e8] sm:$0x1]
  %v1265 = vmul.f32 %v1249, %v17
  %v1266 = vmul.f32 %v1251, %v17
  %v1267 = vmul.f32 %v1253, %v17
  %v1268 = vmul.f32 %v1249, %v22
  %v1269 = vmul.f32 %v1251, %v22
  %v1270 = vmul.f32 %v1253, %v22
  %v1271 = vmul.f32 %v1249, %v27
  %v1272 = vmul.f32 %v1251, %v27
  %v1273 = vmul.f32 %v1253, %v27
  %v1274 = vmul.f32 %v1249, %v32
  %v1275 = vmul.f32 %v1251, %v32
  %v1276 = vmul.f32 %v1253, %v32
  %v1277 = vmul.f32 %v1255, %v17
  %v1278 = vmul.f32 %v1257, %v17
  %v1279 = vmul.f32 %v1259, %v17
  %v1280 = vmul.f32 %v1255, %v22
  %v1281 = vmul.f32 %v1257, %v22
  %v1282 = vmul.f32 %v1259, %v22
  %v1283 = vmul.f32 %v1255, %v27
  %v1284 = vmul.f32 %v1257, %v27
  %v1285 = vmul.f32 %v1259, %v27
  %v1286 = vmul.f32 %v1255, %v32
  %v1287 = vmul.f32 %v1257, %v32
  %v1288 = vmul.f32 %v1259, %v32
  %v1290 = vsel %vm85, %v1235, 0
  %v1293 = vsel %vm85, %v1240, 0
  %v1296 = vsel %vm85, %v1245, 0
  %v1299 = vsel %vm85, %v1265, 0
  %v1302 = vsel %vm85, %v1266, 0
  %v1305 = vsel %vm85, %v1267, 0
  %v1308 = vsel %vm85, %v1268, 0
  %v1311 = vsel %vm85, %v1269, 0
  %v1314 = vsel %vm85, %v1270, 0
  %v1317 = vsel %vm85, %v1271, 0
  %v1320 = vsel %vm85, %v1272, 0
  %v1323 = vsel %vm85, %v1273, 0
  %v1326 = vsel %vm85, %v1274, 0
  %v1329 = vsel %vm85, %v1275, 0
  %v1332 = vsel %vm85, %v1276, 0
  %1334 = vmatprep.subr.mxu0 0.0
  %1335 = vmatpush1.xpose.msra.mxu0 %v1299
  %1336 = vmatprep.subr.mxu0 0.0
  %1337 = vmatpush1.xpose.msra.mxu0 %v1302
  %1338 = vmatprep.subr.mxu0 0.0
  %1339 = vmatpush1.xpose.msra.mxu0 %v1305
  %1340 = vmatprep.subr.mxu0 0.0
  %1341 = vmatpush1.xpose.msra.mxu0 %v437
  %1342 = vmatprep.subr.mxu0 0.0
  %1343 = vmatpush1.xpose.msra.mxu0 %v1308
  %1344 = vmatprep.subr.mxu0 0.0
  %1345 = vmatpush1.xpose.msra.mxu0 %v1311
  %1346 = vmatprep.subr.mxu0 0.0
  %1347 = vmatpush1.xpose.msra.mxu0 %v1314
  %1348 = vmatprep.subr.mxu0 0.0
  %1349 = vmatpush1.xpose.msra.mxu0 %v437
  %1350 = vmatprep.subr.mxu0 0.0
  %1351 = vmatpush1.xpose.msra.mxu0 %v1317
  %1352 = vmatprep.subr.mxu0 0.0
  %1353 = vmatpush1.xpose.msra.mxu0 %v1320
  %1354 = vmatprep.subr.mxu0 0.0
  %1355 = vmatpush1.xpose.msra.mxu0 %v1323
  %1356 = vmatprep.subr.mxu0 0.0
  %1357 = vmatpush1.xpose.msra.mxu0 %v437
  %1358 = vmatprep.subr.mxu0 0.0
  %1359 = vmatpush1.xpose.msra.mxu0 %v1326
  %1360 = vmatprep.subr.mxu0 0.0
  %1361 = vmatpush1.xpose.msra.mxu0 %v1329
  %1362 = vmatprep.subr.mxu0 0.0
  %1363 = vmatpush1.xpose.msra.mxu0 %v1332
  %1364 = vmatprep.subr.mxu0 0.0
  %1365 = vmatpush1.xpose.msra.mxu0 %v437
  %1366 = vmatprep.subr.mxu0 0.0
  %1367 = vmatpush1.xpose.msra.mxu0 0.0
  %1368 = vmatprep.subr.mxu0 0.0
  %1369 = vmatpush1.xpose.msra.mxu0 0.0
  %1370 = vmatprep.subr.mxu0 0.0
  %1371 = vmatpush1.xpose.msra.mxu0 0.0
  %1372 = vmatprep.subr.mxu0 0.0
  %1373 = vmatpush1.xpose.msra.mxu0 0.0
  %1374 = vmatprep.subr.mxu0 0.0
  %1375 = vmatpush1.xpose.msra.mxu0 0.0
  %1376 = vmatprep.subr.mxu0 0.0
  %1377 = vmatpush1.xpose.msra.mxu0 0.0
  %1378 = vmatprep.subr.mxu0 0.0
  %1379 = vmatpush1.xpose.msra.mxu0 0.0
  %1380 = vmatprep.subr.mxu0 0.0
  %1381 = vmatpush1.xpose.msra.mxu0 0.0
  %1382 = vmatprep.subr.mxu0 0.0
  %1383 = vmatpush1.xpose.msra.mxu0 0.0
  %1384 = vmatprep.subr.mxu0 0.0
  %1385 = vmatpush1.xpose.msra.mxu0 0.0
  %1386 = vmatprep.subr.mxu0 0.0
  %1387 = vmatpush1.xpose.msra.mxu0 0.0
  %1388 = vmatprep.subr.mxu0 0.0
  %1389 = vmatpush1.xpose.msra.mxu0 0.0
  %1390 = vmatprep.subr.mxu0 0.0
  %1391 = vmatpush1.xpose.msra.mxu0 0.0
  %1392 = vmatprep.subr.mxu0 0.0
  %1393 = vmatpush1.xpose.msra.mxu0 0.0
  %1394 = vmatprep.subr.mxu0 0.0
  %1395 = vmatpush1.xpose.msra.mxu0 0.0
  %1396 = vmatprep.subr.mxu0 0.0
  %1397 = vmatpush1.xpose.msra.mxu0 0.0
  %1398 = vmatprep.mubr.f32.mxu0 0.0
  %1399 = vmatmul.mubr.f32.gmra.mrb[0].mxu0 %v1290
  %v1400 = vpop.f32.mrb[0].mxu0
  %v1401 = vadd.f32 0.0, %v1400
  %v1402 = vpop.f32.mrb[0].mxu0
  %1403 = vmatprep.mubr.f32.mxu0 0.0
  %1404 = vmatmul.mubr.f32.gmra.mrb[0].mxu0 %v1293
  %v1405 = vpop.f32.mrb[0].mxu0
  %v1406 = vadd.f32 0.0, %v1405
  %v1407 = vpop.f32.mrb[0].mxu0
  %1408 = vmatprep.mubr.f32.mxu0 0.0
  %1409 = vmatmul.mubr.f32.gmra.mrb[0].mxu0 %v1296
  %v1410 = vpop.f32.mrb[0].mxu0
  %v1411 = vadd.f32 0.0, %v1410
  %v1412 = vpop.f32.mrb[0].mxu0
  %1413 = vdwg.mxu0
  %v1414 = vmul.f32 %v1401, 0.35355338
  %v1415 = vmul.f32 %v1406, 0.35355338
  %v1416 = vmul.f32 %v1411, 0.35355338
  %v1417 = vadd.f32 %v1414, %v52
  %v1418 = vadd.f32 %v1415, %v53
  %v1419 = vadd.f32 %v1416, %v54
  %1420 = vmax.xlane.f32.xlu0 %v1417
  %v1421 = vpop.xlane.xlu0 %1420
  %1422 = vmax.xlane.f32.xlu0 %v1418
  %v1423 = vpop.xlane.xlu0 %1422
  %1424 = vmax.xlane.f32.xlu0 %v1419
  %v1425 = vpop.xlane.xlu0 %1424
  %v1426 = vsub.f32 %v1417, %v1421
  %v1427 = vsub.f32 %v1418, %v1423
  %v1428 = vsub.f32 %v1419, %v1425
  %v1429 = vmul.f32 %v1426, 1.442695
  %v1430 = vpow.pop %v1429
  %v1431 = vmul.f32 %v1427, 1.442695
  %v1432 = vpow.pop %v1431
  %v1433 = vmul.f32 %v1428, 1.442695
  %v1434 = vpow.pop %v1433
  %1435 = vmatprep.subr.mxu0 0.0
  %1436 = vmatpush1.msra.mxu0 %v1277
  %1437 = vmatprep.subr.mxu0 0.0
  %1438 = vmatpush1.msra.mxu0 %v1278
  %1439 = vmatprep.subr.mxu0 0.0
  %1440 = vmatpush1.msra.mxu0 %v1279
  %1441 = vmatprep.subr.mxu0 0.0
  %1442 = vmatpush1.msra.mxu0 0.0
  %1443 = vmatprep.subr.mxu0 0.0
  %1444 = vmatpush1.msra.mxu0 %v1280
  %1445 = vmatprep.subr.mxu0 0.0
  %1446 = vmatpush1.msra.mxu0 %v1281
  %1447 = vmatprep.subr.mxu0 0.0
  %1448 = vmatpush1.msra.mxu0 %v1282
  %1449 = vmatprep.subr.mxu0 0.0
  %1450 = vmatpush1.msra.mxu0 0.0
  %1451 = vmatprep.subr.mxu0 0.0
  %1452 = vmatpush1.msra.mxu0 %v1283
  %1453 = vmatprep.subr.mxu0 0.0
  %1454 = vmatpush1.msra.mxu0 %v1284
  %1455 = vmatprep.subr.mxu0 0.0
  %1456 = vmatpush1.msra.mxu0 %v1285
  %1457 = vmatprep.subr.mxu0 0.0
  %1458 = vmatpush1.msra.mxu0 0.0
  %1459 = vmatprep.subr.mxu0 0.0
  %1460 = vmatpush1.msra.mxu0 %v1286
  %1461 = vmatprep.subr.mxu0 0.0
  %1462 = vmatpush1.msra.mxu0 %v1287
  %1463 = vmatprep.subr.mxu0 0.0
  %1464 = vmatpush1.msra.mxu0 %v1288
  %1465 = vmatprep.subr.mxu0 0.0
  %1466 = vmatpush1.msra.mxu0 0.0
  %1467 = vmatprep.subr.mxu0 0.0
  %1468 = vmatpush1.msra.mxu0 0.0
  %1469 = vmatprep.subr.mxu0 0.0
  %1470 = vmatpush1.msra.mxu0 0.0
  %1471 = vmatprep.subr.mxu0 0.0
  %1472 = vmatpush1.msra.mxu0 0.0
  %1473 = vmatprep.subr.mxu0 0.0
  %1474 = vmatpush1.msra.mxu0 0.0
  %1475 = vmatprep.subr.mxu0 0.0
  %1476 = vmatpush1.msra.mxu0 0.0
  %1477 = vmatprep.subr.mxu0 0.0
  %1478 = vmatpush1.msra.mxu0 0.0
  %1479 = vmatprep.subr.mxu0 0.0
  %1480 = vmatpush1.msra.mxu0 0.0
  %1481 = vmatprep.subr.mxu0 0.0
  %1482 = vmatpush1.msra.mxu0 0.0
  %1483 = vmatprep.subr.mxu0 0.0
  %1484 = vmatpush1.msra.mxu0 0.0
  %1485 = vmatprep.subr.mxu0 0.0
  %1486 = vmatpush1.msra.mxu0 0.0
  %1487 = vmatprep.subr.mxu0 0.0
  %1488 = vmatpush1.msra.mxu0 0.0
  %1489 = vmatprep.subr.mxu0 0.0
  %1490 = vmatpush1.msra.mxu0 0.0
  %1491 = vmatprep.subr.mxu0 0.0
  %1492 = vmatpush1.msra.mxu0 0.0
  %1493 = vmatprep.subr.mxu0 0.0
  %1494 = vmatpush1.msra.mxu0 0.0
  %1495 = vmatprep.subr.mxu0 0.0
  %1496 = vmatpush1.msra.mxu0 0.0
  %1497 = vmatprep.subr.mxu0 0.0
  %1498 = vmatpush1.msra.mxu0 0.0
  %1499 = vmatprep.mubr.f32.mxu0 0.0
  %1500 = vmatmul.mubr.f32.gmra.mrb[0].mxu0 %v1430
  %v1501 = vpop.f32.mrb[0].mxu0
  %v1502 = vadd.f32 0.0, %v1501
  %v1503 = vpop.f32.mrb[0].mxu0
  %1504 = vmatprep.mubr.f32.mxu0 0.0
  %1505 = vmatmul.mubr.f32.gmra.mrb[0].mxu0 %v1432
  %v1506 = vpop.f32.mrb[0].mxu0
  %v1507 = vadd.f32 0.0, %v1506
  %v1508 = vpop.f32.mrb[0].mxu0
  %1509 = vmatprep.mubr.f32.mxu0 0.0
  %1510 = vmatmul.mubr.f32.gmra.mrb[0].mxu0 %v1434
  %v1511 = vpop.f32.mrb[0].mxu0
  %v1512 = vadd.f32 0.0, %v1511
  %v1513 = vpop.f32.mrb[0].mxu0
  %1514 = vdwg.mxu0
  %1515 = vmatprep.subr.mxu0 0.0
  %1516 = vmatpush1.msra.mxu0 %v17
  %1517 = vmatprep.subr.mxu0 0.0
  %1518 = vmatpush1.msra.mxu0 %v17
  %1519 = vmatprep.subr.mxu0 0.0
  %1520 = vmatpush1.msra.mxu0 %v17
  %1521 = vmatprep.subr.mxu0 0.0
  %1522 = vmatpush1.msra.mxu0 %v17
  %1523 = vmatprep.subr.mxu0 0.0
  %1524 = vmatpush1.msra.mxu0 %v22
  %1525 = vmatprep.subr.mxu0 0.0
  %1526 = vmatpush1.msra.mxu0 %v22
  %1527 = vmatprep.subr.mxu0 0.0
  %1528 = vmatpush1.msra.mxu0 %v22
  %1529 = vmatprep.subr.mxu0 0.0
  %1530 = vmatpush1.msra.mxu0 %v22
  %1531 = vmatprep.subr.mxu0 0.0
  %1532 = vmatpush1.msra.mxu0 %v27
  %1533 = vmatprep.subr.mxu0 0.0
  %1534 = vmatpush1.msra.mxu0 %v27
  %1535 = vmatprep.subr.mxu0 0.0
  %1536 = vmatpush1.msra.mxu0 %v27
  %1537 = vmatprep.subr.mxu0 0.0
  %1538 = vmatpush1.msra.mxu0 %v27
  %1539 = vmatprep.subr.mxu0 0.0
  %1540 = vmatpush1.msra.mxu0 %v32
  %1541 = vmatprep.subr.mxu0 0.0
  %1542 = vmatpush1.msra.mxu0 %v32
  %1543 = vmatprep.subr.mxu0 0.0
  %1544 = vmatpush1.msra.mxu0 %v32
  %1545 = vmatprep.subr.mxu0 0.0
  %1546 = vmatpush1.msra.mxu0 %v32
  %1547 = vmatprep.subr.mxu0 0.0
  %1548 = vmatpush1.msra.mxu0 0.0
  %1549 = vmatprep.subr.mxu0 0.0
  %1550 = vmatpush1.msra.mxu0 0.0
  %1551 = vmatprep.subr.mxu0 0.0
  %1552 = vmatpush1.msra.mxu0 0.0
  %1553 = vmatprep.subr.mxu0 0.0
  %1554 = vmatpush1.msra.mxu0 0.0
  %1555 = vmatprep.subr.mxu0 0.0
  %1556 = vmatpush1.msra.mxu0 0.0
  %1557 = vmatprep.subr.mxu0 0.0
  %1558 = vmatpush1.msra.mxu0 0.0
  %1559 = vmatprep.subr.mxu0 0.0
  %1560 = vmatpush1.msra.mxu0 0.0
  %1561 = vmatprep.subr.mxu0 0.0
  %1562 = vmatpush1.msra.mxu0 0.0
  %1563 = vmatprep.subr.mxu0 0.0
  %1564 = vmatpush1.msra.mxu0 0.0
  %1565 = vmatprep.subr.mxu0 0.0
  %1566 = vmatpush1.msra.mxu0 0.0
  %1567 = vmatprep.subr.mxu0 0.0
  %1568 = vmatpush1.msra.mxu0 0.0
  %1569 = vmatprep.subr.mxu0 0.0
  %1570 = vmatpush1.msra.mxu0 0.0
  %1571 = vmatprep.subr.mxu0 0.0
  %1572 = vmatpush1.msra.mxu0 0.0
  %1573 = vmatprep.subr.mxu0 0.0
  %1574 = vmatpush1.msra.mxu0 0.0
  %1575 = vmatprep.subr.mxu0 0.0
  %1576 = vmatpush1.msra.mxu0 0.0
  %1577 = vmatprep.subr.mxu0 0.0
  %1578 = vmatpush1.msra.mxu0 0.0
  %1579 = vmatprep.mubr.f32.mxu0 0.0
  %1580 = vmatmul.mubr.f32.gmra.mrb[0].mxu0 %v1430
  %v1581 = vpop.f32.mrb[0].mxu0
  %v1582 = vadd.f32 0.0, %v1581
  %v1583 = vpop.f32.mrb[0].mxu0
  %1584 = vmatprep.mubr.f32.mxu0 0.0
  %1585 = vmatmul.mubr.f32.gmra.mrb[0].mxu0 %v1432
  %v1586 = vpop.f32.mrb[0].mxu0
  %v1587 = vadd.f32 0.0, %v1586
  %v1588 = vpop.f32.mrb[0].mxu0
  %1589 = vmatprep.mubr.f32.mxu0 0.0
  %1590 = vmatmul.mubr.f32.gmra.mrb[0].mxu0 %v1434
  %v1591 = vpop.f32.mrb[0].mxu0
  %v1592 = vadd.f32 0.0, %v1591
  %v1593 = vpop.f32.mrb[0].mxu0
  %1594 = vdwg.mxu0
  %v1595 = vmax.f32 %v1582, 1e-30
  %v1596 = vmax.f32 %v1587, 1e-30
  %v1597 = vmax.f32 %v1592, 1e-30
  %v1598 = vrcp.pop %v1595
  %v1599 = vrcp.pop %v1596
  %v1600 = vrcp.pop %v1597
  %v1601 = vmul.f32 %v1502, %v1598
  %v1602 = vmul.f32 %v1507, %v1599
  %v1603 = vmul.f32 %v1512, %v1600
  %v1604 = vlaneseq
  %v1605 = vshrl.u32 %v1604, 7
  %v1606 = vsub.s32 0, %v1605
  %v1607 = vrot.slane %v1264, %v1606
  %v1609 = vsel %vm85, %v1601, 0
  %v1612 = vsel %vm85, %v1602, 0
  %v1615 = vsel %vm85, %v1603, 0
  %1617 = vmatprep.subr.mxu0 0.0
  %1618 = vmatpush1.msra.mxu0 %v1260
  %1619 = vmatprep.subr.mxu0 0.0
  %1620 = vmatpush1.msra.mxu0 %v1261
  %1621 = vmatprep.subr.mxu0 0.0
  %1622 = vmatpush1.msra.mxu0 %v1262
  %1623 = vmatprep.subr.mxu0 0.0
  %1624 = vmatpush1.msra.mxu0 %v1263
  %1625 = vmatprep.subr.mxu0 0.0
  %1626 = vmatpush1.msra.mxu0 0.0
  %1627 = vmatprep.subr.mxu0 0.0
  %1628 = vmatpush1.msra.mxu0 0.0
  %1629 = vmatprep.subr.mxu0 0.0
  %1630 = vmatpush1.msra.mxu0 0.0
  %1631 = vmatprep.subr.mxu0 0.0
  %1632 = vmatpush1.msra.mxu0 0.0
  %1633 = vmatprep.subr.mxu0 0.0
  %1634 = vmatpush1.msra.mxu0 0.0
  %1635 = vmatprep.subr.mxu0 0.0
  %1636 = vmatpush1.msra.mxu0 0.0
  %1637 = vmatprep.subr.mxu0 0.0
  %1638 = vmatpush1.msra.mxu0 0.0
  %1639 = vmatprep.subr.mxu0 0.0
  %1640 = vmatpush1.msra.mxu0 0.0
  %1641 = vmatprep.subr.mxu0 0.0
  %1642 = vmatpush1.msra.mxu0 0.0
  %1643 = vmatprep.subr.mxu0 0.0
  %1644 = vmatpush1.msra.mxu0 0.0
  %1645 = vmatprep.subr.mxu0 0.0
  %1646 = vmatpush1.msra.mxu0 0.0
  %1647 = vmatprep.subr.mxu0 0.0
  %1648 = vmatpush1.msra.mxu0 0.0
  %1649 = vmatprep.subr.mxu0 0.0
  %1650 = vmatpush1.msra.mxu0 0.0
  %1651 = vmatprep.subr.mxu0 0.0
  %1652 = vmatpush1.msra.mxu0 0.0
  %1653 = vmatprep.subr.mxu0 0.0
  %1654 = vmatpush1.msra.mxu0 0.0
  %1655 = vmatprep.subr.mxu0 0.0
  %1656 = vmatpush1.msra.mxu0 0.0
  %1657 = vmatprep.subr.mxu0 0.0
  %1658 = vmatpush1.msra.mxu0 0.0
  %1659 = vmatprep.subr.mxu0 0.0
  %1660 = vmatpush1.msra.mxu0 0.0
  %1661 = vmatprep.subr.mxu0 0.0
  %1662 = vmatpush1.msra.mxu0 0.0
  %1663 = vmatprep.subr.mxu0 0.0
  %1664 = vmatpush1.msra.mxu0 0.0
  %1665 = vmatprep.subr.mxu0 0.0
  %1666 = vmatpush1.msra.mxu0 0.0
  %1667 = vmatprep.subr.mxu0 0.0
  %1668 = vmatpush1.msra.mxu0 0.0
  %1669 = vmatprep.subr.mxu0 0.0
  %1670 = vmatpush1.msra.mxu0 0.0
  %1671 = vmatprep.subr.mxu0 0.0
  %1672 = vmatpush1.msra.mxu0 0.0
  %1673 = vmatprep.subr.mxu0 0.0
  %1674 = vmatpush1.msra.mxu0 0.0
  %1675 = vmatprep.subr.mxu0 0.0
  %1676 = vmatpush1.msra.mxu0 0.0
  %1677 = vmatprep.subr.mxu0 0.0
  %1678 = vmatpush1.msra.mxu0 0.0
  %1679 = vmatprep.subr.mxu0 0.0
  %1680 = vmatpush1.msra.mxu0 0.0
  %1681 = vmatprep.mubr.f32.mxu0 0.0
  %1682 = vmatmul.mubr.f32.gmra.mrb[0].mxu0 %v1609
  %v1683 = vpop.f32.mrb[0].mxu0
  %v1684 = vadd.f32 %v1607, %v1683
  %v1685 = vpop.f32.mrb[0].mxu0
  %1686 = vmatprep.mubr.f32.mxu0 0.0
  %1687 = vmatmul.mubr.f32.gmra.mrb[0].mxu0 %v1612
  %v1688 = vpop.f32.mrb[0].mxu0
  %v1689 = vadd.f32 %v1607, %v1688
  %v1690 = vpop.f32.mrb[0].mxu0
  %1691 = vmatprep.mubr.f32.mxu0 0.0
  %1692 = vmatmul.mubr.f32.gmra.mrb[0].mxu0 %v1615
  %v1693 = vpop.f32.mrb[0].mxu0
  %v1694 = vadd.f32 %v1607, %v1693
  %v1695 = vpop.f32.mrb[0].mxu0
  %1696 = vdwg.mxu0
  %v1697 = vadd.f32 %v1147, %v1684
  %v1698 = vadd.f32 %v1148, %v1689
  %v1699 = vadd.f32 %v1149, %v1694
  %v1700 = vld [vmem:[%s1 + $0x260] sm:$0x1]
  %v1701 = vld [vmem:[%s1 + $0x268] sm:$0x1]
  %v1702 = vsel %vm85, %v1697, 0.0
  %1703 = vadd.xlane.f32.xlu0 %v1702
  %v1704 = vpop.xlane.xlu0 %1703
  %v1705 = vsel %vm85, %v1698, 0.0
  %1706 = vadd.xlane.f32.xlu0 %v1705
  %v1707 = vpop.xlane.xlu0 %1706
  %v1708 = vsel %vm85, %v1699, 0.0
  %1709 = vadd.xlane.f32.xlu0 %v1708
  %v1710 = vpop.xlane.xlu0 %1709
  %v1711 = vmul.f32 %v1704, %v843
  %v1712 = vmul.f32 %v1707, %v843
  %v1713 = vmul.f32 %v1710, %v843
  %v1714 = vsub.f32 %v1697, %v1711
  %v1715 = vsub.f32 %v1698, %v1712
  %v1716 = vsub.f32 %v1699, %v1713
  %v1717 = vmul.f32 %v1714, %v1714
  %v1718 = vmul.f32 %v1715, %v1715
  %v1719 = vmul.f32 %v1716, %v1716
  %v1720 = vsel %vm85, %v1717, 0.0
  %1721 = vadd.xlane.f32.xlu0 %v1720
  %v1722 = vpop.xlane.xlu0 %1721
  %v1723 = vsel %vm85, %v1718, 0.0
  %1724 = vadd.xlane.f32.xlu0 %v1723
  %v1725 = vpop.xlane.xlu0 %1724
  %v1726 = vsel %vm85, %v1719, 0.0
  %1727 = vadd.xlane.f32.xlu0 %v1726
  %v1728 = vpop.xlane.xlu0 %1727
  %v1729 = vmul.f32 %v1722, %v843
  %v1730 = vmul.f32 %v1725, %v843
  %v1731 = vmul.f32 %v1728, %v843
  %v1732 = vadd.f32 %v1729, 1e-05
  %v1733 = vadd.f32 %v1730, 1e-05
  %v1734 = vadd.f32 %v1731, 1e-05
  %v1735 = vrsqrt.pop %v1732
  %v1736 = vrsqrt.pop %v1733
  %v1737 = vrsqrt.pop %v1734
  %v1738 = vmul.f32 %v1714, %v1735
  %v1739 = vmul.f32 %v1715, %v1736
  %v1740 = vmul.f32 %v1716, %v1737
  %v1741 = vlaneseq
  %v1742 = vshrl.u32 %v1741, 7
  %v1743 = vsub.s32 0, %v1742
  %v1744 = vrot.slane %v1700, %v1743
  %v1745 = vmul.f32 %v1738, %v1744
  %v1746 = vmul.f32 %v1739, %v1744
  %v1747 = vmul.f32 %v1740, %v1744
  %v1748 = vlaneseq
  %v1749 = vshrl.u32 %v1748, 7
  %v1750 = vsub.s32 0, %v1749
  %v1751 = vrot.slane %v1701, %v1750
  %v1752 = vadd.f32 %v1745, %v1751
  %v1753 = vadd.f32 %v1746, %v1751
  %v1754 = vadd.f32 %v1747, %v1751
  %v1755 = vld [vmem:[%s1 + $0x1f0] sm:$0xff]
  %v1756 = vld [vmem:[%s1 + $0x1f8] sm:$0xff]
  %v1757 = vld [vmem:[%s1 + $0x200] sm:$0xff]
  %v1758 = vld [vmem:[%s1 + $0x208] sm:$0xff]
  %v1759 = vld [vmem:[%s1 + $0x210] sm:$0x1]
  %v1760 = vlaneseq
  %v1761 = vshrl.u32 %v1760, 7
  %v1762 = vsub.s32 0, %v1761
  %v1763 = vrot.slane %v1759, %v1762
  %v1765 = vsel %vm85, %v1752, 0
  %v1768 = vsel %vm85, %v1753, 0
  %v1771 = vsel %vm85, %v1754, 0
  %1773 = vmatprep.subr.mxu0 0.0
  %1774 = vmatpush1.msra.mxu0 %v1755
  %1775 = vmatprep.subr.mxu0 0.0
  %1776 = vmatpush1.msra.mxu0 %v1756
  %1777 = vmatprep.subr.mxu0 0.0
  %1778 = vmatpush1.msra.mxu0 %v1757
  %1779 = vmatprep.subr.mxu0 0.0
  %1780 = vmatpush1.msra.mxu0 %v1758
  %1781 = vmatprep.subr.mxu0 0.0
  %1782 = vmatpush1.msra.mxu0 0.0
  %1783 = vmatprep.subr.mxu0 0.0
  %1784 = vmatpush1.msra.mxu0 0.0
  %1785 = vmatprep.subr.mxu0 0.0
  %1786 = vmatpush1.msra.mxu0 0.0
  %1787 = vmatprep.subr.mxu0 0.0
  %1788 = vmatpush1.msra.mxu0 0.0
  %1789 = vmatprep.subr.mxu0 0.0
  %1790 = vmatpush1.msra.mxu0 0.0
  %1791 = vmatprep.subr.mxu0 0.0
  %1792 = vmatpush1.msra.mxu0 0.0
  %1793 = vmatprep.subr.mxu0 0.0
  %1794 = vmatpush1.msra.mxu0 0.0
  %1795 = vmatprep.subr.mxu0 0.0
  %1796 = vmatpush1.msra.mxu0 0.0
  %1797 = vmatprep.subr.mxu0 0.0
  %1798 = vmatpush1.msra.mxu0 0.0
  %1799 = vmatprep.subr.mxu0 0.0
  %1800 = vmatpush1.msra.mxu0 0.0
  %1801 = vmatprep.subr.mxu0 0.0
  %1802 = vmatpush1.msra.mxu0 0.0
  %1803 = vmatprep.subr.mxu0 0.0
  %1804 = vmatpush1.msra.mxu0 0.0
  %1805 = vmatprep.subr.mxu0 0.0
  %1806 = vmatpush1.msra.mxu0 0.0
  %1807 = vmatprep.subr.mxu0 0.0
  %1808 = vmatpush1.msra.mxu0 0.0
  %1809 = vmatprep.subr.mxu0 0.0
  %1810 = vmatpush1.msra.mxu0 0.0
  %1811 = vmatprep.subr.mxu0 0.0
  %1812 = vmatpush1.msra.mxu0 0.0
  %1813 = vmatprep.subr.mxu0 0.0
  %1814 = vmatpush1.msra.mxu0 0.0
  %1815 = vmatprep.subr.mxu0 0.0
  %1816 = vmatpush1.msra.mxu0 0.0
  %1817 = vmatprep.subr.mxu0 0.0
  %1818 = vmatpush1.msra.mxu0 0.0
  %1819 = vmatprep.subr.mxu0 0.0
  %1820 = vmatpush1.msra.mxu0 0.0
  %1821 = vmatprep.subr.mxu0 0.0
  %1822 = vmatpush1.msra.mxu0 0.0
  %1823 = vmatprep.subr.mxu0 0.0
  %1824 = vmatpush1.msra.mxu0 0.0
  %1825 = vmatprep.subr.mxu0 0.0
  %1826 = vmatpush1.msra.mxu0 0.0
  %1827 = vmatprep.subr.mxu0 0.0
  %1828 = vmatpush1.msra.mxu0 0.0
  %1829 = vmatprep.subr.mxu0 0.0
  %1830 = vmatpush1.msra.mxu0 0.0
  %1831 = vmatprep.subr.mxu0 0.0
  %1832 = vmatpush1.msra.mxu0 0.0
  %1833 = vmatprep.subr.mxu0 0.0
  %1834 = vmatpush1.msra.mxu0 0.0
  %1835 = vmatprep.subr.mxu0 0.0
  %1836 = vmatpush1.msra.mxu0 0.0
  %1837 = vmatprep.mubr.f32.mxu0 0.0
  %1838 = vmatmul.mubr.f32.gmra.mrb[0].mxu0 %v1765
  %v1839 = vpop.f32.mrb[0].mxu0
  %v1840 = vadd.f32 %v1763, %v1839
  %v1841 = vpop.f32.mrb[0].mxu0
  %1842 = vmatprep.mubr.f32.mxu0 0.0
  %1843 = vmatmul.mubr.f32.gmra.mrb[0].mxu0 %v1768
  %v1844 = vpop.f32.mrb[0].mxu0
  %v1845 = vadd.f32 %v1763, %v1844
  %v1846 = vpop.f32.mrb[0].mxu0
  %1847 = vmatprep.mubr.f32.mxu0 0.0
  %1848 = vmatmul.mubr.f32.gmra.mrb[0].mxu0 %v1771
  %v1849 = vpop.f32.mrb[0].mxu0
  %v1850 = vadd.f32 %v1763, %v1849
  %v1851 = vpop.f32.mrb[0].mxu0
  %1852 = vdwg.mxu0
  %v1853 = vmax.f32 %v1840, 0.0
  %v1854 = vmax.f32 %v1845, 0.0
  %v1855 = vmax.f32 %v1850, 0.0
  %v1856 = vld [vmem:[%s1 + $0x218] sm:$0xff]
  %v1857 = vld [vmem:[%s1 + $0x220] sm:$0xff]
  %v1858 = vld [vmem:[%s1 + $0x228] sm:$0xff]
  %v1859 = vld [vmem:[%s1 + $0x230] sm:$0xff]
  %v1860 = vld [vmem:[%s1 + $0x238] sm:$0xff]
  %v1861 = vld [vmem:[%s1 + $0x240] sm:$0xff]
  %v1862 = vld [vmem:[%s1 + $0x248] sm:$0xff]
  %v1863 = vld [vmem:[%s1 + $0x250] sm:$0xff]
  %v1864 = vld [vmem:[%s1 + $0x258] sm:$0x1]
  %v1865 = vlaneseq
  %v1866 = vshrl.u32 %v1865, 7
  %v1867 = vsub.s32 0, %v1866
  %v1868 = vrot.slane %v1864, %v1867
  %v1870 = vsel %vm1002, %v1853, 0
  %v1873 = vsel %vm1002, %v1854, 0
  %v1876 = vsel %vm1002, %v1855, 0
  %1878 = vmatprep.subr.mxu0 0.0
  %1879 = vmatpush1.msra.mxu0 %v1856
  %1880 = vmatprep.subr.mxu0 0.0
  %1881 = vmatpush1.msra.mxu0 %v1857
  %1882 = vmatprep.subr.mxu0 0.0
  %1883 = vmatpush1.msra.mxu0 %v1858
  %1884 = vmatprep.subr.mxu0 0.0
  %1885 = vmatpush1.msra.mxu0 %v1859
  %1886 = vmatprep.subr.mxu0 0.0
  %1887 = vmatpush1.msra.mxu0 %v1860
  %1888 = vmatprep.subr.mxu0 0.0
  %1889 = vmatpush1.msra.mxu0 %v1861
  %1890 = vmatprep.subr.mxu0 0.0
  %1891 = vmatpush1.msra.mxu0 %v1862
  %1892 = vmatprep.subr.mxu0 0.0
  %1893 = vmatpush1.msra.mxu0 %v1863
  %1894 = vmatprep.subr.mxu0 0.0
  %1895 = vmatpush1.msra.mxu0 0.0
  %1896 = vmatprep.subr.mxu0 0.0
  %1897 = vmatpush1.msra.mxu0 0.0
  %1898 = vmatprep.subr.mxu0 0.0
  %1899 = vmatpush1.msra.mxu0 0.0
  %1900 = vmatprep.subr.mxu0 0.0
  %1901 = vmatpush1.msra.mxu0 0.0
  %1902 = vmatprep.subr.mxu0 0.0
  %1903 = vmatpush1.msra.mxu0 0.0
  %1904 = vmatprep.subr.mxu0 0.0
  %1905 = vmatpush1.msra.mxu0 0.0
  %1906 = vmatprep.subr.mxu0 0.0
  %1907 = vmatpush1.msra.mxu0 0.0
  %1908 = vmatprep.subr.mxu0 0.0
  %1909 = vmatpush1.msra.mxu0 0.0
  %1910 = vmatprep.subr.mxu0 0.0
  %1911 = vmatpush1.msra.mxu0 0.0
  %1912 = vmatprep.subr.mxu0 0.0
  %1913 = vmatpush1.msra.mxu0 0.0
  %1914 = vmatprep.subr.mxu0 0.0
  %1915 = vmatpush1.msra.mxu0 0.0
  %1916 = vmatprep.subr.mxu0 0.0
  %1917 = vmatpush1.msra.mxu0 0.0
  %1918 = vmatprep.subr.mxu0 0.0
  %1919 = vmatpush1.msra.mxu0 0.0
  %1920 = vmatprep.subr.mxu0 0.0
  %1921 = vmatpush1.msra.mxu0 0.0
  %1922 = vmatprep.subr.mxu0 0.0
  %1923 = vmatpush1.msra.mxu0 0.0
  %1924 = vmatprep.subr.mxu0 0.0
  %1925 = vmatpush1.msra.mxu0 0.0
  %1926 = vmatprep.subr.mxu0 0.0
  %1927 = vmatpush1.msra.mxu0 0.0
  %1928 = vmatprep.subr.mxu0 0.0
  %1929 = vmatpush1.msra.mxu0 0.0
  %1930 = vmatprep.subr.mxu0 0.0
  %1931 = vmatpush1.msra.mxu0 0.0
  %1932 = vmatprep.subr.mxu0 0.0
  %1933 = vmatpush1.msra.mxu0 0.0
  %1934 = vmatprep.subr.mxu0 0.0
  %1935 = vmatpush1.msra.mxu0 0.0
  %1936 = vmatprep.subr.mxu0 0.0
  %1937 = vmatpush1.msra.mxu0 0.0
  %1938 = vmatprep.subr.mxu0 0.0
  %1939 = vmatpush1.msra.mxu0 0.0
  %1940 = vmatprep.subr.mxu0 0.0
  %1941 = vmatpush1.msra.mxu0 0.0
  %1942 = vmatprep.mubr.f32.mxu0 0.0
  %1943 = vmatmul.mubr.f32.gmra.mrb[0].mxu0 %v1870
  %v1944 = vpop.f32.mrb[0].mxu0
  %v1945 = vadd.f32 %v1868, %v1944
  %v1946 = vpop.f32.mrb[0].mxu0
  %1947 = vmatprep.mubr.f32.mxu0 0.0
  %1948 = vmatmul.mubr.f32.gmra.mrb[0].mxu0 %v1873
  %v1949 = vpop.f32.mrb[0].mxu0
  %v1950 = vadd.f32 %v1868, %v1949
  %v1951 = vpop.f32.mrb[0].mxu0
  %1952 = vmatprep.mubr.f32.mxu0 0.0
  %1953 = vmatmul.mubr.f32.gmra.mrb[0].mxu0 %v1876
  %v1954 = vpop.f32.mrb[0].mxu0
  %v1955 = vadd.f32 %v1868, %v1954
  %v1956 = vpop.f32.mrb[0].mxu0
  %1957 = vdwg.mxu0
  %v1958 = vadd.f32 %v1752, %v1945
  %v1959 = vadd.f32 %v1753, %v1950
  %v1960 = vadd.f32 %v1754, %v1955
  %v1961 = vld [vmem:[%s1 + $0x270] sm:$0x1]
  %v1962 = vld [vmem:[%s1 + $0x278] sm:$0x1]
  %v1963 = vsel %vm85, %v1958, 0.0
  %1964 = vadd.xlane.f32.xlu0 %v1963
  %v1965 = vpop.xlane.xlu0 %1964
  %v1966 = vsel %vm85, %v1959, 0.0
  %1967 = vadd.xlane.f32.xlu0 %v1966
  %v1968 = vpop.xlane.xlu0 %1967
  %v1969 = vsel %vm85, %v1960, 0.0
  %1970 = vadd.xlane.f32.xlu0 %v1969
  %v1971 = vpop.xlane.xlu0 %1970
  %v1972 = vmul.f32 %v1965, %v843
  %v1973 = vmul.f32 %v1968, %v843
  %v1974 = vmul.f32 %v1971, %v843
  %v1975 = vsub.f32 %v1958, %v1972
  %v1976 = vsub.f32 %v1959, %v1973
  %v1977 = vsub.f32 %v1960, %v1974
  %v1978 = vmul.f32 %v1975, %v1975
  %v1979 = vmul.f32 %v1976, %v1976
  %v1980 = vmul.f32 %v1977, %v1977
  %v1981 = vsel %vm85, %v1978, 0.0
  %1982 = vadd.xlane.f32.xlu0 %v1981
  %v1983 = vpop.xlane.xlu0 %1982
  %v1984 = vsel %vm85, %v1979, 0.0
  %1985 = vadd.xlane.f32.xlu0 %v1984
  %v1986 = vpop.xlane.xlu0 %1985
  %v1987 = vsel %vm85, %v1980, 0.0
  %1988 = vadd.xlane.f32.xlu0 %v1987
  %v1989 = vpop.xlane.xlu0 %1988
  %v1990 = vmul.f32 %v1983, %v843
  %v1991 = vmul.f32 %v1986, %v843
  %v1992 = vmul.f32 %v1989, %v843
  %v1993 = vadd.f32 %v1990, 1e-05
  %v1994 = vadd.f32 %v1991, 1e-05
  %v1995 = vadd.f32 %v1992, 1e-05
  %v1996 = vrsqrt.pop %v1993
  %v1997 = vrsqrt.pop %v1994
  %v1998 = vrsqrt.pop %v1995
  %v1999 = vmul.f32 %v1975, %v1996
  %v2000 = vmul.f32 %v1976, %v1997
  %v2001 = vmul.f32 %v1977, %v1998
  %v2002 = vlaneseq
  %v2003 = vshrl.u32 %v2002, 7
  %v2004 = vsub.s32 0, %v2003
  %v2005 = vrot.slane %v1961, %v2004
  %v2006 = vmul.f32 %v1999, %v2005
  %v2007 = vmul.f32 %v2000, %v2005
  %v2008 = vmul.f32 %v2001, %v2005
  %v2009 = vlaneseq
  %v2010 = vshrl.u32 %v2009, 7
  %v2011 = vsub.s32 0, %v2010
  %v2012 = vrot.slane %v1962, %v2011
  %v2013 = vadd.f32 %v2006, %v2012
  %v2014 = vadd.f32 %v2007, %v2012
  %v2015 = vadd.f32 %v2008, %v2012
  %v2016 = vld [vmem:[%s1 + $0x280] sm:$0x1]
  %v2017 = vld [vmem:[%s1 + $0x288] sm:$0x1]
  %v2018 = vsel %vm85, %v2013, 0.0
  %2019 = vadd.xlane.f32.xlu0 %v2018
  %v2020 = vpop.xlane.xlu0 %2019
  %v2021 = vsel %vm85, %v2014, 0.0
  %2022 = vadd.xlane.f32.xlu0 %v2021
  %v2023 = vpop.xlane.xlu0 %2022
  %v2024 = vsel %vm85, %v2015, 0.0
  %2025 = vadd.xlane.f32.xlu0 %v2024
  %v2026 = vpop.xlane.xlu0 %2025
  %v2027 = vmul.f32 %v2020, %v843
  %v2028 = vmul.f32 %v2023, %v843
  %v2029 = vmul.f32 %v2026, %v843
  %v2030 = vsub.f32 %v2013, %v2027
  %v2031 = vsub.f32 %v2014, %v2028
  %v2032 = vsub.f32 %v2015, %v2029
  %v2033 = vmul.f32 %v2030, %v2030
  %v2034 = vmul.f32 %v2031, %v2031
  %v2035 = vmul.f32 %v2032, %v2032
  %v2036 = vsel %vm85, %v2033, 0.0
  %2037 = vadd.xlane.f32.xlu0 %v2036
  %v2038 = vpop.xlane.xlu0 %2037
  %v2039 = vsel %vm85, %v2034, 0.0
  %2040 = vadd.xlane.f32.xlu0 %v2039
  %v2041 = vpop.xlane.xlu0 %2040
  %v2042 = vsel %vm85, %v2035, 0.0
  %2043 = vadd.xlane.f32.xlu0 %v2042
  %v2044 = vpop.xlane.xlu0 %2043
  %v2045 = vmul.f32 %v2038, %v843
  %v2046 = vmul.f32 %v2041, %v843
  %v2047 = vmul.f32 %v2044, %v843
  %v2048 = vadd.f32 %v2045, 1e-05
  %v2049 = vadd.f32 %v2046, 1e-05
  %v2050 = vadd.f32 %v2047, 1e-05
  %v2051 = vrsqrt.pop %v2048
  %v2052 = vrsqrt.pop %v2049
  %v2053 = vrsqrt.pop %v2050
  %v2054 = vmul.f32 %v2030, %v2051
  %v2055 = vmul.f32 %v2031, %v2052
  %v2056 = vmul.f32 %v2032, %v2053
  %v2057 = vlaneseq
  %v2058 = vshrl.u32 %v2057, 7
  %v2059 = vsub.s32 0, %v2058
  %v2060 = vrot.slane %v2016, %v2059
  %v2061 = vmul.f32 %v2054, %v2060
  %v2062 = vmul.f32 %v2055, %v2060
  %v2063 = vmul.f32 %v2056, %v2060
  %v2064 = vlaneseq
  %v2065 = vshrl.u32 %v2064, 7
  %v2066 = vsub.s32 0, %v2065
  %v2067 = vrot.slane %v2017, %v2066
  %v2068 = vadd.f32 %v2061, %v2067
  %v2069 = vadd.f32 %v2062, %v2067
  %v2070 = vadd.f32 %v2063, %v2067
  %v2071 = vld [vmem:[%s1 + $0x48] sm:$0xff]
  %v2072 = vld [vmem:[%s1 + $0x50] sm:$0xff]
  %v2073 = vld [vmem:[%s1 + $0x58] sm:$0xff]
  %v2074 = vld [vmem:[%s1 + $0x60] sm:$0xff]
  %v2075 = vld [vmem:[%s1 + $0xa8] sm:$0xff]
  %v2076 = vld [vmem:[%s1 + $0xb0] sm:$0xff]
  %v2077 = vld [vmem:[%s1 + $0xb8] sm:$0xff]
  %v2079 = vsel %vm85, %v75, 0
  %v2082 = vsel %vm85, %v76, 0
  %v2085 = vsel %vm85, %v77, 0
  %2087 = vmatprep.subr.mxu0 0.0
  %2088 = vmatpush1.msra.mxu0 %v2071
  %2089 = vmatprep.subr.mxu0 0.0
  %2090 = vmatpush1.msra.mxu0 %v2072
  %2091 = vmatprep.subr.mxu0 0.0
  %2092 = vmatpush1.msra.mxu0 %v2073
  %2093 = vmatprep.subr.mxu0 0.0
  %2094 = vmatpush1.msra.mxu0 %v2074
  %2095 = vmatprep.subr.mxu0 0.0
  %2096 = vmatpush1.msra.mxu0 0.0
  %2097 = vmatprep.subr.mxu0 0.0
  %2098 = vmatpush1.msra.mxu0 0.0
  %2099 = vmatprep.subr.mxu0 0.0
  %2100 = vmatpush1.msra.mxu0 0.0
  %2101 = vmatprep.subr.mxu0 0.0
  %2102 = vmatpush1.msra.mxu0 0.0
  %2103 = vmatprep.subr.mxu0 0.0
  %2104 = vmatpush1.msra.mxu0 0.0
  %2105 = vmatprep.subr.mxu0 0.0
  %2106 = vmatpush1.msra.mxu0 0.0
  %2107 = vmatprep.subr.mxu0 0.0
  %2108 = vmatpush1.msra.mxu0 0.0
  %2109 = vmatprep.subr.mxu0 0.0
  %2110 = vmatpush1.msra.mxu0 0.0
  %2111 = vmatprep.subr.mxu0 0.0
  %2112 = vmatpush1.msra.mxu0 0.0
  %2113 = vmatprep.subr.mxu0 0.0
  %2114 = vmatpush1.msra.mxu0 0.0
  %2115 = vmatprep.subr.mxu0 0.0
  %2116 = vmatpush1.msra.mxu0 0.0
  %2117 = vmatprep.subr.mxu0 0.0
  %2118 = vmatpush1.msra.mxu0 0.0
  %2119 = vmatprep.subr.mxu0 0.0
  %2120 = vmatpush1.msra.mxu0 0.0
  %2121 = vmatprep.subr.mxu0 0.0
  %2122 = vmatpush1.msra.mxu0 0.0
  %2123 = vmatprep.subr.mxu0 0.0
  %2124 = vmatpush1.msra.mxu0 0.0
  %2125 = vmatprep.subr.mxu0 0.0
  %2126 = vmatpush1.msra.mxu0 0.0
  %2127 = vmatprep.subr.mxu0 0.0
  %2128 = vmatpush1.msra.mxu0 0.0
  %2129 = vmatprep.subr.mxu0 0.0
  %2130 = vmatpush1.msra.mxu0 0.0
  %2131 = vmatprep.subr.mxu0 0.0
  %2132 = vmatpush1.msra.mxu0 0.0
  %2133 = vmatprep.subr.mxu0 0.0
  %2134 = vmatpush1.msra.mxu0 0.0
  %2135 = vmatprep.subr.mxu0 0.0
  %2136 = vmatpush1.msra.mxu0 0.0
  %2137 = vmatprep.subr.mxu0 0.0
  %2138 = vmatpush1.msra.mxu0 0.0
  %2139 = vmatprep.subr.mxu0 0.0
  %2140 = vmatpush1.msra.mxu0 0.0
  %2141 = vmatprep.subr.mxu0 0.0
  %2142 = vmatpush1.msra.mxu0 0.0
  %2143 = vmatprep.subr.mxu0 0.0
  %2144 = vmatpush1.msra.mxu0 0.0
  %2145 = vmatprep.subr.mxu0 0.0
  %2146 = vmatpush1.msra.mxu0 0.0
  %2147 = vmatprep.subr.mxu0 0.0
  %2148 = vmatpush1.msra.mxu0 0.0
  %2149 = vmatprep.subr.mxu0 0.0
  %2150 = vmatpush1.msra.mxu0 0.0
  %2151 = vmatprep.mubr.f32.mxu0 0.0
  %2152 = vmatmul.mubr.f32.gmra.mrb[0].mxu0 %v2079
  %v2153 = vpop.f32.mrb[0].mxu0
  %v2154 = vadd.f32 %v2075, %v2153
  %v2155 = vpop.f32.mrb[0].mxu0
  %2156 = vmatprep.mubr.f32.mxu0 0.0
  %2157 = vmatmul.mubr.f32.gmra.mrb[0].mxu0 %v2082
  %v2158 = vpop.f32.mrb[0].mxu0
  %v2159 = vadd.f32 %v2076, %v2158
  %v2160 = vpop.f32.mrb[0].mxu0
  %2161 = vmatprep.mubr.f32.mxu0 0.0
  %2162 = vmatmul.mubr.f32.gmra.mrb[0].mxu0 %v2085
  %v2163 = vpop.f32.mrb[0].mxu0
  %v2164 = vadd.f32 %v2077, %v2163
  %v2165 = vpop.f32.mrb[0].mxu0
  %2166 = vdwg.mxu0
  %v2167 = vld [vmem:[%s1 + $0x68] sm:$0xff]
  %v2168 = vld [vmem:[%s1 + $0x70] sm:$0xff]
  %v2169 = vld [vmem:[%s1 + $0x78] sm:$0xff]
  %v2170 = vld [vmem:[%s1 + $0x80] sm:$0xff]
  %v2171 = vld [vmem:[%s1 + $0x88] sm:$0x1]
  %v2172 = vlaneseq
  %v2173 = vshrl.u32 %v2172, 7
  %v2174 = vsub.s32 0, %v2173
  %v2175 = vrot.slane %v2171, %v2174
  %2176 = vmatprep.subr.mxu0 0.0
  %2177 = vmatpush1.msra.mxu0 %v2167
  %2178 = vmatprep.subr.mxu0 0.0
  %2179 = vmatpush1.msra.mxu0 %v2168
  %2180 = vmatprep.subr.mxu0 0.0
  %2181 = vmatpush1.msra.mxu0 %v2169
  %2182 = vmatprep.subr.mxu0 0.0
  %2183 = vmatpush1.msra.mxu0 %v2170
  %2184 = vmatprep.subr.mxu0 0.0
  %2185 = vmatpush1.msra.mxu0 0.0
  %2186 = vmatprep.subr.mxu0 0.0
  %2187 = vmatpush1.msra.mxu0 0.0
  %2188 = vmatprep.subr.mxu0 0.0
  %2189 = vmatpush1.msra.mxu0 0.0
  %2190 = vmatprep.subr.mxu0 0.0
  %2191 = vmatpush1.msra.mxu0 0.0
  %2192 = vmatprep.subr.mxu0 0.0
  %2193 = vmatpush1.msra.mxu0 0.0
  %2194 = vmatprep.subr.mxu0 0.0
  %2195 = vmatpush1.msra.mxu0 0.0
  %2196 = vmatprep.subr.mxu0 0.0
  %2197 = vmatpush1.msra.mxu0 0.0
  %2198 = vmatprep.subr.mxu0 0.0
  %2199 = vmatpush1.msra.mxu0 0.0
  %2200 = vmatprep.subr.mxu0 0.0
  %2201 = vmatpush1.msra.mxu0 0.0
  %2202 = vmatprep.subr.mxu0 0.0
  %2203 = vmatpush1.msra.mxu0 0.0
  %2204 = vmatprep.subr.mxu0 0.0
  %2205 = vmatpush1.msra.mxu0 0.0
  %2206 = vmatprep.subr.mxu0 0.0
  %2207 = vmatpush1.msra.mxu0 0.0
  %2208 = vmatprep.subr.mxu0 0.0
  %2209 = vmatpush1.msra.mxu0 0.0
  %2210 = vmatprep.subr.mxu0 0.0
  %2211 = vmatpush1.msra.mxu0 0.0
  %2212 = vmatprep.subr.mxu0 0.0
  %2213 = vmatpush1.msra.mxu0 0.0
  %2214 = vmatprep.subr.mxu0 0.0
  %2215 = vmatpush1.msra.mxu0 0.0
  %2216 = vmatprep.subr.mxu0 0.0
  %2217 = vmatpush1.msra.mxu0 0.0
  %2218 = vmatprep.subr.mxu0 0.0
  %2219 = vmatpush1.msra.mxu0 0.0
  %2220 = vmatprep.subr.mxu0 0.0
  %2221 = vmatpush1.msra.mxu0 0.0
  %2222 = vmatprep.subr.mxu0 0.0
  %2223 = vmatpush1.msra.mxu0 0.0
  %2224 = vmatprep.subr.mxu0 0.0
  %2225 = vmatpush1.msra.mxu0 0.0
  %2226 = vmatprep.subr.mxu0 0.0
  %2227 = vmatpush1.msra.mxu0 0.0
  %2228 = vmatprep.subr.mxu0 0.0
  %2229 = vmatpush1.msra.mxu0 0.0
  %2230 = vmatprep.subr.mxu0 0.0
  %2231 = vmatpush1.msra.mxu0 0.0
  %2232 = vmatprep.subr.mxu0 0.0
  %2233 = vmatpush1.msra.mxu0 0.0
  %2234 = vmatprep.subr.mxu0 0.0
  %2235 = vmatpush1.msra.mxu0 0.0
  %2236 = vmatprep.subr.mxu0 0.0
  %2237 = vmatpush1.msra.mxu0 0.0
  %2238 = vmatprep.subr.mxu0 0.0
  %2239 = vmatpush1.msra.mxu0 0.0
  %2240 = vmatprep.mubr.f32.mxu0 0.0
  %2241 = vmatmul.mubr.f32.gmra.mrb[0].mxu0 %v2079
  %v2242 = vpop.f32.mrb[0].mxu0
  %v2243 = vadd.f32 %v2175, %v2242
  %v2244 = vpop.f32.mrb[0].mxu0
  %2245 = vmatprep.mubr.f32.mxu0 0.0
  %2246 = vmatmul.mubr.f32.gmra.mrb[0].mxu0 %v2082
  %v2247 = vpop.f32.mrb[0].mxu0
  %v2248 = vadd.f32 %v2175, %v2247
  %v2249 = vpop.f32.mrb[0].mxu0
  %2250 = vmatprep.mubr.f32.mxu0 0.0
  %2251 = vmatmul.mubr.f32.gmra.mrb[0].mxu0 %v2085
  %v2252 = vpop.f32.mrb[0].mxu0
  %v2253 = vadd.f32 %v2175, %v2252
  %v2254 = vpop.f32.mrb[0].mxu0
  %2255 = vdwg.mxu0
  %v2256 = vmax.f32 %v2243, 0.0
  %v2257 = vmax.f32 %v2248, 0.0
  %v2258 = vmax.f32 %v2253, 0.0
  %v2259 = vsub.f32 0.0, %v2256
  %v2260 = vsub.f32 0.0, %v2257
  %v2261 = vsub.f32 0.0, %v2258
  %v2262 = vmul.f32 %v2259, 1.442695
  %v2263 = vpow.pop %v2262
  %v2264 = vmul.f32 %v2260, 1.442695
  %v2265 = vpow.pop %v2264
  %v2266 = vmul.f32 %v2261, 1.442695
  %v2267 = vpow.pop %v2266
  %v2268 = vmul.f32 %v2154, %v2263
  %v2269 = vmul.f32 %v2159, %v2265
  %v2270 = vmul.f32 %v2164, %v2267
  %v2271 = vld [vmem:[%s1 + $0x290] sm:$0xff]
  %v2272 = vld [vmem:[%s1 + $0x298] sm:$0xff]
  %v2273 = vld [vmem:[%s1 + $0x2a0] sm:$0xff]
  %v2274 = vld [vmem:[%s1 + $0x2a8] sm:$0xff]
  %v2275 = vld [vmem:[%s1 + $0x2b0] sm:$0x1]
  %v2276 = vlaneseq
  %v2277 = vshrl.u32 %v2276, 7
  %v2278 = vsub.s32 0, %v2277
  %v2279 = vrot.slane %v2275, %v2278
  %v2281 = vsel %vm85, %v2268, 0
  %v2284 = vsel %vm85, %v2269, 0
  %v2287 = vsel %vm85, %v2270, 0
  %2289 = vmatprep.subr.mxu0 0.0
  %2290 = vmatpush1.msra.mxu0 %v2271
  %2291 = vmatprep.subr.mxu0 0.0
  %2292 = vmatpush1.msra.mxu0 %v2272
  %2293 = vmatprep.subr.mxu0 0.0
  %2294 = vmatpush1.msra.mxu0 %v2273
  %2295 = vmatprep.subr.mxu0 0.0
  %2296 = vmatpush1.msra.mxu0 %v2274
  %2297 = vmatprep.subr.mxu0 0.0
  %2298 = vmatpush1.msra.mxu0 0.0
  %2299 = vmatprep.subr.mxu0 0.0
  %2300 = vmatpush1.msra.mxu0 0.0
  %2301 = vmatprep.subr.mxu0 0.0
  %2302 = vmatpush1.msra.mxu0 0.0
  %2303 = vmatprep.subr.mxu0 0.0
  %2304 = vmatpush1.msra.mxu0 0.0
  %2305 = vmatprep.subr.mxu0 0.0
  %2306 = vmatpush1.msra.mxu0 0.0
  %2307 = vmatprep.subr.mxu0 0.0
  %2308 = vmatpush1.msra.mxu0 0.0
  %2309 = vmatprep.subr.mxu0 0.0
  %2310 = vmatpush1.msra.mxu0 0.0
  %2311 = vmatprep.subr.mxu0 0.0
  %2312 = vmatpush1.msra.mxu0 0.0
  %2313 = vmatprep.subr.mxu0 0.0
  %2314 = vmatpush1.msra.mxu0 0.0
  %2315 = vmatprep.subr.mxu0 0.0
  %2316 = vmatpush1.msra.mxu0 0.0
  %2317 = vmatprep.subr.mxu0 0.0
  %2318 = vmatpush1.msra.mxu0 0.0
  %2319 = vmatprep.subr.mxu0 0.0
  %2320 = vmatpush1.msra.mxu0 0.0
  %2321 = vmatprep.subr.mxu0 0.0
  %2322 = vmatpush1.msra.mxu0 0.0
  %2323 = vmatprep.subr.mxu0 0.0
  %2324 = vmatpush1.msra.mxu0 0.0
  %2325 = vmatprep.subr.mxu0 0.0
  %2326 = vmatpush1.msra.mxu0 0.0
  %2327 = vmatprep.subr.mxu0 0.0
  %2328 = vmatpush1.msra.mxu0 0.0
  %2329 = vmatprep.subr.mxu0 0.0
  %2330 = vmatpush1.msra.mxu0 0.0
  %2331 = vmatprep.subr.mxu0 0.0
  %2332 = vmatpush1.msra.mxu0 0.0
  %2333 = vmatprep.subr.mxu0 0.0
  %2334 = vmatpush1.msra.mxu0 0.0
  %2335 = vmatprep.subr.mxu0 0.0
  %2336 = vmatpush1.msra.mxu0 0.0
  %2337 = vmatprep.subr.mxu0 0.0
  %2338 = vmatpush1.msra.mxu0 0.0
  %2339 = vmatprep.subr.mxu0 0.0
  %2340 = vmatpush1.msra.mxu0 0.0
  %2341 = vmatprep.subr.mxu0 0.0
  %2342 = vmatpush1.msra.mxu0 0.0
  %2343 = vmatprep.subr.mxu0 0.0
  %2344 = vmatpush1.msra.mxu0 0.0
  %2345 = vmatprep.subr.mxu0 0.0
  %2346 = vmatpush1.msra.mxu0 0.0
  %2347 = vmatprep.subr.mxu0 0.0
  %2348 = vmatpush1.msra.mxu0 0.0
  %2349 = vmatprep.subr.mxu0 0.0
  %2350 = vmatpush1.msra.mxu0 0.0
  %2351 = vmatprep.subr.mxu0 0.0
  %2352 = vmatpush1.msra.mxu0 0.0
  %2353 = vmatprep.mubr.f32.mxu0 0.0
  %2354 = vmatmul.mubr.f32.gmra.mrb[0].mxu0 %v2281
  %v2355 = vpop.f32.mrb[0].mxu0
  %v2356 = vadd.f32 %v2279, %v2355
  %v2357 = vpop.f32.mrb[0].mxu0
  %2358 = vmatprep.mubr.f32.mxu0 0.0
  %2359 = vmatmul.mubr.f32.gmra.mrb[0].mxu0 %v2284
  %v2360 = vpop.f32.mrb[0].mxu0
  %v2361 = vadd.f32 %v2279, %v2360
  %v2362 = vpop.f32.mrb[0].mxu0
  %2363 = vmatprep.mubr.f32.mxu0 0.0
  %2364 = vmatmul.mubr.f32.gmra.mrb[0].mxu0 %v2287
  %v2365 = vpop.f32.mrb[0].mxu0
  %v2366 = vadd.f32 %v2279, %v2365
  %v2367 = vpop.f32.mrb[0].mxu0
  %2368 = vdwg.mxu0
  %2369 = vrot.lane.b32.xlu0 %v2356, 96
  %v2370 = vpop.permute.xlu0 %2369
  %2371 = vrot.lane.b32.xlu0 %v2361, 96
  %v2372 = vpop.permute.xlu0 %2371
  %2373 = vrot.lane.b32.xlu0 %v2366, 96
  %v2374 = vpop.permute.xlu0 %2373
  %2375 = vrot.lane.b32.xlu0 %v2356, 64
  %v2376 = vpop.permute.xlu0 %2375
  %2377 = vrot.lane.b32.xlu0 %v2361, 64
  %v2378 = vpop.permute.xlu0 %2377
  %2379 = vrot.lane.b32.xlu0 %v2366, 64
  %v2380 = vpop.permute.xlu0 %2379
  %v2381 = vld [vmem:[%s1 + $0x2b8] sm:$0xff]
  %v2382 = vld [vmem:[%s1 + $0x2c0] sm:$0xff]
  %v2383 = vld [vmem:[%s1 + $0x2c8] sm:$0xff]
  %v2384 = vld [vmem:[%s1 + $0x2d0] sm:$0xff]
  %v2385 = vld [vmem:[%s1 + $0x2d8] sm:$0x1]
  %v2386 = vmul.f32 %v2370, %v17
  %v2387 = vmul.f32 %v2372, %v17
  %v2388 = vmul.f32 %v2374, %v17
  %v2389 = vmul.f32 %v2370, %v22
  %v2390 = vmul.f32 %v2372, %v22
  %v2391 = vmul.f32 %v2374, %v22
  %v2392 = vmul.f32 %v2370, %v27
  %v2393 = vmul.f32 %v2372, %v27
  %v2394 = vmul.f32 %v2374, %v27
  %v2395 = vmul.f32 %v2370, %v32
  %v2396 = vmul.f32 %v2372, %v32
  %v2397 = vmul.f32 %v2374, %v32
  %v2398 = vmul.f32 %v2376, %v17
  %v2399 = vmul.f32 %v2378, %v17
  %v2400 = vmul.f32 %v2380, %v17
  %v2401 = vmul.f32 %v2376, %v22
  %v2402 = vmul.f32 %v2378, %v22
  %v2403 = vmul.f32 %v2380, %v22
  %v2404 = vmul.f32 %v2376, %v27
  %v2405 = vmul.f32 %v2378, %v27
  %v2406 = vmul.f32 %v2380, %v27
  %v2407 = vmul.f32 %v2376, %v32
  %v2408 = vmul.f32 %v2378, %v32
  %v2409 = vmul.f32 %v2380, %v32
  %v2411 = vsel %vm85, %v2356, 0
  %v2414 = vsel %vm85, %v2361, 0
  %v2417 = vsel %vm85, %v2366, 0
  %v2420 = vsel %vm85, %v2386, 0
  %v2423 = vsel %vm85, %v2387, 0
  %v2426 = vsel %vm85, %v2388, 0
  %v2429 = vsel %vm85, %v2389, 0
  %v2432 = vsel %vm85, %v2390, 0
  %v2435 = vsel %vm85, %v2391, 0
  %v2438 = vsel %vm85, %v2392, 0
  %v2441 = vsel %vm85, %v2393, 0
  %v2444 = vsel %vm85, %v2394, 0
  %v2447 = vsel %vm85, %v2395, 0
  %v2450 = vsel %vm85, %v2396, 0
  %v2453 = vsel %vm85, %v2397, 0
  %2455 = vmatprep.subr.mxu0 0.0
  %2456 = vmatpush1.xpose.msra.mxu0 %v2420
  %2457 = vmatprep.subr.mxu0 0.0
  %2458 = vmatpush1.xpose.msra.mxu0 %v2423
  %2459 = vmatprep.subr.mxu0 0.0
  %2460 = vmatpush1.xpose.msra.mxu0 %v2426
  %2461 = vmatprep.subr.mxu0 0.0
  %2462 = vmatpush1.xpose.msra.mxu0 %v437
  %2463 = vmatprep.subr.mxu0 0.0
  %2464 = vmatpush1.xpose.msra.mxu0 %v2429
  %2465 = vmatprep.subr.mxu0 0.0
  %2466 = vmatpush1.xpose.msra.mxu0 %v2432
  %2467 = vmatprep.subr.mxu0 0.0
  %2468 = vmatpush1.xpose.msra.mxu0 %v2435
  %2469 = vmatprep.subr.mxu0 0.0
  %2470 = vmatpush1.xpose.msra.mxu0 %v437
  %2471 = vmatprep.subr.mxu0 0.0
  %2472 = vmatpush1.xpose.msra.mxu0 %v2438
  %2473 = vmatprep.subr.mxu0 0.0
  %2474 = vmatpush1.xpose.msra.mxu0 %v2441
  %2475 = vmatprep.subr.mxu0 0.0
  %2476 = vmatpush1.xpose.msra.mxu0 %v2444
  %2477 = vmatprep.subr.mxu0 0.0
  %2478 = vmatpush1.xpose.msra.mxu0 %v437
  %2479 = vmatprep.subr.mxu0 0.0
  %2480 = vmatpush1.xpose.msra.mxu0 %v2447
  %2481 = vmatprep.subr.mxu0 0.0
  %2482 = vmatpush1.xpose.msra.mxu0 %v2450
  %2483 = vmatprep.subr.mxu0 0.0
  %2484 = vmatpush1.xpose.msra.mxu0 %v2453
  %2485 = vmatprep.subr.mxu0 0.0
  %2486 = vmatpush1.xpose.msra.mxu0 %v437
  %2487 = vmatprep.subr.mxu0 0.0
  %2488 = vmatpush1.xpose.msra.mxu0 0.0
  %2489 = vmatprep.subr.mxu0 0.0
  %2490 = vmatpush1.xpose.msra.mxu0 0.0
  %2491 = vmatprep.subr.mxu0 0.0
  %2492 = vmatpush1.xpose.msra.mxu0 0.0
  %2493 = vmatprep.subr.mxu0 0.0
  %2494 = vmatpush1.xpose.msra.mxu0 0.0
  %2495 = vmatprep.subr.mxu0 0.0
  %2496 = vmatpush1.xpose.msra.mxu0 0.0
  %2497 = vmatprep.subr.mxu0 0.0
  %2498 = vmatpush1.xpose.msra.mxu0 0.0
  %2499 = vmatprep.subr.mxu0 0.0
  %2500 = vmatpush1.xpose.msra.mxu0 0.0
  %2501 = vmatprep.subr.mxu0 0.0
  %2502 = vmatpush1.xpose.msra.mxu0 0.0
  %2503 = vmatprep.subr.mxu0 0.0
  %2504 = vmatpush1.xpose.msra.mxu0 0.0
  %2505 = vmatprep.subr.mxu0 0.0
  %2506 = vmatpush1.xpose.msra.mxu0 0.0
  %2507 = vmatprep.subr.mxu0 0.0
  %2508 = vmatpush1.xpose.msra.mxu0 0.0
  %2509 = vmatprep.subr.mxu0 0.0
  %2510 = vmatpush1.xpose.msra.mxu0 0.0
  %2511 = vmatprep.subr.mxu0 0.0
  %2512 = vmatpush1.xpose.msra.mxu0 0.0
  %2513 = vmatprep.subr.mxu0 0.0
  %2514 = vmatpush1.xpose.msra.mxu0 0.0
  %2515 = vmatprep.subr.mxu0 0.0
  %2516 = vmatpush1.xpose.msra.mxu0 0.0
  %2517 = vmatprep.subr.mxu0 0.0
  %2518 = vmatpush1.xpose.msra.mxu0 0.0
  %2519 = vmatprep.mubr.f32.mxu0 0.0
  %2520 = vmatmul.mubr.f32.gmra.mrb[0].mxu0 %v2411
  %v2521 = vpop.f32.mrb[0].mxu0
  %v2522 = vadd.f32 0.0, %v2521
  %v2523 = vpop.f32.mrb[0].mxu0
  %2524 = vmatprep.mubr.f32.mxu0 0.0
  %2525 = vmatmul.mubr.f32.gmra.mrb[0].mxu0 %v2414
  %v2526 = vpop.f32.mrb[0].mxu0
  %v2527 = vadd.f32 0.0, %v2526
  %v2528 = vpop.f32.mrb[0].mxu0
  %2529 = vmatprep.mubr.f32.mxu0 0.0
  %2530 = vmatmul.mubr.f32.gmra.mrb[0].mxu0 %v2417
  %v2531 = vpop.f32.mrb[0].mxu0
  %v2532 = vadd.f32 0.0, %v2531
  %v2533 = vpop.f32.mrb[0].mxu0
  %2534 = vdwg.mxu0
  %v2535 = vmul.f32 %v2522, 0.35355338
  %v2536 = vmul.f32 %v2527, 0.35355338
  %v2537 = vmul.f32 %v2532, 0.35355338
  %v2538 = vadd.f32 %v2535, %v69
  %v2539 = vadd.f32 %v2536, %v70
  %v2540 = vadd.f32 %v2537, %v71
  %2541 = vmax.xlane.f32.xlu0 %v2538
  %v2542 = vpop.xlane.xlu0 %2541
  %2543 = vmax.xlane.f32.xlu0 %v2539
  %v2544 = vpop.xlane.xlu0 %2543
  %2545 = vmax.xlane.f32.xlu0 %v2540
  %v2546 = vpop.xlane.xlu0 %2545
  %v2547 = vsub.f32 %v2538, %v2542
  %v2548 = vsub.f32 %v2539, %v2544
  %v2549 = vsub.f32 %v2540, %v2546
  %v2550 = vmul.f32 %v2547, 1.442695
  %v2551 = vpow.pop %v2550
  %v2552 = vmul.f32 %v2548, 1.442695
  %v2553 = vpow.pop %v2552
  %v2554 = vmul.f32 %v2549, 1.442695
  %v2555 = vpow.pop %v2554
  %2556 = vmatprep.subr.mxu0 0.0
  %2557 = vmatpush1.msra.mxu0 %v2398
  %2558 = vmatprep.subr.mxu0 0.0
  %2559 = vmatpush1.msra.mxu0 %v2399
  %2560 = vmatprep.subr.mxu0 0.0
  %2561 = vmatpush1.msra.mxu0 %v2400
  %2562 = vmatprep.subr.mxu0 0.0
  %2563 = vmatpush1.msra.mxu0 0.0
  %2564 = vmatprep.subr.mxu0 0.0
  %2565 = vmatpush1.msra.mxu0 %v2401
  %2566 = vmatprep.subr.mxu0 0.0
  %2567 = vmatpush1.msra.mxu0 %v2402
  %2568 = vmatprep.subr.mxu0 0.0
  %2569 = vmatpush1.msra.mxu0 %v2403
  %2570 = vmatprep.subr.mxu0 0.0
  %2571 = vmatpush1.msra.mxu0 0.0
  %2572 = vmatprep.subr.mxu0 0.0
  %2573 = vmatpush1.msra.mxu0 %v2404
  %2574 = vmatprep.subr.mxu0 0.0
  %2575 = vmatpush1.msra.mxu0 %v2405
  %2576 = vmatprep.subr.mxu0 0.0
  %2577 = vmatpush1.msra.mxu0 %v2406
  %2578 = vmatprep.subr.mxu0 0.0
  %2579 = vmatpush1.msra.mxu0 0.0
  %2580 = vmatprep.subr.mxu0 0.0
  %2581 = vmatpush1.msra.mxu0 %v2407
  %2582 = vmatprep.subr.mxu0 0.0
  %2583 = vmatpush1.msra.mxu0 %v2408
  %2584 = vmatprep.subr.mxu0 0.0
  %2585 = vmatpush1.msra.mxu0 %v2409
  %2586 = vmatprep.subr.mxu0 0.0
  %2587 = vmatpush1.msra.mxu0 0.0
  %2588 = vmatprep.subr.mxu0 0.0
  %2589 = vmatpush1.msra.mxu0 0.0
  %2590 = vmatprep.subr.mxu0 0.0
  %2591 = vmatpush1.msra.mxu0 0.0
  %2592 = vmatprep.subr.mxu0 0.0
  %2593 = vmatpush1.msra.mxu0 0.0
  %2594 = vmatprep.subr.mxu0 0.0
  %2595 = vmatpush1.msra.mxu0 0.0
  %2596 = vmatprep.subr.mxu0 0.0
  %2597 = vmatpush1.msra.mxu0 0.0
  %2598 = vmatprep.subr.mxu0 0.0
  %2599 = vmatpush1.msra.mxu0 0.0
  %2600 = vmatprep.subr.mxu0 0.0
  %2601 = vmatpush1.msra.mxu0 0.0
  %2602 = vmatprep.subr.mxu0 0.0
  %2603 = vmatpush1.msra.mxu0 0.0
  %2604 = vmatprep.subr.mxu0 0.0
  %2605 = vmatpush1.msra.mxu0 0.0
  %2606 = vmatprep.subr.mxu0 0.0
  %2607 = vmatpush1.msra.mxu0 0.0
  %2608 = vmatprep.subr.mxu0 0.0
  %2609 = vmatpush1.msra.mxu0 0.0
  %2610 = vmatprep.subr.mxu0 0.0
  %2611 = vmatpush1.msra.mxu0 0.0
  %2612 = vmatprep.subr.mxu0 0.0
  %2613 = vmatpush1.msra.mxu0 0.0
  %2614 = vmatprep.subr.mxu0 0.0
  %2615 = vmatpush1.msra.mxu0 0.0
  %2616 = vmatprep.subr.mxu0 0.0
  %2617 = vmatpush1.msra.mxu0 0.0
  %2618 = vmatprep.subr.mxu0 0.0
  %2619 = vmatpush1.msra.mxu0 0.0
  %2620 = vmatprep.mubr.f32.mxu0 0.0
  %2621 = vmatmul.mubr.f32.gmra.mrb[0].mxu0 %v2551
  %v2622 = vpop.f32.mrb[0].mxu0
  %v2623 = vadd.f32 0.0, %v2622
  %v2624 = vpop.f32.mrb[0].mxu0
  %2625 = vmatprep.mubr.f32.mxu0 0.0
  %2626 = vmatmul.mubr.f32.gmra.mrb[0].mxu0 %v2553
  %v2627 = vpop.f32.mrb[0].mxu0
  %v2628 = vadd.f32 0.0, %v2627
  %v2629 = vpop.f32.mrb[0].mxu0
  %2630 = vmatprep.mubr.f32.mxu0 0.0
  %2631 = vmatmul.mubr.f32.gmra.mrb[0].mxu0 %v2555
  %v2632 = vpop.f32.mrb[0].mxu0
  %v2633 = vadd.f32 0.0, %v2632
  %v2634 = vpop.f32.mrb[0].mxu0
  %2635 = vdwg.mxu0
  %2636 = vmatprep.subr.mxu0 0.0
  %2637 = vmatpush1.msra.mxu0 %v17
  %2638 = vmatprep.subr.mxu0 0.0
  %2639 = vmatpush1.msra.mxu0 %v17
  %2640 = vmatprep.subr.mxu0 0.0
  %2641 = vmatpush1.msra.mxu0 %v17
  %2642 = vmatprep.subr.mxu0 0.0
  %2643 = vmatpush1.msra.mxu0 %v17
  %2644 = vmatprep.subr.mxu0 0.0
  %2645 = vmatpush1.msra.mxu0 %v22
  %2646 = vmatprep.subr.mxu0 0.0
  %2647 = vmatpush1.msra.mxu0 %v22
  %2648 = vmatprep.subr.mxu0 0.0
  %2649 = vmatpush1.msra.mxu0 %v22
  %2650 = vmatprep.subr.mxu0 0.0
  %2651 = vmatpush1.msra.mxu0 %v22
  %2652 = vmatprep.subr.mxu0 0.0
  %2653 = vmatpush1.msra.mxu0 %v27
  %2654 = vmatprep.subr.mxu0 0.0
  %2655 = vmatpush1.msra.mxu0 %v27
  %2656 = vmatprep.subr.mxu0 0.0
  %2657 = vmatpush1.msra.mxu0 %v27
  %2658 = vmatprep.subr.mxu0 0.0
  %2659 = vmatpush1.msra.mxu0 %v27
  %2660 = vmatprep.subr.mxu0 0.0
  %2661 = vmatpush1.msra.mxu0 %v32
  %2662 = vmatprep.subr.mxu0 0.0
  %2663 = vmatpush1.msra.mxu0 %v32
  %2664 = vmatprep.subr.mxu0 0.0
  %2665 = vmatpush1.msra.mxu0 %v32
  %2666 = vmatprep.subr.mxu0 0.0
  %2667 = vmatpush1.msra.mxu0 %v32
  %2668 = vmatprep.subr.mxu0 0.0
  %2669 = vmatpush1.msra.mxu0 0.0
  %2670 = vmatprep.subr.mxu0 0.0
  %2671 = vmatpush1.msra.mxu0 0.0
  %2672 = vmatprep.subr.mxu0 0.0
  %2673 = vmatpush1.msra.mxu0 0.0
  %2674 = vmatprep.subr.mxu0 0.0
  %2675 = vmatpush1.msra.mxu0 0.0
  %2676 = vmatprep.subr.mxu0 0.0
  %2677 = vmatpush1.msra.mxu0 0.0
  %2678 = vmatprep.subr.mxu0 0.0
  %2679 = vmatpush1.msra.mxu0 0.0
  %2680 = vmatprep.subr.mxu0 0.0
  %2681 = vmatpush1.msra.mxu0 0.0
  %2682 = vmatprep.subr.mxu0 0.0
  %2683 = vmatpush1.msra.mxu0 0.0
  %2684 = vmatprep.subr.mxu0 0.0
  %2685 = vmatpush1.msra.mxu0 0.0
  %2686 = vmatprep.subr.mxu0 0.0
  %2687 = vmatpush1.msra.mxu0 0.0
  %2688 = vmatprep.subr.mxu0 0.0
  %2689 = vmatpush1.msra.mxu0 0.0
  %2690 = vmatprep.subr.mxu0 0.0
  %2691 = vmatpush1.msra.mxu0 0.0
  %2692 = vmatprep.subr.mxu0 0.0
  %2693 = vmatpush1.msra.mxu0 0.0
  %2694 = vmatprep.subr.mxu0 0.0
  %2695 = vmatpush1.msra.mxu0 0.0
  %2696 = vmatprep.subr.mxu0 0.0
  %2697 = vmatpush1.msra.mxu0 0.0
  %2698 = vmatprep.subr.mxu0 0.0
  %2699 = vmatpush1.msra.mxu0 0.0
  %2700 = vmatprep.mubr.f32.mxu0 0.0
  %2701 = vmatmul.mubr.f32.gmra.mrb[0].mxu0 %v2551
  %v2702 = vpop.f32.mrb[0].mxu0
  %v2703 = vadd.f32 0.0, %v2702
  %v2704 = vpop.f32.mrb[0].mxu0
  %2705 = vmatprep.mubr.f32.mxu0 0.0
  %2706 = vmatmul.mubr.f32.gmra.mrb[0].mxu0 %v2553
  %v2707 = vpop.f32.mrb[0].mxu0
  %v2708 = vadd.f32 0.0, %v2707
  %v2709 = vpop.f32.mrb[0].mxu0
  %2710 = vmatprep.mubr.f32.mxu0 0.0
  %2711 = vmatmul.mubr.f32.gmra.mrb[0].mxu0 %v2555
  %v2712 = vpop.f32.mrb[0].mxu0
  %v2713 = vadd.f32 0.0, %v2712
  %v2714 = vpop.f32.mrb[0].mxu0
  %2715 = vdwg.mxu0
  %v2716 = vmax.f32 %v2703, 1e-30
  %v2717 = vmax.f32 %v2708, 1e-30
  %v2718 = vmax.f32 %v2713, 1e-30
  %v2719 = vrcp.pop %v2716
  %v2720 = vrcp.pop %v2717
  %v2721 = vrcp.pop %v2718
  %v2722 = vmul.f32 %v2623, %v2719
  %v2723 = vmul.f32 %v2628, %v2720
  %v2724 = vmul.f32 %v2633, %v2721
  %v2725 = vlaneseq
  %v2726 = vshrl.u32 %v2725, 7
  %v2727 = vsub.s32 0, %v2726
  %v2728 = vrot.slane %v2385, %v2727
  %v2730 = vsel %vm85, %v2722, 0
  %v2733 = vsel %vm85, %v2723, 0
  %v2736 = vsel %vm85, %v2724, 0
  %2738 = vmatprep.subr.mxu0 0.0
  %2739 = vmatpush1.msra.mxu0 %v2381
  %2740 = vmatprep.subr.mxu0 0.0
  %2741 = vmatpush1.msra.mxu0 %v2382
  %2742 = vmatprep.subr.mxu0 0.0
  %2743 = vmatpush1.msra.mxu0 %v2383
  %2744 = vmatprep.subr.mxu0 0.0
  %2745 = vmatpush1.msra.mxu0 %v2384
  %2746 = vmatprep.subr.mxu0 0.0
  %2747 = vmatpush1.msra.mxu0 0.0
  %2748 = vmatprep.subr.mxu0 0.0
  %2749 = vmatpush1.msra.mxu0 0.0
  %2750 = vmatprep.subr.mxu0 0.0
  %2751 = vmatpush1.msra.mxu0 0.0
  %2752 = vmatprep.subr.mxu0 0.0
  %2753 = vmatpush1.msra.mxu0 0.0
  %2754 = vmatprep.subr.mxu0 0.0
  %2755 = vmatpush1.msra.mxu0 0.0
  %2756 = vmatprep.subr.mxu0 0.0
  %2757 = vmatpush1.msra.mxu0 0.0
  %2758 = vmatprep.subr.mxu0 0.0
  %2759 = vmatpush1.msra.mxu0 0.0
  %2760 = vmatprep.subr.mxu0 0.0
  %2761 = vmatpush1.msra.mxu0 0.0
  %2762 = vmatprep.subr.mxu0 0.0
  %2763 = vmatpush1.msra.mxu0 0.0
  %2764 = vmatprep.subr.mxu0 0.0
  %2765 = vmatpush1.msra.mxu0 0.0
  %2766 = vmatprep.subr.mxu0 0.0
  %2767 = vmatpush1.msra.mxu0 0.0
  %2768 = vmatprep.subr.mxu0 0.0
  %2769 = vmatpush1.msra.mxu0 0.0
  %2770 = vmatprep.subr.mxu0 0.0
  %2771 = vmatpush1.msra.mxu0 0.0
  %2772 = vmatprep.subr.mxu0 0.0
  %2773 = vmatpush1.msra.mxu0 0.0
  %2774 = vmatprep.subr.mxu0 0.0
  %2775 = vmatpush1.msra.mxu0 0.0
  %2776 = vmatprep.subr.mxu0 0.0
  %2777 = vmatpush1.msra.mxu0 0.0
  %2778 = vmatprep.subr.mxu0 0.0
  %2779 = vmatpush1.msra.mxu0 0.0
  %2780 = vmatprep.subr.mxu0 0.0
  %2781 = vmatpush1.msra.mxu0 0.0
  %2782 = vmatprep.subr.mxu0 0.0
  %2783 = vmatpush1.msra.mxu0 0.0
  %2784 = vmatprep.subr.mxu0 0.0
  %2785 = vmatpush1.msra.mxu0 0.0
  %2786 = vmatprep.subr.mxu0 0.0
  %2787 = vmatpush1.msra.mxu0 0.0
  %2788 = vmatprep.subr.mxu0 0.0
  %2789 = vmatpush1.msra.mxu0 0.0
  %2790 = vmatprep.subr.mxu0 0.0
  %2791 = vmatpush1.msra.mxu0 0.0
  %2792 = vmatprep.subr.mxu0 0.0
  %2793 = vmatpush1.msra.mxu0 0.0
  %2794 = vmatprep.subr.mxu0 0.0
  %2795 = vmatpush1.msra.mxu0 0.0
  %2796 = vmatprep.subr.mxu0 0.0
  %2797 = vmatpush1.msra.mxu0 0.0
  %2798 = vmatprep.subr.mxu0 0.0
  %2799 = vmatpush1.msra.mxu0 0.0
  %2800 = vmatprep.subr.mxu0 0.0
  %2801 = vmatpush1.msra.mxu0 0.0
  %2802 = vmatprep.mubr.f32.mxu0 0.0
  %2803 = vmatmul.mubr.f32.gmra.mrb[0].mxu0 %v2730
  %v2804 = vpop.f32.mrb[0].mxu0
  %v2805 = vadd.f32 %v2728, %v2804
  %v2806 = vpop.f32.mrb[0].mxu0
  %2807 = vmatprep.mubr.f32.mxu0 0.0
  %2808 = vmatmul.mubr.f32.gmra.mrb[0].mxu0 %v2733
  %v2809 = vpop.f32.mrb[0].mxu0
  %v2810 = vadd.f32 %v2728, %v2809
  %v2811 = vpop.f32.mrb[0].mxu0
  %2812 = vmatprep.mubr.f32.mxu0 0.0
  %2813 = vmatmul.mubr.f32.gmra.mrb[0].mxu0 %v2736
  %v2814 = vpop.f32.mrb[0].mxu0
  %v2815 = vadd.f32 %v2728, %v2814
  %v2816 = vpop.f32.mrb[0].mxu0
  %2817 = vdwg.mxu0
  %v2818 = vadd.f32 %v2268, %v2805
  %v2819 = vadd.f32 %v2269, %v2810
  %v2820 = vadd.f32 %v2270, %v2815
  %v2821 = vld [vmem:[%s1 + $0x3c8] sm:$0x1]
  %v2822 = vld [vmem:[%s1 + $0x3d0] sm:$0x1]
  %v2823 = vsel %vm85, %v2818, 0.0
  %2824 = vadd.xlane.f32.xlu0 %v2823
  %v2825 = vpop.xlane.xlu0 %2824
  %v2826 = vsel %vm85, %v2819, 0.0
  %2827 = vadd.xlane.f32.xlu0 %v2826
  %v2828 = vpop.xlane.xlu0 %2827
  %v2829 = vsel %vm85, %v2820, 0.0
  %2830 = vadd.xlane.f32.xlu0 %v2829
  %v2831 = vpop.xlane.xlu0 %2830
  %v2832 = vmul.f32 %v2825, %v843
  %v2833 = vmul.f32 %v2828, %v843
  %v2834 = vmul.f32 %v2831, %v843
  %v2835 = vsub.f32 %v2818, %v2832
  %v2836 = vsub.f32 %v2819, %v2833
  %v2837 = vsub.f32 %v2820, %v2834
  %v2838 = vmul.f32 %v2835, %v2835
  %v2839 = vmul.f32 %v2836, %v2836
  %v2840 = vmul.f32 %v2837, %v2837
  %v2841 = vsel %vm85, %v2838, 0.0
  %2842 = vadd.xlane.f32.xlu0 %v2841
  %v2843 = vpop.xlane.xlu0 %2842
  %v2844 = vsel %vm85, %v2839, 0.0
  %2845 = vadd.xlane.f32.xlu0 %v2844
  %v2846 = vpop.xlane.xlu0 %2845
  %v2847 = vsel %vm85, %v2840, 0.0
  %2848 = vadd.xlane.f32.xlu0 %v2847
  %v2849 = vpop.xlane.xlu0 %2848
  %v2850 = vmul.f32 %v2843, %v843
  %v2851 = vmul.f32 %v2846, %v843
  %v2852 = vmul.f32 %v2849, %v843
  %v2853 = vadd.f32 %v2850, 1e-05
  %v2854 = vadd.f32 %v2851, 1e-05
  %v2855 = vadd.f32 %v2852, 1e-05
  %v2856 = vrsqrt.pop %v2853
  %v2857 = vrsqrt.pop %v2854
  %v2858 = vrsqrt.pop %v2855
  %v2859 = vmul.f32 %v2835, %v2856
  %v2860 = vmul.f32 %v2836, %v2857
  %v2861 = vmul.f32 %v2837, %v2858
  %v2862 = vlaneseq
  %v2863 = vshrl.u32 %v2862, 7
  %v2864 = vsub.s32 0, %v2863
  %v2865 = vrot.slane %v2821, %v2864
  %v2866 = vmul.f32 %v2859, %v2865
  %v2867 = vmul.f32 %v2860, %v2865
  %v2868 = vmul.f32 %v2861, %v2865
  %v2869 = vlaneseq
  %v2870 = vshrl.u32 %v2869, 7
  %v2871 = vsub.s32 0, %v2870
  %v2872 = vrot.slane %v2822, %v2871
  %v2873 = vadd.f32 %v2866, %v2872
  %v2874 = vadd.f32 %v2867, %v2872
  %v2875 = vadd.f32 %v2868, %v2872
  %v2876 = vld [vmem:[%s1 + $0x2e0] sm:$0xff]
  %v2877 = vld [vmem:[%s1 + $0x2e8] sm:$0xff]
  %v2878 = vld [vmem:[%s1 + $0x2f0] sm:$0xff]
  %v2879 = vld [vmem:[%s1 + $0x2f8] sm:$0xff]
  %v2880 = vld [vmem:[%s1 + $0x300] sm:$0x1]
  %v2881 = vlaneseq
  %v2882 = vshrl.u32 %v2881, 7
  %v2883 = vsub.s32 0, %v2882
  %v2884 = vrot.slane %v2880, %v2883
  %v2886 = vsel %vm85, %v2873, 0
  %v2889 = vsel %vm85, %v2874, 0
  %v2892 = vsel %vm85, %v2875, 0
  %2894 = vmatprep.subr.mxu0 0.0
  %2895 = vmatpush1.msra.mxu0 %v2876
  %2896 = vmatprep.subr.mxu0 0.0
  %2897 = vmatpush1.msra.mxu0 %v2877
  %2898 = vmatprep.subr.mxu0 0.0
  %2899 = vmatpush1.msra.mxu0 %v2878
  %2900 = vmatprep.subr.mxu0 0.0
  %2901 = vmatpush1.msra.mxu0 %v2879
  %2902 = vmatprep.subr.mxu0 0.0
  %2903 = vmatpush1.msra.mxu0 0.0
  %2904 = vmatprep.subr.mxu0 0.0
  %2905 = vmatpush1.msra.mxu0 0.0
  %2906 = vmatprep.subr.mxu0 0.0
  %2907 = vmatpush1.msra.mxu0 0.0
  %2908 = vmatprep.subr.mxu0 0.0
  %2909 = vmatpush1.msra.mxu0 0.0
  %2910 = vmatprep.subr.mxu0 0.0
  %2911 = vmatpush1.msra.mxu0 0.0
  %2912 = vmatprep.subr.mxu0 0.0
  %2913 = vmatpush1.msra.mxu0 0.0
  %2914 = vmatprep.subr.mxu0 0.0
  %2915 = vmatpush1.msra.mxu0 0.0
  %2916 = vmatprep.subr.mxu0 0.0
  %2917 = vmatpush1.msra.mxu0 0.0
  %2918 = vmatprep.subr.mxu0 0.0
  %2919 = vmatpush1.msra.mxu0 0.0
  %2920 = vmatprep.subr.mxu0 0.0
  %2921 = vmatpush1.msra.mxu0 0.0
  %2922 = vmatprep.subr.mxu0 0.0
  %2923 = vmatpush1.msra.mxu0 0.0
  %2924 = vmatprep.subr.mxu0 0.0
  %2925 = vmatpush1.msra.mxu0 0.0
  %2926 = vmatprep.subr.mxu0 0.0
  %2927 = vmatpush1.msra.mxu0 0.0
  %2928 = vmatprep.subr.mxu0 0.0
  %2929 = vmatpush1.msra.mxu0 0.0
  %2930 = vmatprep.subr.mxu0 0.0
  %2931 = vmatpush1.msra.mxu0 0.0
  %2932 = vmatprep.subr.mxu0 0.0
  %2933 = vmatpush1.msra.mxu0 0.0
  %2934 = vmatprep.subr.mxu0 0.0
  %2935 = vmatpush1.msra.mxu0 0.0
  %2936 = vmatprep.subr.mxu0 0.0
  %2937 = vmatpush1.msra.mxu0 0.0
  %2938 = vmatprep.subr.mxu0 0.0
  %2939 = vmatpush1.msra.mxu0 0.0
  %2940 = vmatprep.subr.mxu0 0.0
  %2941 = vmatpush1.msra.mxu0 0.0
  %2942 = vmatprep.subr.mxu0 0.0
  %2943 = vmatpush1.msra.mxu0 0.0
  %2944 = vmatprep.subr.mxu0 0.0
  %2945 = vmatpush1.msra.mxu0 0.0
  %2946 = vmatprep.subr.mxu0 0.0
  %2947 = vmatpush1.msra.mxu0 0.0
  %2948 = vmatprep.subr.mxu0 0.0
  %2949 = vmatpush1.msra.mxu0 0.0
  %2950 = vmatprep.subr.mxu0 0.0
  %2951 = vmatpush1.msra.mxu0 0.0
  %2952 = vmatprep.subr.mxu0 0.0
  %2953 = vmatpush1.msra.mxu0 0.0
  %2954 = vmatprep.subr.mxu0 0.0
  %2955 = vmatpush1.msra.mxu0 0.0
  %2956 = vmatprep.subr.mxu0 0.0
  %2957 = vmatpush1.msra.mxu0 0.0
  %2958 = vmatprep.mubr.f32.mxu0 0.0
  %2959 = vmatmul.mubr.f32.gmra.mrb[0].mxu0 %v2886
  %v2960 = vpop.f32.mrb[0].mxu0
  %v2961 = vadd.f32 %v2884, %v2960
  %v2962 = vpop.f32.mrb[0].mxu0
  %2963 = vmatprep.mubr.f32.mxu0 0.0
  %2964 = vmatmul.mubr.f32.gmra.mrb[0].mxu0 %v2889
  %v2965 = vpop.f32.mrb[0].mxu0
  %v2966 = vadd.f32 %v2884, %v2965
  %v2967 = vpop.f32.mrb[0].mxu0
  %2968 = vmatprep.mubr.f32.mxu0 0.0
  %2969 = vmatmul.mubr.f32.gmra.mrb[0].mxu0 %v2892
  %v2970 = vpop.f32.mrb[0].mxu0
  %v2971 = vadd.f32 %v2884, %v2970
  %v2972 = vpop.f32.mrb[0].mxu0
  %2973 = vdwg.mxu0
  %v2974 = vld [vmem:[%s1 + $0x308] sm:$0xff]
  %v2975 = vld [vmem:[%s1 + $0x310] sm:$0xff]
  %v2976 = vld [vmem:[%s1 + $0x318] sm:$0xff]
  %v2977 = vld [vmem:[%s1 + $0x320] sm:$0xff]
  %v2978 = vld [vmem:[%s1 + $0x328] sm:$0x1]
  %v2979 = vlaneseq
  %v2980 = vshrl.u32 %v2979, 7
  %v2981 = vsub.s32 0, %v2980
  %v2982 = vrot.slane %v2978, %v2981
  %v2984 = vsel %vm85, %v2068, 0
  %v2987 = vsel %vm85, %v2069, 0
  %v2990 = vsel %vm85, %v2070, 0
  %2992 = vmatprep.subr.mxu0 0.0
  %2993 = vmatpush1.msra.mxu0 %v2974
  %2994 = vmatprep.subr.mxu0 0.0
  %2995 = vmatpush1.msra.mxu0 %v2975
  %2996 = vmatprep.subr.mxu0 0.0
  %2997 = vmatpush1.msra.mxu0 %v2976
  %2998 = vmatprep.subr.mxu0 0.0
  %2999 = vmatpush1.msra.mxu0 %v2977
  %3000 = vmatprep.subr.mxu0 0.0
  %3001 = vmatpush1.msra.mxu0 0.0
  %3002 = vmatprep.subr.mxu0 0.0
  %3003 = vmatpush1.msra.mxu0 0.0
  %3004 = vmatprep.subr.mxu0 0.0
  %3005 = vmatpush1.msra.mxu0 0.0
  %3006 = vmatprep.subr.mxu0 0.0
  %3007 = vmatpush1.msra.mxu0 0.0
  %3008 = vmatprep.subr.mxu0 0.0
  %3009 = vmatpush1.msra.mxu0 0.0
  %3010 = vmatprep.subr.mxu0 0.0
  %3011 = vmatpush1.msra.mxu0 0.0
  %3012 = vmatprep.subr.mxu0 0.0
  %3013 = vmatpush1.msra.mxu0 0.0
  %3014 = vmatprep.subr.mxu0 0.0
  %3015 = vmatpush1.msra.mxu0 0.0
  %3016 = vmatprep.subr.mxu0 0.0
  %3017 = vmatpush1.msra.mxu0 0.0
  %3018 = vmatprep.subr.mxu0 0.0
  %3019 = vmatpush1.msra.mxu0 0.0
  %3020 = vmatprep.subr.mxu0 0.0
  %3021 = vmatpush1.msra.mxu0 0.0
  %3022 = vmatprep.subr.mxu0 0.0
  %3023 = vmatpush1.msra.mxu0 0.0
  %3024 = vmatprep.subr.mxu0 0.0
  %3025 = vmatpush1.msra.mxu0 0.0
  %3026 = vmatprep.subr.mxu0 0.0
  %3027 = vmatpush1.msra.mxu0 0.0
  %3028 = vmatprep.subr.mxu0 0.0
  %3029 = vmatpush1.msra.mxu0 0.0
  %3030 = vmatprep.subr.mxu0 0.0
  %3031 = vmatpush1.msra.mxu0 0.0
  %3032 = vmatprep.subr.mxu0 0.0
  %3033 = vmatpush1.msra.mxu0 0.0
  %3034 = vmatprep.subr.mxu0 0.0
  %3035 = vmatpush1.msra.mxu0 0.0
  %3036 = vmatprep.subr.mxu0 0.0
  %3037 = vmatpush1.msra.mxu0 0.0
  %3038 = vmatprep.subr.mxu0 0.0
  %3039 = vmatpush1.msra.mxu0 0.0
  %3040 = vmatprep.subr.mxu0 0.0
  %3041 = vmatpush1.msra.mxu0 0.0
  %3042 = vmatprep.subr.mxu0 0.0
  %3043 = vmatpush1.msra.mxu0 0.0
  %3044 = vmatprep.subr.mxu0 0.0
  %3045 = vmatpush1.msra.mxu0 0.0
  %3046 = vmatprep.subr.mxu0 0.0
  %3047 = vmatpush1.msra.mxu0 0.0
  %3048 = vmatprep.subr.mxu0 0.0
  %3049 = vmatpush1.msra.mxu0 0.0
  %3050 = vmatprep.subr.mxu0 0.0
  %3051 = vmatpush1.msra.mxu0 0.0
  %3052 = vmatprep.subr.mxu0 0.0
  %3053 = vmatpush1.msra.mxu0 0.0
  %3054 = vmatprep.subr.mxu0 0.0
  %3055 = vmatpush1.msra.mxu0 0.0
  %3056 = vmatprep.mubr.f32.mxu0 0.0
  %3057 = vmatmul.mubr.f32.gmra.mrb[0].mxu0 %v2984
  %v3058 = vpop.f32.mrb[0].mxu0
  %v3059 = vadd.f32 %v2982, %v3058
  %v3060 = vpop.f32.mrb[0].mxu0
  %3061 = vmatprep.mubr.f32.mxu0 0.0
  %3062 = vmatmul.mubr.f32.gmra.mrb[0].mxu0 %v2987
  %v3063 = vpop.f32.mrb[0].mxu0
  %v3064 = vadd.f32 %v2982, %v3063
  %v3065 = vpop.f32.mrb[0].mxu0
  %3066 = vmatprep.mubr.f32.mxu0 0.0
  %3067 = vmatmul.mubr.f32.gmra.mrb[0].mxu0 %v2990
  %v3068 = vpop.f32.mrb[0].mxu0
  %v3069 = vadd.f32 %v2982, %v3068
  %v3070 = vpop.f32.mrb[0].mxu0
  %3071 = vdwg.mxu0
  %3072 = vrot.lane.b32.xlu0 %v3059, 96
  %v3073 = vpop.permute.xlu0 %3072
  %3074 = vrot.lane.b32.xlu0 %v3064, 96
  %v3075 = vpop.permute.xlu0 %3074
  %3076 = vrot.lane.b32.xlu0 %v3069, 96
  %v3077 = vpop.permute.xlu0 %3076
  %v3078 = vld [vmem:[%s1 + $0x330] sm:$0xff]
  %v3079 = vld [vmem:[%s1 + $0x338] sm:$0xff]
  %v3080 = vld [vmem:[%s1 + $0x340] sm:$0xff]
  %v3081 = vld [vmem:[%s1 + $0x348] sm:$0xff]
  %v3082 = vld [vmem:[%s1 + $0x350] sm:$0x1]
  %v3083 = vmul.f32 %v3059, %v17
  %v3084 = vmul.f32 %v3064, %v17
  %v3085 = vmul.f32 %v3069, %v17
  %v3086 = vmul.f32 %v3059, %v22
  %v3087 = vmul.f32 %v3064, %v22
  %v3088 = vmul.f32 %v3069, %v22
  %v3089 = vmul.f32 %v3059, %v27
  %v3090 = vmul.f32 %v3064, %v27
  %v3091 = vmul.f32 %v3069, %v27
  %v3092 = vmul.f32 %v3059, %v32
  %v3093 = vmul.f32 %v3064, %v32
  %v3094 = vmul.f32 %v3069, %v32
  %v3095 = vmul.f32 %v3073, %v17
  %v3096 = vmul.f32 %v3075, %v17
  %v3097 = vmul.f32 %v3077, %v17
  %v3098 = vmul.f32 %v3073, %v22
  %v3099 = vmul.f32 %v3075, %v22
  %v3100 = vmul.f32 %v3077, %v22
  %v3101 = vmul.f32 %v3073, %v27
  %v3102 = vmul.f32 %v3075, %v27
  %v3103 = vmul.f32 %v3077, %v27
  %v3104 = vmul.f32 %v3073, %v32
  %v3105 = vmul.f32 %v3075, %v32
  %v3106 = vmul.f32 %v3077, %v32
  %v3108 = vsel %vm85, %v2961, 0
  %v3111 = vsel %vm85, %v2966, 0
  %v3114 = vsel %vm85, %v2971, 0
  %v3117 = vsel %vm85, %v3083, 0
  %v3120 = vsel %vm85, %v3084, 0
  %v3123 = vsel %vm85, %v3085, 0
  %v3126 = vsel %vm85, %v3086, 0
  %v3129 = vsel %vm85, %v3087, 0
  %v3132 = vsel %vm85, %v3088, 0
  %v3135 = vsel %vm85, %v3089, 0
  %v3138 = vsel %vm85, %v3090, 0
  %v3141 = vsel %vm85, %v3091, 0
  %v3144 = vsel %vm85, %v3092, 0
  %v3147 = vsel %vm85, %v3093, 0
  %v3150 = vsel %vm85, %v3094, 0
  %3152 = vmatprep.subr.mxu0 0.0
  %3153 = vmatpush1.xpose.msra.mxu0 %v3117
  %3154 = vmatprep.subr.mxu0 0.0
  %3155 = vmatpush1.xpose.msra.mxu0 %v3120
  %3156 = vmatprep.subr.mxu0 0.0
  %3157 = vmatpush1.xpose.msra.mxu0 %v3123
  %3158 = vmatprep.subr.mxu0 0.0
  %3159 = vmatpush1.xpose.msra.mxu0 %v437
  %3160 = vmatprep.subr.mxu0 0.0
  %3161 = vmatpush1.xpose.msra.mxu0 %v3126
  %3162 = vmatprep.subr.mxu0 0.0
  %3163 = vmatpush1.xpose.msra.mxu0 %v3129
  %3164 = vmatprep.subr.mxu0 0.0
  %3165 = vmatpush1.xpose.msra.mxu0 %v3132
  %3166 = vmatprep.subr.mxu0 0.0
  %3167 = vmatpush1.xpose.msra.mxu0 %v437
  %3168 = vmatprep.subr.mxu0 0.0
  %3169 = vmatpush1.xpose.msra.mxu0 %v3135
  %3170 = vmatprep.subr.mxu0 0.0
  %3171 = vmatpush1.xpose.msra.mxu0 %v3138
  %3172 = vmatprep.subr.mxu0 0.0
  %3173 = vmatpush1.xpose.msra.mxu0 %v3141
  %3174 = vmatprep.subr.mxu0 0.0
  %3175 = vmatpush1.xpose.msra.mxu0 %v437
  %3176 = vmatprep.subr.mxu0 0.0
  %3177 = vmatpush1.xpose.msra.mxu0 %v3144
  %3178 = vmatprep.subr.mxu0 0.0
  %3179 = vmatpush1.xpose.msra.mxu0 %v3147
  %3180 = vmatprep.subr.mxu0 0.0
  %3181 = vmatpush1.xpose.msra.mxu0 %v3150
  %3182 = vmatprep.subr.mxu0 0.0
  %3183 = vmatpush1.xpose.msra.mxu0 %v437
  %3184 = vmatprep.subr.mxu0 0.0
  %3185 = vmatpush1.xpose.msra.mxu0 0.0
  %3186 = vmatprep.subr.mxu0 0.0
  %3187 = vmatpush1.xpose.msra.mxu0 0.0
  %3188 = vmatprep.subr.mxu0 0.0
  %3189 = vmatpush1.xpose.msra.mxu0 0.0
  %3190 = vmatprep.subr.mxu0 0.0
  %3191 = vmatpush1.xpose.msra.mxu0 0.0
  %3192 = vmatprep.subr.mxu0 0.0
  %3193 = vmatpush1.xpose.msra.mxu0 0.0
  %3194 = vmatprep.subr.mxu0 0.0
  %3195 = vmatpush1.xpose.msra.mxu0 0.0
  %3196 = vmatprep.subr.mxu0 0.0
  %3197 = vmatpush1.xpose.msra.mxu0 0.0
  %3198 = vmatprep.subr.mxu0 0.0
  %3199 = vmatpush1.xpose.msra.mxu0 0.0
  %3200 = vmatprep.subr.mxu0 0.0
  %3201 = vmatpush1.xpose.msra.mxu0 0.0
  %3202 = vmatprep.subr.mxu0 0.0
  %3203 = vmatpush1.xpose.msra.mxu0 0.0
  %3204 = vmatprep.subr.mxu0 0.0
  %3205 = vmatpush1.xpose.msra.mxu0 0.0
  %3206 = vmatprep.subr.mxu0 0.0
  %3207 = vmatpush1.xpose.msra.mxu0 0.0
  %3208 = vmatprep.subr.mxu0 0.0
  %3209 = vmatpush1.xpose.msra.mxu0 0.0
  %3210 = vmatprep.subr.mxu0 0.0
  %3211 = vmatpush1.xpose.msra.mxu0 0.0
  %3212 = vmatprep.subr.mxu0 0.0
  %3213 = vmatpush1.xpose.msra.mxu0 0.0
  %3214 = vmatprep.subr.mxu0 0.0
  %3215 = vmatpush1.xpose.msra.mxu0 0.0
  %3216 = vmatprep.mubr.f32.mxu0 0.0
  %3217 = vmatmul.mubr.f32.gmra.mrb[0].mxu0 %v3108
  %v3218 = vpop.f32.mrb[0].mxu0
  %v3219 = vadd.f32 0.0, %v3218
  %v3220 = vpop.f32.mrb[0].mxu0
  %3221 = vmatprep.mubr.f32.mxu0 0.0
  %3222 = vmatmul.mubr.f32.gmra.mrb[0].mxu0 %v3111
  %v3223 = vpop.f32.mrb[0].mxu0
  %v3224 = vadd.f32 0.0, %v3223
  %v3225 = vpop.f32.mrb[0].mxu0
  %3226 = vmatprep.mubr.f32.mxu0 0.0
  %3227 = vmatmul.mubr.f32.gmra.mrb[0].mxu0 %v3114
  %v3228 = vpop.f32.mrb[0].mxu0
  %v3229 = vadd.f32 0.0, %v3228
  %v3230 = vpop.f32.mrb[0].mxu0
  %3231 = vdwg.mxu0
  %v3232 = vmul.f32 %v3219, 0.35355338
  %v3233 = vmul.f32 %v3224, 0.35355338
  %v3234 = vmul.f32 %v3229, 0.35355338
  %v3235 = vadd.f32 %v3232, %v52
  %v3236 = vadd.f32 %v3233, %v53
  %v3237 = vadd.f32 %v3234, %v54
  %3238 = vmax.xlane.f32.xlu0 %v3235
  %v3239 = vpop.xlane.xlu0 %3238
  %3240 = vmax.xlane.f32.xlu0 %v3236
  %v3241 = vpop.xlane.xlu0 %3240
  %3242 = vmax.xlane.f32.xlu0 %v3237
  %v3243 = vpop.xlane.xlu0 %3242
  %v3244 = vsub.f32 %v3235, %v3239
  %v3245 = vsub.f32 %v3236, %v3241
  %v3246 = vsub.f32 %v3237, %v3243
  %v3247 = vmul.f32 %v3244, 1.442695
  %v3248 = vpow.pop %v3247
  %v3249 = vmul.f32 %v3245, 1.442695
  %v3250 = vpow.pop %v3249
  %v3251 = vmul.f32 %v3246, 1.442695
  %v3252 = vpow.pop %v3251
  %3253 = vmatprep.subr.mxu0 0.0
  %3254 = vmatpush1.msra.mxu0 %v3095
  %3255 = vmatprep.subr.mxu0 0.0
  %3256 = vmatpush1.msra.mxu0 %v3096
  %3257 = vmatprep.subr.mxu0 0.0
  %3258 = vmatpush1.msra.mxu0 %v3097
  %3259 = vmatprep.subr.mxu0 0.0
  %3260 = vmatpush1.msra.mxu0 0.0
  %3261 = vmatprep.subr.mxu0 0.0
  %3262 = vmatpush1.msra.mxu0 %v3098
  %3263 = vmatprep.subr.mxu0 0.0
  %3264 = vmatpush1.msra.mxu0 %v3099
  %3265 = vmatprep.subr.mxu0 0.0
  %3266 = vmatpush1.msra.mxu0 %v3100
  %3267 = vmatprep.subr.mxu0 0.0
  %3268 = vmatpush1.msra.mxu0 0.0
  %3269 = vmatprep.subr.mxu0 0.0
  %3270 = vmatpush1.msra.mxu0 %v3101
  %3271 = vmatprep.subr.mxu0 0.0
  %3272 = vmatpush1.msra.mxu0 %v3102
  %3273 = vmatprep.subr.mxu0 0.0
  %3274 = vmatpush1.msra.mxu0 %v3103
  %3275 = vmatprep.subr.mxu0 0.0
  %3276 = vmatpush1.msra.mxu0 0.0
  %3277 = vmatprep.subr.mxu0 0.0
  %3278 = vmatpush1.msra.mxu0 %v3104
  %3279 = vmatprep.subr.mxu0 0.0
  %3280 = vmatpush1.msra.mxu0 %v3105
  %3281 = vmatprep.subr.mxu0 0.0
  %3282 = vmatpush1.msra.mxu0 %v3106
  %3283 = vmatprep.subr.mxu0 0.0
  %3284 = vmatpush1.msra.mxu0 0.0
  %3285 = vmatprep.subr.mxu0 0.0
  %3286 = vmatpush1.msra.mxu0 0.0
  %3287 = vmatprep.subr.mxu0 0.0
  %3288 = vmatpush1.msra.mxu0 0.0
  %3289 = vmatprep.subr.mxu0 0.0
  %3290 = vmatpush1.msra.mxu0 0.0
  %3291 = vmatprep.subr.mxu0 0.0
  %3292 = vmatpush1.msra.mxu0 0.0
  %3293 = vmatprep.subr.mxu0 0.0
  %3294 = vmatpush1.msra.mxu0 0.0
  %3295 = vmatprep.subr.mxu0 0.0
  %3296 = vmatpush1.msra.mxu0 0.0
  %3297 = vmatprep.subr.mxu0 0.0
  %3298 = vmatpush1.msra.mxu0 0.0
  %3299 = vmatprep.subr.mxu0 0.0
  %3300 = vmatpush1.msra.mxu0 0.0
  %3301 = vmatprep.subr.mxu0 0.0
  %3302 = vmatpush1.msra.mxu0 0.0
  %3303 = vmatprep.subr.mxu0 0.0
  %3304 = vmatpush1.msra.mxu0 0.0
  %3305 = vmatprep.subr.mxu0 0.0
  %3306 = vmatpush1.msra.mxu0 0.0
  %3307 = vmatprep.subr.mxu0 0.0
  %3308 = vmatpush1.msra.mxu0 0.0
  %3309 = vmatprep.subr.mxu0 0.0
  %3310 = vmatpush1.msra.mxu0 0.0
  %3311 = vmatprep.subr.mxu0 0.0
  %3312 = vmatpush1.msra.mxu0 0.0
  %3313 = vmatprep.subr.mxu0 0.0
  %3314 = vmatpush1.msra.mxu0 0.0
  %3315 = vmatprep.subr.mxu0 0.0
  %3316 = vmatpush1.msra.mxu0 0.0
  %3317 = vmatprep.mubr.f32.mxu0 0.0
  %3318 = vmatmul.mubr.f32.gmra.mrb[0].mxu0 %v3248
  %v3319 = vpop.f32.mrb[0].mxu0
  %v3320 = vadd.f32 0.0, %v3319
  %v3321 = vpop.f32.mrb[0].mxu0
  %3322 = vmatprep.mubr.f32.mxu0 0.0
  %3323 = vmatmul.mubr.f32.gmra.mrb[0].mxu0 %v3250
  %v3324 = vpop.f32.mrb[0].mxu0
  %v3325 = vadd.f32 0.0, %v3324
  %v3326 = vpop.f32.mrb[0].mxu0
  %3327 = vmatprep.mubr.f32.mxu0 0.0
  %3328 = vmatmul.mubr.f32.gmra.mrb[0].mxu0 %v3252
  %v3329 = vpop.f32.mrb[0].mxu0
  %v3330 = vadd.f32 0.0, %v3329
  %v3331 = vpop.f32.mrb[0].mxu0
  %3332 = vdwg.mxu0
  %3333 = vmatprep.subr.mxu0 0.0
  %3334 = vmatpush1.msra.mxu0 %v17
  %3335 = vmatprep.subr.mxu0 0.0
  %3336 = vmatpush1.msra.mxu0 %v17
  %3337 = vmatprep.subr.mxu0 0.0
  %3338 = vmatpush1.msra.mxu0 %v17
  %3339 = vmatprep.subr.mxu0 0.0
  %3340 = vmatpush1.msra.mxu0 %v17
  %3341 = vmatprep.subr.mxu0 0.0
  %3342 = vmatpush1.msra.mxu0 %v22
  %3343 = vmatprep.subr.mxu0 0.0
  %3344 = vmatpush1.msra.mxu0 %v22
  %3345 = vmatprep.subr.mxu0 0.0
  %3346 = vmatpush1.msra.mxu0 %v22
  %3347 = vmatprep.subr.mxu0 0.0
  %3348 = vmatpush1.msra.mxu0 %v22
  %3349 = vmatprep.subr.mxu0 0.0
  %3350 = vmatpush1.msra.mxu0 %v27
  %3351 = vmatprep.subr.mxu0 0.0
  %3352 = vmatpush1.msra.mxu0 %v27
  %3353 = vmatprep.subr.mxu0 0.0
  %3354 = vmatpush1.msra.mxu0 %v27
  %3355 = vmatprep.subr.mxu0 0.0
  %3356 = vmatpush1.msra.mxu0 %v27
  %3357 = vmatprep.subr.mxu0 0.0
  %3358 = vmatpush1.msra.mxu0 %v32
  %3359 = vmatprep.subr.mxu0 0.0
  %3360 = vmatpush1.msra.mxu0 %v32
  %3361 = vmatprep.subr.mxu0 0.0
  %3362 = vmatpush1.msra.mxu0 %v32
  %3363 = vmatprep.subr.mxu0 0.0
  %3364 = vmatpush1.msra.mxu0 %v32
  %3365 = vmatprep.subr.mxu0 0.0
  %3366 = vmatpush1.msra.mxu0 0.0
  %3367 = vmatprep.subr.mxu0 0.0
  %3368 = vmatpush1.msra.mxu0 0.0
  %3369 = vmatprep.subr.mxu0 0.0
  %3370 = vmatpush1.msra.mxu0 0.0
  %3371 = vmatprep.subr.mxu0 0.0
  %3372 = vmatpush1.msra.mxu0 0.0
  %3373 = vmatprep.subr.mxu0 0.0
  %3374 = vmatpush1.msra.mxu0 0.0
  %3375 = vmatprep.subr.mxu0 0.0
  %3376 = vmatpush1.msra.mxu0 0.0
  %3377 = vmatprep.subr.mxu0 0.0
  %3378 = vmatpush1.msra.mxu0 0.0
  %3379 = vmatprep.subr.mxu0 0.0
  %3380 = vmatpush1.msra.mxu0 0.0
  %3381 = vmatprep.subr.mxu0 0.0
  %3382 = vmatpush1.msra.mxu0 0.0
  %3383 = vmatprep.subr.mxu0 0.0
  %3384 = vmatpush1.msra.mxu0 0.0
  %3385 = vmatprep.subr.mxu0 0.0
  %3386 = vmatpush1.msra.mxu0 0.0
  %3387 = vmatprep.subr.mxu0 0.0
  %3388 = vmatpush1.msra.mxu0 0.0
  %3389 = vmatprep.subr.mxu0 0.0
  %3390 = vmatpush1.msra.mxu0 0.0
  %3391 = vmatprep.subr.mxu0 0.0
  %3392 = vmatpush1.msra.mxu0 0.0
  %3393 = vmatprep.subr.mxu0 0.0
  %3394 = vmatpush1.msra.mxu0 0.0
  %3395 = vmatprep.subr.mxu0 0.0
  %3396 = vmatpush1.msra.mxu0 0.0
  %3397 = vmatprep.mubr.f32.mxu0 0.0
  %3398 = vmatmul.mubr.f32.gmra.mrb[0].mxu0 %v3248
  %v3399 = vpop.f32.mrb[0].mxu0
  %v3400 = vadd.f32 0.0, %v3399
  %v3401 = vpop.f32.mrb[0].mxu0
  %3402 = vmatprep.mubr.f32.mxu0 0.0
  %3403 = vmatmul.mubr.f32.gmra.mrb[0].mxu0 %v3250
  %v3404 = vpop.f32.mrb[0].mxu0
  %v3405 = vadd.f32 0.0, %v3404
  %v3406 = vpop.f32.mrb[0].mxu0
  %3407 = vmatprep.mubr.f32.mxu0 0.0
  %3408 = vmatmul.mubr.f32.gmra.mrb[0].mxu0 %v3252
  %v3409 = vpop.f32.mrb[0].mxu0
  %v3410 = vadd.f32 0.0, %v3409
  %v3411 = vpop.f32.mrb[0].mxu0
  %3412 = vdwg.mxu0
  %v3413 = vmax.f32 %v3400, 1e-30
  %v3414 = vmax.f32 %v3405, 1e-30
  %v3415 = vmax.f32 %v3410, 1e-30
  %v3416 = vrcp.pop %v3413
  %v3417 = vrcp.pop %v3414
  %v3418 = vrcp.pop %v3415
  %v3419 = vmul.f32 %v3320, %v3416
  %v3420 = vmul.f32 %v3325, %v3417
  %v3421 = vmul.f32 %v3330, %v3418
  %v3422 = vlaneseq
  %v3423 = vshrl.u32 %v3422, 7
  %v3424 = vsub.s32 0, %v3423
  %v3425 = vrot.slane %v3082, %v3424
  %v3427 = vsel %vm85, %v3419, 0
  %v3430 = vsel %vm85, %v3420, 0
  %v3433 = vsel %vm85, %v3421, 0
  %3435 = vmatprep.subr.mxu0 0.0
  %3436 = vmatpush1.msra.mxu0 %v3078
  %3437 = vmatprep.subr.mxu0 0.0
  %3438 = vmatpush1.msra.mxu0 %v3079
  %3439 = vmatprep.subr.mxu0 0.0
  %3440 = vmatpush1.msra.mxu0 %v3080
  %3441 = vmatprep.subr.mxu0 0.0
  %3442 = vmatpush1.msra.mxu0 %v3081
  %3443 = vmatprep.subr.mxu0 0.0
  %3444 = vmatpush1.msra.mxu0 0.0
  %3445 = vmatprep.subr.mxu0 0.0
  %3446 = vmatpush1.msra.mxu0 0.0
  %3447 = vmatprep.subr.mxu0 0.0
  %3448 = vmatpush1.msra.mxu0 0.0
  %3449 = vmatprep.subr.mxu0 0.0
  %3450 = vmatpush1.msra.mxu0 0.0
  %3451 = vmatprep.subr.mxu0 0.0
  %3452 = vmatpush1.msra.mxu0 0.0
  %3453 = vmatprep.subr.mxu0 0.0
  %3454 = vmatpush1.msra.mxu0 0.0
  %3455 = vmatprep.subr.mxu0 0.0
  %3456 = vmatpush1.msra.mxu0 0.0
  %3457 = vmatprep.subr.mxu0 0.0
  %3458 = vmatpush1.msra.mxu0 0.0
  %3459 = vmatprep.subr.mxu0 0.0
  %3460 = vmatpush1.msra.mxu0 0.0
  %3461 = vmatprep.subr.mxu0 0.0
  %3462 = vmatpush1.msra.mxu0 0.0
  %3463 = vmatprep.subr.mxu0 0.0
  %3464 = vmatpush1.msra.mxu0 0.0
  %3465 = vmatprep.subr.mxu0 0.0
  %3466 = vmatpush1.msra.mxu0 0.0
  %3467 = vmatprep.subr.mxu0 0.0
  %3468 = vmatpush1.msra.mxu0 0.0
  %3469 = vmatprep.subr.mxu0 0.0
  %3470 = vmatpush1.msra.mxu0 0.0
  %3471 = vmatprep.subr.mxu0 0.0
  %3472 = vmatpush1.msra.mxu0 0.0
  %3473 = vmatprep.subr.mxu0 0.0
  %3474 = vmatpush1.msra.mxu0 0.0
  %3475 = vmatprep.subr.mxu0 0.0
  %3476 = vmatpush1.msra.mxu0 0.0
  %3477 = vmatprep.subr.mxu0 0.0
  %3478 = vmatpush1.msra.mxu0 0.0
  %3479 = vmatprep.subr.mxu0 0.0
  %3480 = vmatpush1.msra.mxu0 0.0
  %3481 = vmatprep.subr.mxu0 0.0
  %3482 = vmatpush1.msra.mxu0 0.0
  %3483 = vmatprep.subr.mxu0 0.0
  %3484 = vmatpush1.msra.mxu0 0.0
  %3485 = vmatprep.subr.mxu0 0.0
  %3486 = vmatpush1.msra.mxu0 0.0
  %3487 = vmatprep.subr.mxu0 0.0
  %3488 = vmatpush1.msra.mxu0 0.0
  %3489 = vmatprep.subr.mxu0 0.0
  %3490 = vmatpush1.msra.mxu0 0.0
  %3491 = vmatprep.subr.mxu0 0.0
  %3492 = vmatpush1.msra.mxu0 0.0
  %3493 = vmatprep.subr.mxu0 0.0
  %3494 = vmatpush1.msra.mxu0 0.0
  %3495 = vmatprep.subr.mxu0 0.0
  %3496 = vmatpush1.msra.mxu0 0.0
  %3497 = vmatprep.subr.mxu0 0.0
  %3498 = vmatpush1.msra.mxu0 0.0
  %3499 = vmatprep.mubr.f32.mxu0 0.0
  %3500 = vmatmul.mubr.f32.gmra.mrb[0].mxu0 %v3427
  %v3501 = vpop.f32.mrb[0].mxu0
  %v3502 = vadd.f32 %v3425, %v3501
  %v3503 = vpop.f32.mrb[0].mxu0
  %3504 = vmatprep.mubr.f32.mxu0 0.0
  %3505 = vmatmul.mubr.f32.gmra.mrb[0].mxu0 %v3430
  %v3506 = vpop.f32.mrb[0].mxu0
  %v3507 = vadd.f32 %v3425, %v3506
  %v3508 = vpop.f32.mrb[0].mxu0
  %3509 = vmatprep.mubr.f32.mxu0 0.0
  %3510 = vmatmul.mubr.f32.gmra.mrb[0].mxu0 %v3433
  %v3511 = vpop.f32.mrb[0].mxu0
  %v3512 = vadd.f32 %v3425, %v3511
  %v3513 = vpop.f32.mrb[0].mxu0
  %3514 = vdwg.mxu0
  %v3515 = vadd.f32 %v2873, %v3502
  %v3516 = vadd.f32 %v2874, %v3507
  %v3517 = vadd.f32 %v2875, %v3512
  %v3518 = vld [vmem:[%s1 + $0x3d8] sm:$0x1]
  %v3519 = vld [vmem:[%s1 + $0x3e0] sm:$0x1]
  %v3520 = vsel %vm85, %v3515, 0.0
  %3521 = vadd.xlane.f32.xlu0 %v3520
  %v3522 = vpop.xlane.xlu0 %3521
  %v3523 = vsel %vm85, %v3516, 0.0
  %3524 = vadd.xlane.f32.xlu0 %v3523
  %v3525 = vpop.xlane.xlu0 %3524
  %v3526 = vsel %vm85, %v3517, 0.0
  %3527 = vadd.xlane.f32.xlu0 %v3526
  %v3528 = vpop.xlane.xlu0 %3527
  %v3529 = vmul.f32 %v3522, %v843
  %v3530 = vmul.f32 %v3525, %v843
  %v3531 = vmul.f32 %v3528, %v843
  %v3532 = vsub.f32 %v3515, %v3529
  %v3533 = vsub.f32 %v3516, %v3530
  %v3534 = vsub.f32 %v3517, %v3531
  %v3535 = vmul.f32 %v3532, %v3532
  %v3536 = vmul.f32 %v3533, %v3533
  %v3537 = vmul.f32 %v3534, %v3534
  %v3538 = vsel %vm85, %v3535, 0.0
  %3539 = vadd.xlane.f32.xlu0 %v3538
  %v3540 = vpop.xlane.xlu0 %3539
  %v3541 = vsel %vm85, %v3536, 0.0
  %3542 = vadd.xlane.f32.xlu0 %v3541
  %v3543 = vpop.xlane.xlu0 %3542
  %v3544 = vsel %vm85, %v3537, 0.0
  %3545 = vadd.xlane.f32.xlu0 %v3544
  %v3546 = vpop.xlane.xlu0 %3545
  %v3547 = vmul.f32 %v3540, %v843
  %v3548 = vmul.f32 %v3543, %v843
  %v3549 = vmul.f32 %v3546, %v843
  %v3550 = vadd.f32 %v3547, 1e-05
  %v3551 = vadd.f32 %v3548, 1e-05
  %v3552 = vadd.f32 %v3549, 1e-05
  %v3553 = vrsqrt.pop %v3550
  %v3554 = vrsqrt.pop %v3551
  %v3555 = vrsqrt.pop %v3552
  %v3556 = vmul.f32 %v3532, %v3553
  %v3557 = vmul.f32 %v3533, %v3554
  %v3558 = vmul.f32 %v3534, %v3555
  %v3559 = vlaneseq
  %v3560 = vshrl.u32 %v3559, 7
  %v3561 = vsub.s32 0, %v3560
  %v3562 = vrot.slane %v3518, %v3561
  %v3563 = vmul.f32 %v3556, %v3562
  %v3564 = vmul.f32 %v3557, %v3562
  %v3565 = vmul.f32 %v3558, %v3562
  %v3566 = vlaneseq
  %v3567 = vshrl.u32 %v3566, 7
  %v3568 = vsub.s32 0, %v3567
  %v3569 = vrot.slane %v3519, %v3568
  %v3570 = vadd.f32 %v3563, %v3569
  %v3571 = vadd.f32 %v3564, %v3569
  %v3572 = vadd.f32 %v3565, %v3569
  %v3573 = vld [vmem:[%s1 + $0x358] sm:$0xff]
  %v3574 = vld [vmem:[%s1 + $0x360] sm:$0xff]
  %v3575 = vld [vmem:[%s1 + $0x368] sm:$0xff]
  %v3576 = vld [vmem:[%s1 + $0x370] sm:$0xff]
  %v3577 = vld [vmem:[%s1 + $0x378] sm:$0x1]
  %v3578 = vlaneseq
  %v3579 = vshrl.u32 %v3578, 7
  %v3580 = vsub.s32 0, %v3579
  %v3581 = vrot.slane %v3577, %v3580
  %v3583 = vsel %vm85, %v3570, 0
  %v3586 = vsel %vm85, %v3571, 0
  %v3589 = vsel %vm85, %v3572, 0
  %3591 = vmatprep.subr.mxu0 0.0
  %3592 = vmatpush1.msra.mxu0 %v3573
  %3593 = vmatprep.subr.mxu0 0.0
  %3594 = vmatpush1.msra.mxu0 %v3574
  %3595 = vmatprep.subr.mxu0 0.0
  %3596 = vmatpush1.msra.mxu0 %v3575
  %3597 = vmatprep.subr.mxu0 0.0
  %3598 = vmatpush1.msra.mxu0 %v3576
  %3599 = vmatprep.subr.mxu0 0.0
  %3600 = vmatpush1.msra.mxu0 0.0
  %3601 = vmatprep.subr.mxu0 0.0
  %3602 = vmatpush1.msra.mxu0 0.0
  %3603 = vmatprep.subr.mxu0 0.0
  %3604 = vmatpush1.msra.mxu0 0.0
  %3605 = vmatprep.subr.mxu0 0.0
  %3606 = vmatpush1.msra.mxu0 0.0
  %3607 = vmatprep.subr.mxu0 0.0
  %3608 = vmatpush1.msra.mxu0 0.0
  %3609 = vmatprep.subr.mxu0 0.0
  %3610 = vmatpush1.msra.mxu0 0.0
  %3611 = vmatprep.subr.mxu0 0.0
  %3612 = vmatpush1.msra.mxu0 0.0
  %3613 = vmatprep.subr.mxu0 0.0
  %3614 = vmatpush1.msra.mxu0 0.0
  %3615 = vmatprep.subr.mxu0 0.0
  %3616 = vmatpush1.msra.mxu0 0.0
  %3617 = vmatprep.subr.mxu0 0.0
  %3618 = vmatpush1.msra.mxu0 0.0
  %3619 = vmatprep.subr.mxu0 0.0
  %3620 = vmatpush1.msra.mxu0 0.0
  %3621 = vmatprep.subr.mxu0 0.0
  %3622 = vmatpush1.msra.mxu0 0.0
  %3623 = vmatprep.subr.mxu0 0.0
  %3624 = vmatpush1.msra.mxu0 0.0
  %3625 = vmatprep.subr.mxu0 0.0
  %3626 = vmatpush1.msra.mxu0 0.0
  %3627 = vmatprep.subr.mxu0 0.0
  %3628 = vmatpush1.msra.mxu0 0.0
  %3629 = vmatprep.subr.mxu0 0.0
  %3630 = vmatpush1.msra.mxu0 0.0
  %3631 = vmatprep.subr.mxu0 0.0
  %3632 = vmatpush1.msra.mxu0 0.0
  %3633 = vmatprep.subr.mxu0 0.0
  %3634 = vmatpush1.msra.mxu0 0.0
  %3635 = vmatprep.subr.mxu0 0.0
  %3636 = vmatpush1.msra.mxu0 0.0
  %3637 = vmatprep.subr.mxu0 0.0
  %3638 = vmatpush1.msra.mxu0 0.0
  %3639 = vmatprep.subr.mxu0 0.0
  %3640 = vmatpush1.msra.mxu0 0.0
  %3641 = vmatprep.subr.mxu0 0.0
  %3642 = vmatpush1.msra.mxu0 0.0
  %3643 = vmatprep.subr.mxu0 0.0
  %3644 = vmatpush1.msra.mxu0 0.0
  %3645 = vmatprep.subr.mxu0 0.0
  %3646 = vmatpush1.msra.mxu0 0.0
  %3647 = vmatprep.subr.mxu0 0.0
  %3648 = vmatpush1.msra.mxu0 0.0
  %3649 = vmatprep.subr.mxu0 0.0
  %3650 = vmatpush1.msra.mxu0 0.0
  %3651 = vmatprep.subr.mxu0 0.0
  %3652 = vmatpush1.msra.mxu0 0.0
  %3653 = vmatprep.subr.mxu0 0.0
  %3654 = vmatpush1.msra.mxu0 0.0
  %3655 = vmatprep.mubr.f32.mxu0 0.0
  %3656 = vmatmul.mubr.f32.gmra.mrb[0].mxu0 %v3583
  %v3657 = vpop.f32.mrb[0].mxu0
  %v3658 = vadd.f32 %v3581, %v3657
  %v3659 = vpop.f32.mrb[0].mxu0
  %3660 = vmatprep.mubr.f32.mxu0 0.0
  %3661 = vmatmul.mubr.f32.gmra.mrb[0].mxu0 %v3586
  %v3662 = vpop.f32.mrb[0].mxu0
  %v3663 = vadd.f32 %v3581, %v3662
  %v3664 = vpop.f32.mrb[0].mxu0
  %3665 = vmatprep.mubr.f32.mxu0 0.0
  %3666 = vmatmul.mubr.f32.gmra.mrb[0].mxu0 %v3589
  %v3667 = vpop.f32.mrb[0].mxu0
  %v3668 = vadd.f32 %v3581, %v3667
  %v3669 = vpop.f32.mrb[0].mxu0
  %3670 = vdwg.mxu0
  %v3671 = vmax.f32 %v3658, 0.0
  %v3672 = vmax.f32 %v3663, 0.0
  %v3673 = vmax.f32 %v3668, 0.0
  %v3674 = vld [vmem:[%s1 + $0x380] sm:$0xff]
  %v3675 = vld [vmem:[%s1 + $0x388] sm:$0xff]
  %v3676 = vld [vmem:[%s1 + $0x390] sm:$0xff]
  %v3677 = vld [vmem:[%s1 + $0x398] sm:$0xff]
  %v3678 = vld [vmem:[%s1 + $0x3a0] sm:$0xff]
  %v3679 = vld [vmem:[%s1 + $0x3a8] sm:$0xff]
  %v3680 = vld [vmem:[%s1 + $0x3b0] sm:$0xff]
  %v3681 = vld [vmem:[%s1 + $0x3b8] sm:$0xff]
  %v3682 = vld [vmem:[%s1 + $0x3c0] sm:$0x1]
  %v3683 = vlaneseq
  %v3684 = vshrl.u32 %v3683, 7
  %v3685 = vsub.s32 0, %v3684
  %v3686 = vrot.slane %v3682, %v3685
  %v3688 = vsel %vm1002, %v3671, 0
  %v3691 = vsel %vm1002, %v3672, 0
  %v3694 = vsel %vm1002, %v3673, 0
  %3696 = vmatprep.subr.mxu0 0.0
  %3697 = vmatpush1.msra.mxu0 %v3674
  %3698 = vmatprep.subr.mxu0 0.0
  %3699 = vmatpush1.msra.mxu0 %v3675
  %3700 = vmatprep.subr.mxu0 0.0
  %3701 = vmatpush1.msra.mxu0 %v3676
  %3702 = vmatprep.subr.mxu0 0.0
  %3703 = vmatpush1.msra.mxu0 %v3677
  %3704 = vmatprep.subr.mxu0 0.0
  %3705 = vmatpush1.msra.mxu0 %v3678
  %3706 = vmatprep.subr.mxu0 0.0
  %3707 = vmatpush1.msra.mxu0 %v3679
  %3708 = vmatprep.subr.mxu0 0.0
  %3709 = vmatpush1.msra.mxu0 %v3680
  %3710 = vmatprep.subr.mxu0 0.0
  %3711 = vmatpush1.msra.mxu0 %v3681
  %3712 = vmatprep.subr.mxu0 0.0
  %3713 = vmatpush1.msra.mxu0 0.0
  %3714 = vmatprep.subr.mxu0 0.0
  %3715 = vmatpush1.msra.mxu0 0.0
  %3716 = vmatprep.subr.mxu0 0.0
  %3717 = vmatpush1.msra.mxu0 0.0
  %3718 = vmatprep.subr.mxu0 0.0
  %3719 = vmatpush1.msra.mxu0 0.0
  %3720 = vmatprep.subr.mxu0 0.0
  %3721 = vmatpush1.msra.mxu0 0.0
  %3722 = vmatprep.subr.mxu0 0.0
  %3723 = vmatpush1.msra.mxu0 0.0
  %3724 = vmatprep.subr.mxu0 0.0
  %3725 = vmatpush1.msra.mxu0 0.0
  %3726 = vmatprep.subr.mxu0 0.0
  %3727 = vmatpush1.msra.mxu0 0.0
  %3728 = vmatprep.subr.mxu0 0.0
  %3729 = vmatpush1.msra.mxu0 0.0
  %3730 = vmatprep.subr.mxu0 0.0
  %3731 = vmatpush1.msra.mxu0 0.0
  %3732 = vmatprep.subr.mxu0 0.0
  %3733 = vmatpush1.msra.mxu0 0.0
  %3734 = vmatprep.subr.mxu0 0.0
  %3735 = vmatpush1.msra.mxu0 0.0
  %3736 = vmatprep.subr.mxu0 0.0
  %3737 = vmatpush1.msra.mxu0 0.0
  %3738 = vmatprep.subr.mxu0 0.0
  %3739 = vmatpush1.msra.mxu0 0.0
  %3740 = vmatprep.subr.mxu0 0.0
  %3741 = vmatpush1.msra.mxu0 0.0
  %3742 = vmatprep.subr.mxu0 0.0
  %3743 = vmatpush1.msra.mxu0 0.0
  %3744 = vmatprep.subr.mxu0 0.0
  %3745 = vmatpush1.msra.mxu0 0.0
  %3746 = vmatprep.subr.mxu0 0.0
  %3747 = vmatpush1.msra.mxu0 0.0
  %3748 = vmatprep.subr.mxu0 0.0
  %3749 = vmatpush1.msra.mxu0 0.0
  %3750 = vmatprep.subr.mxu0 0.0
  %3751 = vmatpush1.msra.mxu0 0.0
  %3752 = vmatprep.subr.mxu0 0.0
  %3753 = vmatpush1.msra.mxu0 0.0
  %3754 = vmatprep.subr.mxu0 0.0
  %3755 = vmatpush1.msra.mxu0 0.0
  %3756 = vmatprep.subr.mxu0 0.0
  %3757 = vmatpush1.msra.mxu0 0.0
  %3758 = vmatprep.subr.mxu0 0.0
  %3759 = vmatpush1.msra.mxu0 0.0
  %3760 = vmatprep.mubr.f32.mxu0 0.0
  %3761 = vmatmul.mubr.f32.gmra.mrb[0].mxu0 %v3688
  %v3762 = vpop.f32.mrb[0].mxu0
  %v3763 = vadd.f32 %v3686, %v3762
  %v3764 = vpop.f32.mrb[0].mxu0
  %3765 = vmatprep.mubr.f32.mxu0 0.0
  %3766 = vmatmul.mubr.f32.gmra.mrb[0].mxu0 %v3691
  %v3767 = vpop.f32.mrb[0].mxu0
  %v3768 = vadd.f32 %v3686, %v3767
  %v3769 = vpop.f32.mrb[0].mxu0
  %3770 = vmatprep.mubr.f32.mxu0 0.0
  %3771 = vmatmul.mubr.f32.gmra.mrb[0].mxu0 %v3694
  %v3772 = vpop.f32.mrb[0].mxu0
  %v3773 = vadd.f32 %v3686, %v3772
  %v3774 = vpop.f32.mrb[0].mxu0
  %3775 = vdwg.mxu0
  %v3776 = vadd.f32 %v3570, %v3763
  %v3777 = vadd.f32 %v3571, %v3768
  %v3778 = vadd.f32 %v3572, %v3773
  %v3779 = vld [vmem:[%s1 + $0x3e8] sm:$0x1]
  %v3780 = vld [vmem:[%s1 + $0x3f0] sm:$0x1]
  %v3781 = vsel %vm85, %v3776, 0.0
  %3782 = vadd.xlane.f32.xlu0 %v3781
  %v3783 = vpop.xlane.xlu0 %3782
  %v3784 = vsel %vm85, %v3777, 0.0
  %3785 = vadd.xlane.f32.xlu0 %v3784
  %v3786 = vpop.xlane.xlu0 %3785
  %v3787 = vsel %vm85, %v3778, 0.0
  %3788 = vadd.xlane.f32.xlu0 %v3787
  %v3789 = vpop.xlane.xlu0 %3788
  %v3790 = vmul.f32 %v3783, %v843
  %v3791 = vmul.f32 %v3786, %v843
  %v3792 = vmul.f32 %v3789, %v843
  %v3793 = vsub.f32 %v3776, %v3790
  %v3794 = vsub.f32 %v3777, %v3791
  %v3795 = vsub.f32 %v3778, %v3792
  %v3796 = vmul.f32 %v3793, %v3793
  %v3797 = vmul.f32 %v3794, %v3794
  %v3798 = vmul.f32 %v3795, %v3795
  %v3799 = vsel %vm85, %v3796, 0.0
  %3800 = vadd.xlane.f32.xlu0 %v3799
  %v3801 = vpop.xlane.xlu0 %3800
  %v3802 = vsel %vm85, %v3797, 0.0
  %3803 = vadd.xlane.f32.xlu0 %v3802
  %v3804 = vpop.xlane.xlu0 %3803
  %v3805 = vsel %vm85, %v3798, 0.0
  %3806 = vadd.xlane.f32.xlu0 %v3805
  %v3807 = vpop.xlane.xlu0 %3806
  %v3808 = vmul.f32 %v3801, %v843
  %v3809 = vmul.f32 %v3804, %v843
  %v3810 = vmul.f32 %v3807, %v843
  %v3811 = vadd.f32 %v3808, 1e-05
  %v3812 = vadd.f32 %v3809, 1e-05
  %v3813 = vadd.f32 %v3810, 1e-05
  %v3814 = vrsqrt.pop %v3811
  %v3815 = vrsqrt.pop %v3812
  %v3816 = vrsqrt.pop %v3813
  %v3817 = vmul.f32 %v3793, %v3814
  %v3818 = vmul.f32 %v3794, %v3815
  %v3819 = vmul.f32 %v3795, %v3816
  %v3820 = vlaneseq
  %v3821 = vshrl.u32 %v3820, 7
  %v3822 = vsub.s32 0, %v3821
  %v3823 = vrot.slane %v3779, %v3822
  %v3824 = vmul.f32 %v3817, %v3823
  %v3825 = vmul.f32 %v3818, %v3823
  %v3826 = vmul.f32 %v3819, %v3823
  %v3827 = vlaneseq
  %v3828 = vshrl.u32 %v3827, 7
  %v3829 = vsub.s32 0, %v3828
  %v3830 = vrot.slane %v3780, %v3829
  %v3831 = vadd.f32 %v3824, %v3830
  %v3832 = vadd.f32 %v3825, %v3830
  %v3833 = vadd.f32 %v3826, %v3830
  %v3834 = vld [vmem:[%s1 + $0x3f8] sm:$0x1]
  %v3835 = vld [vmem:[%s1 + $0x400] sm:$0x1]
  %v3836 = vsel %vm85, %v3831, 0.0
  %3837 = vadd.xlane.f32.xlu0 %v3836
  %v3838 = vpop.xlane.xlu0 %3837
  %v3839 = vsel %vm85, %v3832, 0.0
  %3840 = vadd.xlane.f32.xlu0 %v3839
  %v3841 = vpop.xlane.xlu0 %3840
  %v3842 = vsel %vm85, %v3833, 0.0
  %3843 = vadd.xlane.f32.xlu0 %v3842
  %v3844 = vpop.xlane.xlu0 %3843
  %v3845 = vmul.f32 %v3838, %v843
  %v3846 = vmul.f32 %v3841, %v843
  %v3847 = vmul.f32 %v3844, %v843
  %v3848 = vsub.f32 %v3831, %v3845
  %v3849 = vsub.f32 %v3832, %v3846
  %v3850 = vsub.f32 %v3833, %v3847
  %v3851 = vmul.f32 %v3848, %v3848
  %v3852 = vmul.f32 %v3849, %v3849
  %v3853 = vmul.f32 %v3850, %v3850
  %v3854 = vsel %vm85, %v3851, 0.0
  %3855 = vadd.xlane.f32.xlu0 %v3854
  %v3856 = vpop.xlane.xlu0 %3855
  %v3857 = vsel %vm85, %v3852, 0.0
  %3858 = vadd.xlane.f32.xlu0 %v3857
  %v3859 = vpop.xlane.xlu0 %3858
  %v3860 = vsel %vm85, %v3853, 0.0
  %3861 = vadd.xlane.f32.xlu0 %v3860
  %v3862 = vpop.xlane.xlu0 %3861
  %v3863 = vmul.f32 %v3856, %v843
  %v3864 = vmul.f32 %v3859, %v843
  %v3865 = vmul.f32 %v3862, %v843
  %v3866 = vadd.f32 %v3863, 1e-05
  %v3867 = vadd.f32 %v3864, 1e-05
  %v3868 = vadd.f32 %v3865, 1e-05
  %v3869 = vrsqrt.pop %v3866
  %v3870 = vrsqrt.pop %v3867
  %v3871 = vrsqrt.pop %v3868
  %v3872 = vmul.f32 %v3848, %v3869
  %v3873 = vmul.f32 %v3849, %v3870
  %v3874 = vmul.f32 %v3850, %v3871
  %v3875 = vlaneseq
  %v3876 = vshrl.u32 %v3875, 7
  %v3877 = vsub.s32 0, %v3876
  %v3878 = vrot.slane %v3834, %v3877
  %v3879 = vmul.f32 %v3872, %v3878
  %v3880 = vmul.f32 %v3873, %v3878
  %v3881 = vmul.f32 %v3874, %v3878
  %v3882 = vlaneseq
  %v3883 = vshrl.u32 %v3882, 7
  %v3884 = vsub.s32 0, %v3883
  %v3885 = vrot.slane %v3835, %v3884
  %v3886 = vadd.f32 %v3879, %v3885
  %v3887 = vadd.f32 %v3880, %v3885
  %v3888 = vadd.f32 %v3881, %v3885
  %v3889 = vld [vmem:[%s1 + $0x408] sm:$0xff]
  %v3890 = vld [vmem:[%s1 + $0x410] sm:$0xff]
  %v3891 = vld [vmem:[%s1 + $0x418] sm:$0xff]
  %v3892 = vld [vmem:[%s1 + $0x420] sm:$0xff]
  %v3893 = vld [vmem:[%s1 + $0x428] sm:$0x1]
  %v3894 = vlaneseq
  %v3895 = vshrl.u32 %v3894, 7
  %v3896 = vsub.s32 0, %v3895
  %v3897 = vrot.slane %v3893, %v3896
  %v3899 = vsel %vm85, %v3886, 0
  %v3902 = vsel %vm85, %v3887, 0
  %v3905 = vsel %vm85, %v3888, 0
  %3907 = vmatprep.subr.mxu0 0.0
  %3908 = vmatpush1.msra.mxu0 %v3889
  %3909 = vmatprep.subr.mxu0 0.0
  %3910 = vmatpush1.msra.mxu0 %v3890
  %3911 = vmatprep.subr.mxu0 0.0
  %3912 = vmatpush1.msra.mxu0 %v3891
  %3913 = vmatprep.subr.mxu0 0.0
  %3914 = vmatpush1.msra.mxu0 %v3892
  %3915 = vmatprep.subr.mxu0 0.0
  %3916 = vmatpush1.msra.mxu0 0.0
  %3917 = vmatprep.subr.mxu0 0.0
  %3918 = vmatpush1.msra.mxu0 0.0
  %3919 = vmatprep.subr.mxu0 0.0
  %3920 = vmatpush1.msra.mxu0 0.0
  %3921 = vmatprep.subr.mxu0 0.0
  %3922 = vmatpush1.msra.mxu0 0.0
  %3923 = vmatprep.subr.mxu0 0.0
  %3924 = vmatpush1.msra.mxu0 0.0
  %3925 = vmatprep.subr.mxu0 0.0
  %3926 = vmatpush1.msra.mxu0 0.0
  %3927 = vmatprep.subr.mxu0 0.0
  %3928 = vmatpush1.msra.mxu0 0.0
  %3929 = vmatprep.subr.mxu0 0.0
  %3930 = vmatpush1.msra.mxu0 0.0
  %3931 = vmatprep.subr.mxu0 0.0
  %3932 = vmatpush1.msra.mxu0 0.0
  %3933 = vmatprep.subr.mxu0 0.0
  %3934 = vmatpush1.msra.mxu0 0.0
  %3935 = vmatprep.subr.mxu0 0.0
  %3936 = vmatpush1.msra.mxu0 0.0
  %3937 = vmatprep.subr.mxu0 0.0
  %3938 = vmatpush1.msra.mxu0 0.0
  %3939 = vmatprep.subr.mxu0 0.0
  %3940 = vmatpush1.msra.mxu0 0.0
  %3941 = vmatprep.subr.mxu0 0.0
  %3942 = vmatpush1.msra.mxu0 0.0
  %3943 = vmatprep.subr.mxu0 0.0
  %3944 = vmatpush1.msra.mxu0 0.0
  %3945 = vmatprep.subr.mxu0 0.0
  %3946 = vmatpush1.msra.mxu0 0.0
  %3947 = vmatprep.subr.mxu0 0.0
  %3948 = vmatpush1.msra.mxu0 0.0
  %3949 = vmatprep.subr.mxu0 0.0
  %3950 = vmatpush1.msra.mxu0 0.0
  %3951 = vmatprep.subr.mxu0 0.0
  %3952 = vmatpush1.msra.mxu0 0.0
  %3953 = vmatprep.subr.mxu0 0.0
  %3954 = vmatpush1.msra.mxu0 0.0
  %3955 = vmatprep.subr.mxu0 0.0
  %3956 = vmatpush1.msra.mxu0 0.0
  %3957 = vmatprep.subr.mxu0 0.0
  %3958 = vmatpush1.msra.mxu0 0.0
  %3959 = vmatprep.subr.mxu0 0.0
  %3960 = vmatpush1.msra.mxu0 0.0
  %3961 = vmatprep.subr.mxu0 0.0
  %3962 = vmatpush1.msra.mxu0 0.0
  %3963 = vmatprep.subr.mxu0 0.0
  %3964 = vmatpush1.msra.mxu0 0.0
  %3965 = vmatprep.subr.mxu0 0.0
  %3966 = vmatpush1.msra.mxu0 0.0
  %3967 = vmatprep.subr.mxu0 0.0
  %3968 = vmatpush1.msra.mxu0 0.0
  %3969 = vmatprep.subr.mxu0 0.0
  %3970 = vmatpush1.msra.mxu0 0.0
  %3971 = vmatprep.mubr.f32.mxu0 0.0
  %3972 = vmatmul.mubr.f32.gmra.mrb[0].mxu0 %v3899
  %v3973 = vpop.f32.mrb[0].mxu0
  %v3974 = vadd.f32 %v3897, %v3973
  %v3975 = vpop.f32.mrb[0].mxu0
  %3976 = vmatprep.mubr.f32.mxu0 0.0
  %3977 = vmatmul.mubr.f32.gmra.mrb[0].mxu0 %v3902
  %v3978 = vpop.f32.mrb[0].mxu0
  %v3979 = vadd.f32 %v3897, %v3978
  %v3980 = vpop.f32.mrb[0].mxu0
  %3981 = vmatprep.mubr.f32.mxu0 0.0
  %3982 = vmatmul.mubr.f32.gmra.mrb[0].mxu0 %v3905
  %v3983 = vpop.f32.mrb[0].mxu0
  %v3984 = vadd.f32 %v3897, %v3983
  %v3985 = vpop.f32.mrb[0].mxu0
  %3986 = vdwg.mxu0
  %3987 = vst [vmem:[%s2] sm:$0xff] %v3974
  %3988 = vst [vmem:[%s2 + $0x8] sm:$0xff] %v3979
  %3989 = vst [vmem:[%s2 + $0x10] sm:$0xff] %v3984
  // Predicated region
  $region10: #{model_forward.1} parent=0 // pred_check
    _
  $region11: #{model_forward.1} parent=0 // pred_check_branch
    %3991 = sbr.rel (0) target = $region13
  $region12: #{model_forward.1} parent=0 // pred_region
    _
  $region13: #{model_forward.1} parent=0 // pred_fallthru
    _
  // Predicated region
  $region14: #{model_forward.1} parent=0 // pred_check
    _
  $region15: #{model_forward.1} parent=0 // pred_check_branch
    %3993 = sbr.rel (0) target = $region17
  $region16: #{model_forward.1} parent=0 // pred_region
    _
  $region17: #{model_forward.1} parent=0 // pred_fallthru
    _

</llo_original>
